<compile_context>
chip_gen: v7x
topology: tpu7x:2x2x1
jax: 0.10.0
libtpu: 0.0.40
codegen_flags: <defaults>
</compile_context>

<pallas_src>
import functools

import jax
import jax.numpy as jnp
from jax import lax
from jax.experimental import pallas as pl
from jax.experimental.pallas import tpu as pltpu


def rbfs2_kernel(xt_ref, feat_ref, w1_ref, w2_ref, w3_ref, w4_ref, w5_ref,
                 consts_ref, o_ref):
    # Feature RBFs on lane-packed [x, t | x, t] rows:
    #   exp(-0.5*(x - a*aw)^2 / (b^2*sigma2)) == exp((x - mu)^2 * (-inv))
    mu_xt = feat_ref[0:1, :]            # (1, pack*F)
    ninv_xt = feat_ref[1:2, :]          # (1, pack*F)
    h = jnp.exp((xt_ref[...] - mu_xt) ** 2 * ninv_xt)        # (TBP, pack*F)

    def rbf_layer(h, w_ref, row):
        # Linear + rbf2 with bias/mu folded:  exp((h @ W + (b-mu))^2 * (-inv))
        d = jnp.dot(h, w_ref[...], preferred_element_type=jnp.float32,
                    precision=lax.Precision.HIGHEST)
        c = consts_ref[row:row + 1, :]          # b_k - mu_k   (lane-tiled)
        ninv = consts_ref[row + 1:row + 2, :]   # -inv_k       (lane-tiled)
        return jnp.exp((d + c) ** 2 * ninv)

    h = rbf_layer(h, w1_ref, 0)
    h = rbf_layer(h, w2_ref, 2)
    h = rbf_layer(h, w3_ref, 4)
    h = rbf_layer(h, w4_ref, 6)

    # Final Linear(inner -> 1), block-diagonal so each packed batch row gets
    # its own output lane: (TBP, pack*inner) @ (pack*inner, pack) -> (TBP, pack)
    out = jnp.dot(h, w5_ref[...], preferred_element_type=jnp.float32,
                  precision=lax.Precision.HIGHEST)
    out = out + consts_ref[8:9, 0:1]        # b5 (scalar broadcast)
    o_ref[...] = out.astype(o_ref.dtype)


def _round_up(x, m):
    return ((x + m - 1) // m) * m


def choose_pack(inner):
    """Pack factor so inner*pack fills the 128-lane vreg width."""
    if inner < 128 and 128 % inner == 0:
        return 128 // inner
    return 1


def make_rbf_consts(num, range_x, first):
    """Mirror rbf2.__init__: aw, sigma2, a=1, b=1 -> (mu, inv) vectors."""
    if first:
        aw = jnp.linspace(range_x[0], range_x[1], num, dtype=jnp.float32)
    else:
        aw = 0.5 * jnp.ones((num,), dtype=jnp.float32)
    sigma2 = jnp.float32((range_x[1] - range_x[0]) ** 2 / 12.0)
    a = jnp.ones((num,), jnp.float32)
    b = jnp.ones((num,), jnp.float32)
    mu = a * aw                         # (num,)
    inv = 0.5 / (b ** 2 * sigma2)       # (num,)
    return mu, inv


def init_linear(key, fan_in, fan_out):
    """Deterministic stand-in for PyTorch Linear init (uniform +-1/sqrt(fan_in))."""
    kw, kb = jax.random.split(key)
    bound = 1.0 / jnp.sqrt(jnp.float32(fan_in))
    # stored as (fan_in, fan_out) so the kernel does h @ W directly
    w = jax.random.uniform(kw, (fan_in, fan_out), jnp.float32, -bound, bound)
    b = jax.random.uniform(kb, (fan_out,), jnp.float32, -bound, bound)
    return w, b


def make_raw_params(num_x, num_t, range_x, range_t, key):
    inner = 4 * (num_x + num_t)
    p = {}
    p["mu_x"], p["inv_x"] = make_rbf_consts(num_x, range_x, first=True)
    p["mu_t"], p["inv_t"] = make_rbf_consts(num_t, range_t, first=True)
    keys = jax.random.split(key, 5)
    p["w1"], p["b1"] = init_linear(keys[0], num_x + num_t, inner)
    p["w2"], p["b2"] = init_linear(keys[1], inner, inner)
    p["w3"], p["b3"] = init_linear(keys[2], inner, inner)
    p["w4"], p["b4"] = init_linear(keys[3], inner, inner)
    p["w5"], p["b5"] = init_linear(keys[4], inner, 1)
    for k in (1, 2, 3, 4):
        p[f"mu{k}"], p[f"inv{k}"] = make_rbf_consts(inner, (0.0, 1.0), first=False)
    return p


def pack_params(raw, pack):
    """Fold constants, lane-tile them, and build block-diagonal packed weights."""
    inner = raw["w2"].shape[0]

    def block_diag(w):
        return jax.scipy.linalg.block_diag(*([w] * pack))

    feat = jnp.stack([
        jnp.tile(jnp.concatenate([raw["mu_x"], raw["mu_t"]]), pack),
        jnp.tile(-jnp.concatenate([raw["inv_x"], raw["inv_t"]]), pack),
    ], axis=0)                                            # (2, pack*F)

    rows = []
    for k in (1, 2, 3, 4):
        rows.append(jnp.tile(raw[f"b{k}"] - raw[f"mu{k}"], pack))   # c_k = b_k - mu_k
        rows.append(jnp.tile(-raw[f"inv{k}"], pack))                # -inv_k
    rows.append(jnp.full((pack * inner,), raw["b5"][0]))            # b5 (broadcast row)
    consts = jnp.stack(rows, axis=0)                      # (9, pack*inner)

    return {"feat": feat, "consts": consts,
            "w1": block_diag(raw["w1"]),                  # (pack*F, pack*inner)
            "w2": block_diag(raw["w2"]),                  # (pack*inner, pack*inner)
            "w3": block_diag(raw["w3"]),
            "w4": block_diag(raw["w4"]),
            "w5": block_diag(raw["w5"])}                  # (pack*inner, pack)


@functools.partial(jax.jit, static_argnames=("pack", "block_batch"))
def rbfs2_forward(x, t, packed, pack=2, block_batch=4096):
    n = x.shape[0]
    xt = jnp.concatenate([x.astype(jnp.float32), t.astype(jnp.float32)], axis=1)
    f = xt.shape[1]
    inner_p = packed["w2"].shape[0]       # pack * inner
    fp = pack * f

    # Lane-pack `pack` batch rows per kernel row (free, row-major reshape).
    n1 = _round_up(n, pack)
    if n1 != n:
        xt = jnp.pad(xt, ((0, n1 - n), (0, 0)))
    rows = n1 // pack
    xt = xt.reshape(rows, fp)

    # Packed-row batch tile: multiple of 8 sublanes, big enough to amortize the
    # ~0.35us/step grid overhead, capped so the grid keeps >=2 steps (lets the
    # "parallel" axis shard across both TensorCores on v7x megacore).
    tbp = _round_up(max(block_batch // pack, 8), 8)
    if rows > 8:
        tbp = min(tbp, _round_up(pl.cdiv(rows, 2), 8))
    tbp = min(tbp, _round_up(rows, 8))
    rows_pad = _round_up(rows, tbp)
    if rows_pad != rows:
        xt = jnp.pad(xt, ((0, rows_pad - rows), (0, 0)))

    resident = lambda i: (0, 0)   # weights/constants: fetched once, stay in VMEM
    out = pl.pallas_call(
        rbfs2_kernel,
        out_shape=jax.ShapeDtypeStruct((rows_pad, pack), jnp.float32),
        grid=(rows_pad // tbp,),
        in_specs=[
            pl.BlockSpec((tbp, fp), lambda i: (i, 0)),     # packed xt tile (pipelined)
            pl.BlockSpec((2, fp), resident),               # feature mu / -inv
            pl.BlockSpec((fp, inner_p), resident),         # w1 (block-diag)
            pl.BlockSpec((inner_p, inner_p), resident),    # w2
            pl.BlockSpec((inner_p, inner_p), resident),    # w3
            pl.BlockSpec((inner_p, inner_p), resident),    # w4
            pl.BlockSpec((inner_p, pack), resident),       # w5 (block-diag)
            pl.BlockSpec((9, inner_p), resident),          # folded layer consts
        ],
        out_specs=pl.BlockSpec((tbp, pack), lambda i: (i, 0)),
        compiler_params=pltpu.CompilerParams(
            dimension_semantics=("parallel",)),            # megacore on v7x
    )(xt, packed["feat"], packed["w1"], packed["w2"], packed["w3"],
      packed["w4"], packed["w5"], packed["consts"])

    # Unpack lanes back to one output per batch row (free reshape), drop padding.
    return out.reshape(rows_pad * pack, 1)[:n]


def rbfs2_reference(x, t, p):
    hi = lax.Precision.HIGHEST

    def rbf(v, mu, inv):
        return jnp.exp(-(v - mu[None, :]) ** 2 * inv[None, :])

    h = jnp.concatenate([rbf(x, p["mu_x"], p["inv_x"]),
                         rbf(t, p["mu_t"], p["inv_t"])], axis=1)
    for k in (1, 2, 3, 4):
        h = rbf(jnp.dot(h, p[f"w{k}"], precision=hi) + p[f"b{k}"][None, :],
                p[f"mu{k}"], p[f"inv{k}"])
    return jnp.dot(h, p["w5"], precision=hi) + p["b5"][None, :]


if __name__ == "__main__":
    num_x, num_t = 8, 8
    range_x, range_t = (0.0, 1.0), (0.0, 1.0)
    batch = 200        # exercises a 2-step grid plus batch padding

    key = jax.random.PRNGKey(0)
    kx, kt, kp = jax.random.split(key, 3)
    x = jax.random.uniform(kx, (batch, num_x), jnp.float32, 0.0, 1.0)
    t = jax.random.uniform(kt, (batch, num_t), jnp.float32, 0.0, 1.0)

    raw = make_raw_params(num_x, num_t, range_x, range_t, kp)
    inner = raw["w2"].shape[0]
    pack = choose_pack(inner)            # inner=64 -> pack=2 (128-lane dense)
    packed = pack_params(raw, pack)

    out = rbfs2_forward(x, t, packed, pack=pack, block_batch=4096)
    out = jax.block_until_ready(out)

    ref = rbfs2_reference(x, t, raw)
    assert out.shape == (batch, 1)
    assert jnp.allclose(out, ref, atol=1e-4, rtol=1e-4), "mismatch vs reference"
    print("KERNEL_OK")
</pallas_src>

<mosaic_0001>
module attributes {stable_mosaic.version = 11 : i64} {
  func.func @rbfs2_kernel(%arg0: i32, %arg1: memref<56x32xf32, #tpu.memory_space<vmem>>, %arg2: memref<2x32xf32, #tpu.memory_space<vmem>>, %arg3: memref<32x128xf32, #tpu.memory_space<vmem>>, %arg4: memref<128x128xf32, #tpu.memory_space<vmem>>, %arg5: memref<128x128xf32, #tpu.memory_space<vmem>>, %arg6: memref<128x128xf32, #tpu.memory_space<vmem>>, %arg7: memref<128x2xf32, #tpu.memory_space<vmem>>, %arg8: memref<9x128xf32, #tpu.memory_space<vmem>>, %arg9: memref<56x2xf32, #tpu.memory_space<vmem>>) attributes {dimension_semantics = [#tpu.dimension_semantics<parallel>], iteration_bounds = array<i64: 2>, scalar_prefetch = 0 : i64, scratch_operands = 0 : i64, tpu.core_type = #tpu.core_type<tc>, window_params = [{transform_indices = @transform_0, window_bounds = array<i64: 56, 32>}, {pipeline_mode = #tpu.pipeline_mode<synchronous>, transform_indices = @transform_1, window_bounds = array<i64: 2, 32>}, {pipeline_mode = #tpu.pipeline_mode<synchronous>, transform_indices = @transform_2, window_bounds = array<i64: 32, 128>}, {pipeline_mode = #tpu.pipeline_mode<synchronous>, transform_indices = @transform_3, window_bounds = array<i64: 128, 128>}, {pipeline_mode = #tpu.pipeline_mode<synchronous>, transform_indices = @transform_4, window_bounds = array<i64: 128, 128>}, {pipeline_mode = #tpu.pipeline_mode<synchronous>, transform_indices = @transform_5, window_bounds = array<i64: 128, 128>}, {pipeline_mode = #tpu.pipeline_mode<synchronous>, transform_indices = @transform_6, window_bounds = array<i64: 128, 2>}, {pipeline_mode = #tpu.pipeline_mode<synchronous>, transform_indices = @transform_7, window_bounds = array<i64: 9, 128>}, {transform_indices = @transform_8, window_bounds = array<i64: 56, 2>}]} {
    %c0 = arith.constant 0 : index
    %c0_0 = arith.constant 0 : index
    %0 = vector.load %arg2[%c0, %c0_0] : memref<2x32xf32, #tpu.memory_space<vmem>>, vector<1x32xf32>
    %c1 = arith.constant 1 : index
    %c0_1 = arith.constant 0 : index
    %1 = vector.load %arg2[%c1, %c0_1] : memref<2x32xf32, #tpu.memory_space<vmem>>, vector<1x32xf32>
    %c0_2 = arith.constant 0 : index
    %c0_3 = arith.constant 0 : index
    %2 = vector.load %arg1[%c0_2, %c0_3] : memref<56x32xf32, #tpu.memory_space<vmem>>, vector<56x32xf32>
    %3 = vector.broadcast %0 : vector<1x32xf32> to vector<56x32xf32>
    %4 = arith.subf %2, %3 : vector<56x32xf32>
    %5 = arith.mulf %4, %4 : vector<56x32xf32>
    %6 = vector.broadcast %1 : vector<1x32xf32> to vector<56x32xf32>
    %7 = arith.mulf %5, %6 : vector<56x32xf32>
    %8 = math.exp %7 : vector<56x32xf32>
    %c0_4 = arith.constant 0 : index
    %c0_5 = arith.constant 0 : index
    %9 = vector.load %arg3[%c0_4, %c0_5] : memref<32x128xf32, #tpu.memory_space<vmem>>, vector<32x128xf32>
    %cst = arith.constant dense<0.000000e+00> : vector<56x128xf32>
    %10 = tpu.matmul %8, %9, %cst {dimension_numbers = #tpu.dot_dimension_numbers<[1], [0], [0], [1], [0, 0, 1, 1], [], []>, precision = #tpu.contract_precision<fp32>} : vector<56x32xf32>, vector<32x128xf32>, vector<56x128xf32> -> vector<56x128xf32>
    %c0_6 = arith.constant 0 : index
    %c0_7 = arith.constant 0 : index
    %11 = vector.load %arg8[%c0_6, %c0_7] : memref<9x128xf32, #tpu.memory_space<vmem>>, vector<1x128xf32>
    %c1_8 = arith.constant 1 : index
    %c0_9 = arith.constant 0 : index
    %12 = vector.load %arg8[%c1_8, %c0_9] : memref<9x128xf32, #tpu.memory_space<vmem>>, vector<1x128xf32>
    %13 = vector.broadcast %11 : vector<1x128xf32> to vector<56x128xf32>
    %14 = arith.addf %10, %13 : vector<56x128xf32>
    %15 = arith.mulf %14, %14 : vector<56x128xf32>
    %16 = vector.broadcast %12 : vector<1x128xf32> to vector<56x128xf32>
    %17 = arith.mulf %15, %16 : vector<56x128xf32>
    %18 = math.exp %17 : vector<56x128xf32>
    %c0_10 = arith.constant 0 : index
    %c0_11 = arith.constant 0 : index
    %19 = vector.load %arg4[%c0_10, %c0_11] : memref<128x128xf32, #tpu.memory_space<vmem>>, vector<128x128xf32>
    %cst_12 = arith.constant dense<0.000000e+00> : vector<56x128xf32>
    %20 = tpu.matmul %18, %19, %cst_12 {dimension_numbers = #tpu.dot_dimension_numbers<[1], [0], [0], [1], [0, 0, 1, 1], [], []>, precision = #tpu.contract_precision<fp32>} : vector<56x128xf32>, vector<128x128xf32>, vector<56x128xf32> -> vector<56x128xf32>
    %c2 = arith.constant 2 : index
    %c0_13 = arith.constant 0 : index
    %21 = vector.load %arg8[%c2, %c0_13] : memref<9x128xf32, #tpu.memory_space<vmem>>, vector<1x128xf32>
    %c3 = arith.constant 3 : index
    %c0_14 = arith.constant 0 : index
    %22 = vector.load %arg8[%c3, %c0_14] : memref<9x128xf32, #tpu.memory_space<vmem>>, vector<1x128xf32>
    %23 = vector.broadcast %21 : vector<1x128xf32> to vector<56x128xf32>
    %24 = arith.addf %20, %23 : vector<56x128xf32>
    %25 = arith.mulf %24, %24 : vector<56x128xf32>
    %26 = vector.broadcast %22 : vector<1x128xf32> to vector<56x128xf32>
    %27 = arith.mulf %25, %26 : vector<56x128xf32>
    %28 = math.exp %27 : vector<56x128xf32>
    %c0_15 = arith.constant 0 : index
    %c0_16 = arith.constant 0 : index
    %29 = vector.load %arg5[%c0_15, %c0_16] : memref<128x128xf32, #tpu.memory_space<vmem>>, vector<128x128xf32>
    %cst_17 = arith.constant dense<0.000000e+00> : vector<56x128xf32>
    %30 = tpu.matmul %28, %29, %cst_17 {dimension_numbers = #tpu.dot_dimension_numbers<[1], [0], [0], [1], [0, 0, 1, 1], [], []>, precision = #tpu.contract_precision<fp32>} : vector<56x128xf32>, vector<128x128xf32>, vector<56x128xf32> -> vector<56x128xf32>
    %c4 = arith.constant 4 : index
    %c0_18 = arith.constant 0 : index
    %31 = vector.load %arg8[%c4, %c0_18] : memref<9x128xf32, #tpu.memory_space<vmem>>, vector<1x128xf32>
    %c5 = arith.constant 5 : index
    %c0_19 = arith.constant 0 : index
    %32 = vector.load %arg8[%c5, %c0_19] : memref<9x128xf32, #tpu.memory_space<vmem>>, vector<1x128xf32>
    %33 = vector.broadcast %31 : vector<1x128xf32> to vector<56x128xf32>
    %34 = arith.addf %30, %33 : vector<56x128xf32>
    %35 = arith.mulf %34, %34 : vector<56x128xf32>
    %36 = vector.broadcast %32 : vector<1x128xf32> to vector<56x128xf32>
    %37 = arith.mulf %35, %36 : vector<56x128xf32>
    %38 = math.exp %37 : vector<56x128xf32>
    %c0_20 = arith.constant 0 : index
    %c0_21 = arith.constant 0 : index
    %39 = vector.load %arg6[%c0_20, %c0_21] : memref<128x128xf32, #tpu.memory_space<vmem>>, vector<128x128xf32>
    %cst_22 = arith.constant dense<0.000000e+00> : vector<56x128xf32>
    %40 = tpu.matmul %38, %39, %cst_22 {dimension_numbers = #tpu.dot_dimension_numbers<[1], [0], [0], [1], [0, 0, 1, 1], [], []>, precision = #tpu.contract_precision<fp32>} : vector<56x128xf32>, vector<128x128xf32>, vector<56x128xf32> -> vector<56x128xf32>
    %c6 = arith.constant 6 : index
    %c0_23 = arith.constant 0 : index
    %41 = vector.load %arg8[%c6, %c0_23] : memref<9x128xf32, #tpu.memory_space<vmem>>, vector<1x128xf32>
    %c7 = arith.constant 7 : index
    %c0_24 = arith.constant 0 : index
    %42 = vector.load %arg8[%c7, %c0_24] : memref<9x128xf32, #tpu.memory_space<vmem>>, vector<1x128xf32>
    %43 = vector.broadcast %41 : vector<1x128xf32> to vector<56x128xf32>
    %44 = arith.addf %40, %43 : vector<56x128xf32>
    %45 = arith.mulf %44, %44 : vector<56x128xf32>
    %46 = vector.broadcast %42 : vector<1x128xf32> to vector<56x128xf32>
    %47 = arith.mulf %45, %46 : vector<56x128xf32>
    %48 = math.exp %47 : vector<56x128xf32>
    %c0_25 = arith.constant 0 : index
    %c0_26 = arith.constant 0 : index
    %49 = vector.load %arg7[%c0_25, %c0_26] : memref<128x2xf32, #tpu.memory_space<vmem>>, vector<128x2xf32>
    %cst_27 = arith.constant dense<0.000000e+00> : vector<56x2xf32>
    %50 = tpu.matmul %48, %49, %cst_27 {dimension_numbers = #tpu.dot_dimension_numbers<[1], [0], [0], [1], [0, 0, 1, 1], [], []>, precision = #tpu.contract_precision<fp32>} : vector<56x128xf32>, vector<128x2xf32>, vector<56x2xf32> -> vector<56x2xf32>
    %c8 = arith.constant 8 : index
    %c0_28 = arith.constant 0 : index
    %51 = vector.load %arg8[%c8, %c0_28] : memref<9x128xf32, #tpu.memory_space<vmem>>, vector<1x1xf32>
    %52 = vector.broadcast %51 : vector<1x1xf32> to vector<56x2xf32>
    %53 = arith.addf %50, %52 : vector<56x2xf32>
    %c0_29 = arith.constant 0 : index
    %c0_30 = arith.constant 0 : index
    %54 = vector.load %arg9[%c0_29, %c0_30] : memref<56x2xf32, #tpu.memory_space<vmem>>, vector<56x2xf32>
    tpu.vector_store %arg9[%c0_29, %c0_30], %53 {strides = array<i32>} : memref<56x2xf32, #tpu.memory_space<vmem>>, vector<56x2xf32>,
    return
  }
  func.func @transform_0(%arg0: i32) -> (i32, i32) {
    %c0_i32 = arith.constant 0 : i32
    %c0_i32_0 = arith.constant 0 : i32
    return %arg0, %c0_i32 : i32, i32
  }
  func.func @transform_1(%arg0: i32) -> (i32, i32) {
    %c0_i32 = arith.constant 0 : i32
    %c0_i32_0 = arith.constant 0 : i32
    %c0_i32_1 = arith.constant 0 : i32
    return %c0_i32, %c0_i32_0 : i32, i32
  }
  func.func @transform_2(%arg0: i32) -> (i32, i32) {
    %c0_i32 = arith.constant 0 : i32
    %c0_i32_0 = arith.constant 0 : i32
    %c0_i32_1 = arith.constant 0 : i32
    return %c0_i32, %c0_i32_0 : i32, i32
  }
  func.func @transform_3(%arg0: i32) -> (i32, i32) {
    %c0_i32 = arith.constant 0 : i32
    %c0_i32_0 = arith.constant 0 : i32
    %c0_i32_1 = arith.constant 0 : i32
    return %c0_i32, %c0_i32_0 : i32, i32
  }
  func.func @transform_4(%arg0: i32) -> (i32, i32) {
    %c0_i32 = arith.constant 0 : i32
    %c0_i32_0 = arith.constant 0 : i32
    %c0_i32_1 = arith.constant 0 : i32
    return %c0_i32, %c0_i32_0 : i32, i32
  }
  func.func @transform_5(%arg0: i32) -> (i32, i32) {
    %c0_i32 = arith.constant 0 : i32
    %c0_i32_0 = arith.constant 0 : i32
    %c0_i32_1 = arith.constant 0 : i32
    return %c0_i32, %c0_i32_0 : i32, i32
  }
  func.func @transform_6(%arg0: i32) -> (i32, i32) {
    %c0_i32 = arith.constant 0 : i32
    %c0_i32_0 = arith.constant 0 : i32
    %c0_i32_1 = arith.constant 0 : i32
    return %c0_i32, %c0_i32_0 : i32, i32
  }
  func.func @transform_7(%arg0: i32) -> (i32, i32) {
    %c0_i32 = arith.constant 0 : i32
    %c0_i32_0 = arith.constant 0 : i32
    %c0_i32_1 = arith.constant 0 : i32
    return %c0_i32, %c0_i32_0 : i32, i32
  }
  func.func @transform_8(%arg0: i32) -> (i32, i32) {
    %c0_i32 = arith.constant 0 : i32
    %c0_i32_0 = arith.constant 0 : i32
    return %arg0, %c0_i32 : i32, i32
  }
}

</mosaic_0001>

<llo_original>
// kernel: rbfs2_forward.1
$region0: #{rbfs2_forward.1}
  #allocation0 [shape = 'u32[]', space=smem, size = 0x4, offset = 0x4, fixed_abs, tag = 'smem constant byte address 0x4 - core index']
  #allocation1 [shape = 'u32[144,128]{1,0:T(1,128)}', space=vmem, size = 0x12000, scoped, tag = 'internal scratch']
  %s0 = inlined_call_operand.vmem [shape: f32[112,32], index: 0, kind: input, shape index: {}]
  %s1 = inlined_call_operand.vmem [shape: f32[2,32], index: 1, kind: input, shape index: {}]
  %s2 = inlined_call_operand.vmem [shape: f32[32,128], index: 2, kind: input, shape index: {}]
  %s3 = inlined_call_operand.vmem [shape: f32[128,128], index: 3, kind: input, shape index: {}]
  %s4 = inlined_call_operand.vmem [shape: f32[128,128], index: 4, kind: input, shape index: {}]
  %s5 = inlined_call_operand.vmem [shape: f32[128,128], index: 5, kind: input, shape index: {}]
  %s6 = inlined_call_operand.vmem [shape: f32[128,2], index: 6, kind: input, shape index: {}]
  %s7 = inlined_call_operand.vmem [shape: f32[9,128], index: 7, kind: input, shape index: {}]
  %s8 = inlined_call_operand.vmem [shape: f32[112,2], index: 8, kind: output, shape index: {}]
  %s9 = sld [smem:[#allocation0]]
  $region65: #{rbfs2_forward.1} parent=0
    _
  %s11 = ssub.s32 1, %s9
  %s12 = scalar_select 0, %s11, %s9
  loop: start=0, step=1, limit=4
  $region2: #{rbfs2_forward.1} parent=0 // loop_pre_header
    _
  $region3: #{rbfs2_forward.1} parent=0 // loop_header
    %s14 = sphi 0, %s18
    %p15 = scmp.ge.s32.totalorder %s14, 4
    %s24 = sphi 0, %s26
    %s27 = sphi 0, %s24
    %s28 = sphi 0, %s27
    %s44 = sphi 0, %s28
    %s48 = sphi 0, %s48
    %s50 = sphi 0, %s48
    %s51 = sphi 0, %s50
    %s65 = sphi 0, %s51
    %s69 = sphi 0, %s69
    %s71 = sphi 0, %s69
    %s72 = sphi 0, %s71
    %s86 = sphi 0, %s72
    %s90 = sphi 0, %s90
    %s92 = sphi 0, %s90
    %s93 = sphi 0, %s92
    %s107 = sphi 0, %s93
    %s111 = sphi 0, %s111
    %s113 = sphi 0, %s111
    %s114 = sphi 0, %s113
    %s128 = sphi 0, %s114
    %s132 = sphi 0, %s132
    %s134 = sphi 0, %s132
    %s135 = sphi 0, %s134
    %s149 = sphi 0, %s135
    %s153 = sphi 0, %s153
    %s155 = sphi 0, %s153
    %s156 = sphi 0, %s155
    %s170 = sphi 0, %s156
    %s174 = sphi 0, %s174
    %s176 = sphi 0, %s174
    %s177 = sphi 0, %s176
    %s191 = sphi 0, %s177
    %s197 = sphi 0, %s199
    %s200 = sphi 0, %s197
    %s201 = sphi 0, %s200
    %s217 = sphi 0, %s201
  $region4: #{rbfs2_forward.1} parent=0 // loop_header_branch
    %17 = sbr.rel (%p15) target = $region8
  $region5: #{rbfs2_forward.1} parent=0 // loop_body
    %s19 = ssub.s32 %s14, 1
    %s20 = ssub.s32 %s14, 2
    %s21 = sadd.s32 %s14, 1
    %s22 = ssub.s32 %s14, %s21
    %p23 = scmp.eq.s32.totalorder %s22, 0
    %s25 = sadd.s32 %s24, 1
    %s26 = scalar_select %p23, %s24, %s25
    %p29 = pneg %p23
    %p30 = scmp.eq.s32.totalorder %s14, 1
    %p31 = por %p29, %p30
    %p32 = scmp.ne.s32.totalorder %s24, %s27
    %p33 = scmp.eq.s32.totalorder %s14, 0
    %p34 = por %p32, %p33
    %p35 = scmp.ne.s32.totalorder %s24, %s27
    %p36 = scmp.eq.s32.totalorder %s19, 1
    %p37 = por %p35, %p36
    %p38 = scmp.ne.s32.totalorder %s27, %s28
    %p39 = scmp.eq.s32.totalorder %s19, 0
    %p40 = por %p38, %p39
    %p41 = scmp.ne.s32.totalorder %s27, %s28
    %p42 = scmp.eq.s32.totalorder %s20, 1
    %p43 = por %p41, %p42
    %p45 = scmp.ne.s32.totalorder %s28, %s44
    %p46 = scmp.eq.s32.totalorder %s20, 0
    %p47 = por %p45, %p46
    %s49 = sadd.s32 %s48, 1
    %p52 = scmp.eq.s32.totalorder %s14, 1
    %p53 = scmp.ne.s32.totalorder %s48, %s50
    %p54 = scmp.eq.s32.totalorder %s14, 0
    %p55 = por %p53, %p54
    %p56 = scmp.ne.s32.totalorder %s48, %s50
    %p57 = scmp.eq.s32.totalorder %s19, 1
    %p58 = por %p56, %p57
    %p59 = scmp.ne.s32.totalorder %s50, %s51
    %p60 = scmp.eq.s32.totalorder %s19, 0
    %p61 = por %p59, %p60
    %p62 = scmp.ne.s32.totalorder %s50, %s51
    %p63 = scmp.eq.s32.totalorder %s20, 1
    %p64 = por %p62, %p63
    %p66 = scmp.ne.s32.totalorder %s51, %s65
    %p67 = scmp.eq.s32.totalorder %s20, 0
    %p68 = por %p66, %p67
    %s70 = sadd.s32 %s69, 1
    %p73 = scmp.eq.s32.totalorder %s14, 1
    %p74 = scmp.ne.s32.totalorder %s69, %s71
    %p75 = scmp.eq.s32.totalorder %s14, 0
    %p76 = por %p74, %p75
    %p77 = scmp.ne.s32.totalorder %s69, %s71
    %p78 = scmp.eq.s32.totalorder %s19, 1
    %p79 = por %p77, %p78
    %p80 = scmp.ne.s32.totalorder %s71, %s72
    %p81 = scmp.eq.s32.totalorder %s19, 0
    %p82 = por %p80, %p81
    %p83 = scmp.ne.s32.totalorder %s71, %s72
    %p84 = scmp.eq.s32.totalorder %s20, 1
    %p85 = por %p83, %p84
    %p87 = scmp.ne.s32.totalorder %s72, %s86
    %p88 = scmp.eq.s32.totalorder %s20, 0
    %p89 = por %p87, %p88
    %s91 = sadd.s32 %s90, 1
    %p94 = scmp.eq.s32.totalorder %s14, 1
    %p95 = scmp.ne.s32.totalorder %s90, %s92
    %p96 = scmp.eq.s32.totalorder %s14, 0
    %p97 = por %p95, %p96
    %p98 = scmp.ne.s32.totalorder %s90, %s92
    %p99 = scmp.eq.s32.totalorder %s19, 1
    %p100 = por %p98, %p99
    %p101 = scmp.ne.s32.totalorder %s92, %s93
    %p102 = scmp.eq.s32.totalorder %s19, 0
    %p103 = por %p101, %p102
    %p104 = scmp.ne.s32.totalorder %s92, %s93
    %p105 = scmp.eq.s32.totalorder %s20, 1
    %p106 = por %p104, %p105
    %p108 = scmp.ne.s32.totalorder %s93, %s107
    %p109 = scmp.eq.s32.totalorder %s20, 0
    %p110 = por %p108, %p109
    %s112 = sadd.s32 %s111, 1
    %p115 = scmp.eq.s32.totalorder %s14, 1
    %p116 = scmp.ne.s32.totalorder %s111, %s113
    %p117 = scmp.eq.s32.totalorder %s14, 0
    %p118 = por %p116, %p117
    %p119 = scmp.ne.s32.totalorder %s111, %s113
    %p120 = scmp.eq.s32.totalorder %s19, 1
    %p121 = por %p119, %p120
    %p122 = scmp.ne.s32.totalorder %s113, %s114
    %p123 = scmp.eq.s32.totalorder %s19, 0
    %p124 = por %p122, %p123
    %p125 = scmp.ne.s32.totalorder %s113, %s114
    %p126 = scmp.eq.s32.totalorder %s20, 1
    %p127 = por %p125, %p126
    %p129 = scmp.ne.s32.totalorder %s114, %s128
    %p130 = scmp.eq.s32.totalorder %s20, 0
    %p131 = por %p129, %p130
    %s133 = sadd.s32 %s132, 1
    %p136 = scmp.eq.s32.totalorder %s14, 1
    %p137 = scmp.ne.s32.totalorder %s132, %s134
    %p138 = scmp.eq.s32.totalorder %s14, 0
    %p139 = por %p137, %p138
    %p140 = scmp.ne.s32.totalorder %s132, %s134
    %p141 = scmp.eq.s32.totalorder %s19, 1
    %p142 = por %p140, %p141
    %p143 = scmp.ne.s32.totalorder %s134, %s135
    %p144 = scmp.eq.s32.totalorder %s19, 0
    %p145 = por %p143, %p144
    %p146 = scmp.ne.s32.totalorder %s134, %s135
    %p147 = scmp.eq.s32.totalorder %s20, 1
    %p148 = por %p146, %p147
    %p150 = scmp.ne.s32.totalorder %s135, %s149
    %p151 = scmp.eq.s32.totalorder %s20, 0
    %p152 = por %p150, %p151
    %s154 = sadd.s32 %s153, 1
    %p157 = scmp.eq.s32.totalorder %s14, 1
    %p158 = scmp.ne.s32.totalorder %s153, %s155
    %p159 = scmp.eq.s32.totalorder %s14, 0
    %p160 = por %p158, %p159
    %p161 = scmp.ne.s32.totalorder %s153, %s155
    %p162 = scmp.eq.s32.totalorder %s19, 1
    %p163 = por %p161, %p162
    %p164 = scmp.ne.s32.totalorder %s155, %s156
    %p165 = scmp.eq.s32.totalorder %s19, 0
    %p166 = por %p164, %p165
    %p167 = scmp.ne.s32.totalorder %s155, %s156
    %p168 = scmp.eq.s32.totalorder %s20, 1
    %p169 = por %p167, %p168
    %p171 = scmp.ne.s32.totalorder %s156, %s170
    %p172 = scmp.eq.s32.totalorder %s20, 0
    %p173 = por %p171, %p172
    %s175 = sadd.s32 %s174, 1
    %p178 = scmp.eq.s32.totalorder %s14, 1
    %p179 = scmp.ne.s32.totalorder %s174, %s176
    %p180 = scmp.eq.s32.totalorder %s14, 0
    %p181 = por %p179, %p180
    %p182 = scmp.ne.s32.totalorder %s174, %s176
    %p183 = scmp.eq.s32.totalorder %s19, 1
    %p184 = por %p182, %p183
    %p185 = scmp.ne.s32.totalorder %s176, %s177
    %p186 = scmp.eq.s32.totalorder %s19, 0
    %p187 = por %p185, %p186
    %p188 = scmp.ne.s32.totalorder %s176, %s177
    %p189 = scmp.eq.s32.totalorder %s20, 1
    %p190 = por %p188, %p189
    %p192 = scmp.ne.s32.totalorder %s177, %s191
    %p193 = scmp.eq.s32.totalorder %s20, 0
    %p194 = por %p192, %p193
    %s195 = ssub.s32 %s14, %s21
    %p196 = scmp.eq.s32.totalorder %s195, 0
    %s198 = sadd.s32 %s197, 1
    %s199 = scalar_select %p196, %s197, %s198
    %p202 = pneg %p196
    %p203 = scmp.eq.s32.totalorder %s14, 1
    %p204 = por %p202, %p203
    %p205 = scmp.ne.s32.totalorder %s197, %s200
    %p206 = scmp.eq.s32.totalorder %s14, 0
    %p207 = por %p205, %p206
    %p208 = scmp.ne.s32.totalorder %s197, %s200
    %p209 = scmp.eq.s32.totalorder %s19, 1
    %p210 = por %p208, %p209
    %p211 = scmp.ne.s32.totalorder %s200, %s201
    %p212 = scmp.eq.s32.totalorder %s19, 0
    %p213 = por %p211, %p212
    %p214 = scmp.ne.s32.totalorder %s200, %s201
    %p215 = scmp.eq.s32.totalorder %s20, 1
    %p216 = por %p214, %p215
    %p218 = scmp.ne.s32.totalorder %s201, %s217
    %p219 = scmp.eq.s32.totalorder %s20, 0
    %p220 = por %p218, %p219
    %p221 = scmp.le.s32.totalorder 1, %s14
    %p222 = scmp.lt.s32.totalorder %s14, 3
    %p223 = pnand %p221, %p222
    %p224 = pneg %p223
    // Predicated region
    $region9: #{rbfs2_forward.1} parent=5 // pred_check
      _
    $region10: #{rbfs2_forward.1} parent=5 // pred_check_branch
      %226 = sbr.rel (%p223) target = $region12
    $region11: #{rbfs2_forward.1} parent=5 // pred_region
      %s227 = ssub.s32 %s14, 1
      // Predicated region
      $region13: #{rbfs2_forward.1} parent=11 // pred_check
        %p228 = pneg %p61
      $region14: #{rbfs2_forward.1} parent=11 // pred_check_branch
        %230 = sbr.rel (%p228) target = $region16
      $region15: #{rbfs2_forward.1} parent=11 // pred_region
        _
      $region16: #{rbfs2_forward.1} parent=11 // pred_fallthru
        _
      // Predicated region
      $region17: #{rbfs2_forward.1} parent=11 // pred_check
        %p231 = pneg %p82
      $region18: #{rbfs2_forward.1} parent=11 // pred_check_branch
        %233 = sbr.rel (%p231) target = $region20
      $region19: #{rbfs2_forward.1} parent=11 // pred_region
        _
      $region20: #{rbfs2_forward.1} parent=11 // pred_fallthru
        _
      // Predicated region
      $region21: #{rbfs2_forward.1} parent=11 // pred_check
        %p234 = pneg %p103
      $region22: #{rbfs2_forward.1} parent=11 // pred_check_branch
        %236 = sbr.rel (%p234) target = $region24
      $region23: #{rbfs2_forward.1} parent=11 // pred_region
        _
      $region24: #{rbfs2_forward.1} parent=11 // pred_fallthru
        _
      // Predicated region
      $region25: #{rbfs2_forward.1} parent=11 // pred_check
        %p237 = pneg %p124
      $region26: #{rbfs2_forward.1} parent=11 // pred_check_branch
        %239 = sbr.rel (%p237) target = $region28
      $region27: #{rbfs2_forward.1} parent=11 // pred_region
        _
      $region28: #{rbfs2_forward.1} parent=11 // pred_fallthru
        _
      // Predicated region
      $region29: #{rbfs2_forward.1} parent=11 // pred_check
        %p240 = pneg %p145
      $region30: #{rbfs2_forward.1} parent=11 // pred_check_branch
        %242 = sbr.rel (%p240) target = $region32
      $region31: #{rbfs2_forward.1} parent=11 // pred_region
        _
      $region32: #{rbfs2_forward.1} parent=11 // pred_fallthru
        _
      // Predicated region
      $region33: #{rbfs2_forward.1} parent=11 // pred_check
        %p243 = pneg %p166
      $region34: #{rbfs2_forward.1} parent=11 // pred_check_branch
        %245 = sbr.rel (%p243) target = $region36
      $region35: #{rbfs2_forward.1} parent=11 // pred_region
        _
      $region36: #{rbfs2_forward.1} parent=11 // pred_fallthru
        _
      // Predicated region
      $region37: #{rbfs2_forward.1} parent=11 // pred_check
        %p246 = pneg %p187
      $region38: #{rbfs2_forward.1} parent=11 // pred_check_branch
        %248 = sbr.rel (%p246) target = $region40
      $region39: #{rbfs2_forward.1} parent=11 // pred_region
        _
      $region40: #{rbfs2_forward.1} parent=11 // pred_fallthru
        _
    $region12: #{rbfs2_forward.1} parent=5 // pred_fallthru
      _
    %p249 = scmp.lt.s32.totalorder %s14, 2
    // Predicated region
    $region41: #{rbfs2_forward.1} parent=5 // pred_check
      %p250 = pneg %p249
    $region42: #{rbfs2_forward.1} parent=5 // pred_check_branch
      %252 = sbr.rel (%p250) target = $region44
    $region43: #{rbfs2_forward.1} parent=5 // pred_region
      // Predicated region
      $region45: #{rbfs2_forward.1} parent=43 // pred_check
        %p253 = pneg %p34
      $region46: #{rbfs2_forward.1} parent=43 // pred_check_branch
        %255 = sbr.rel (%p253) target = $region48
      $region47: #{rbfs2_forward.1} parent=43 // pred_region
        %s256 = smul.u32 7, %s14
        %p257 = scmp.lt.s32.totalorder %s256, 13
        %s258 = scalar_select %p257, %s256, 13
        %s259 = smul.addr %s258, 8
        %s260 = scalar_lea.vmem %s0, %s259
        %s261 = smul.u32 7, %s14
      $region48: #{rbfs2_forward.1} parent=43 // pred_fallthru
        _
    $region44: #{rbfs2_forward.1} parent=5 // pred_fallthru
      _
    %p262 = scmp.le.s32.totalorder 1, %s14
    %p263 = scmp.lt.s32.totalorder %s14, 3
    %p264 = pnand %p262, %p263
    %p265 = pneg %p264
    // Predicated region
    $region49: #{rbfs2_forward.1} parent=5 // pred_check
      _
    $region50: #{rbfs2_forward.1} parent=5 // pred_check_branch
      %267 = sbr.rel (%p264) target = $region52
    $region51: #{rbfs2_forward.1} parent=5 // pred_region
      %s268 = ssub.s32 %s14, 1
      %s269 = smul.u32 7, %s19
      %p270 = scmp.lt.s32.totalorder %s269, 13
      %s271 = scalar_select %p270, %s269, 13
      %s272 = smul.addr %s271, 8
      %s273 = scalar_lea.vmem %s0, %s272
      %p274 = pneg %p40
      %p275 = pneg %p37
      %p276 = pneg %p61
      %p277 = pneg %p58
      %p278 = pneg %p82
      %p279 = pneg %p79
      %p280 = pneg %p103
      %p281 = pneg %p100
      %p282 = pneg %p124
      %p283 = pneg %p121
      %p284 = pneg %p145
      %p285 = pneg %p142
      %p286 = pneg %p166
      %p287 = pneg %p163
      %p288 = pneg %p187
      %p289 = pneg %p184
      %p290 = pneg %p213
      %p291 = pneg %p210
      %s292 = smul.u32 7, %s19
      %p293 = scmp.lt.s32.totalorder %s292, 13
      %s294 = scalar_select %p293, %s292, 13
      %s295 = smul.addr %s294, 8
      %s296 = scalar_lea.vmem %s8, %s295
      %s297 = smul.u32 7, %s19
      %p298 = scmp.lt.s32.totalorder %s297, 13
      %s299 = scalar_select %p298, %s297, 13
      %s300 = smul.addr %s299, 8
      %s301 = scalar_lea.vmem %s0, %s300
      %s302 = smul.u32 7, %s19
      %s303 = smul.u32 7, %s19
      %p304 = scmp.lt.s32.totalorder %s303, 13
      %s305 = scalar_select %p304, %s303, 13
      %s306 = smul.addr %s305, 8
      %s307 = scalar_lea.vmem %s8, %s306
      %s308 = smul.u32 7, %s19
      %v309 = vld [vmem:[%s1] sm:$0x1]
      %v310 = vld [vmem:[%s1 + $0x1] sm:$0x1]
      %v311 = vld [vmem:[%s301] sm:$0xff]
      %v312 = vld [vmem:[%s301 + $0x8] sm:$0xff]
      %v313 = vld [vmem:[%s301 + $0x10] sm:$0xff]
      %v314 = vld [vmem:[%s301 + $0x18] sm:$0xff]
      %v315 = vld [vmem:[%s301 + $0x20] sm:$0xff]
      %v316 = vld [vmem:[%s301 + $0x28] sm:$0xff]
      %v317 = vld [vmem:[%s301 + $0x30] sm:$0xff]
      %v318 = vlaneseq
      %v319 = vshrl.u32 %v318, 7
      %v320 = vsub.s32 0, %v319
      %v321 = vrot.slane %v309, %v320
      %v322 = vsub.f32 %v311, %v321
      %v323 = vsub.f32 %v312, %v321
      %v324 = vsub.f32 %v313, %v321
      %v325 = vsub.f32 %v314, %v321
      %v326 = vsub.f32 %v315, %v321
      %v327 = vsub.f32 %v316, %v321
      %v328 = vsub.f32 %v317, %v321
      %v329 = vmul.f32 %v322, %v322
      %v330 = vmul.f32 %v323, %v323
      %v331 = vmul.f32 %v324, %v324
      %v332 = vmul.f32 %v325, %v325
      %v333 = vmul.f32 %v326, %v326
      %v334 = vmul.f32 %v327, %v327
      %v335 = vmul.f32 %v328, %v328
      %v336 = vlaneseq
      %v337 = vshrl.u32 %v336, 7
      %v338 = vsub.s32 0, %v337
      %v339 = vrot.slane %v310, %v338
      %v340 = vmul.f32 %v329, %v339
      %v341 = vmul.f32 %v330, %v339
      %v342 = vmul.f32 %v331, %v339
      %v343 = vmul.f32 %v332, %v339
      %v344 = vmul.f32 %v333, %v339
      %v345 = vmul.f32 %v334, %v339
      %v346 = vmul.f32 %v335, %v339
      %v347 = vmul.f32 %v340, 1.442695
      %v348 = vpow.pop %v347
      %v349 = vmul.f32 %v341, 1.442695
      %v350 = vpow.pop %v349
      %v351 = vmul.f32 %v342, 1.442695
      %v352 = vpow.pop %v351
      %v353 = vmul.f32 %v343, 1.442695
      %v354 = vpow.pop %v353
      %v355 = vmul.f32 %v344, 1.442695
      %v356 = vpow.pop %v355
      %v357 = vmul.f32 %v345, 1.442695
      %v358 = vpow.pop %v357
      %v359 = vmul.f32 %v346, 1.442695
      %v360 = vpow.pop %v359
      %v361 = vld [vmem:[%s2] sm:$0xff]
      %v362 = vld [vmem:[%s2 + $0x8] sm:$0xff]
      %v363 = vld [vmem:[%s2 + $0x10] sm:$0xff]
      %v364 = vld [vmem:[%s2 + $0x18] sm:$0xff]
      %v365 = vld [vmem:[%s7] sm:$0x1]
      %v366 = vld [vmem:[%s7 + $0x1] sm:$0x1]
      %v367 = vlaneseq
      %v368 = vshrl.u32 %v367, 7
      %v369 = vsub.s32 0, %v368
      %v370 = vrot.slane %v365, %v369
      %vm371 = vcmask 261120
      %v373 = vsel %vm371, %v348, 0
      %v376 = vsel %vm371, %v350, 0
      %v379 = vsel %vm371, %v352, 0
      %v382 = vsel %vm371, %v354, 0
      %v385 = vsel %vm371, %v356, 0
      %v388 = vsel %vm371, %v358, 0
      %v391 = vsel %vm371, %v360, 0
      %393 = vmatprep.subr.mxu0 0.0
      %v394 = vand.u32 %v361, 4294901760
      %395 = vmatpush1.msra.mxu0 %v394
      %396 = vmatprep.subr.mxu0 0.0
      %v397 = vand.u32 %v362, 4294901760
      %398 = vmatpush1.msra.mxu0 %v397
      %399 = vmatprep.subr.mxu0 0.0
      %v400 = vand.u32 %v363, 4294901760
      %401 = vmatpush1.msra.mxu0 %v400
      %402 = vmatprep.subr.mxu0 0.0
      %v403 = vand.u32 %v364, 4294901760
      %404 = vmatpush1.msra.mxu0 %v403
      %405 = vmatprep.subr.mxu0 0.0
      %406 = vmatpush1.msra.mxu0 0.0
      %407 = vmatprep.subr.mxu0 0.0
      %408 = vmatpush1.msra.mxu0 0.0
      %409 = vmatprep.subr.mxu0 0.0
      %410 = vmatpush1.msra.mxu0 0.0
      %411 = vmatprep.subr.mxu0 0.0
      %412 = vmatpush1.msra.mxu0 0.0
      %413 = vmatprep.subr.mxu0 0.0
      %414 = vmatpush1.msra.mxu0 0.0
      %415 = vmatprep.subr.mxu0 0.0
      %416 = vmatpush1.msra.mxu0 0.0
      %417 = vmatprep.subr.mxu0 0.0
      %418 = vmatpush1.msra.mxu0 0.0
      %419 = vmatprep.subr.mxu0 0.0
      %420 = vmatpush1.msra.mxu0 0.0
      %421 = vmatprep.subr.mxu0 0.0
      %422 = vmatpush1.msra.mxu0 0.0
      %423 = vmatprep.subr.mxu0 0.0
      %424 = vmatpush1.msra.mxu0 0.0
      %425 = vmatprep.subr.mxu0 0.0
      %426 = vmatpush1.msra.mxu0 0.0
      %427 = vmatprep.subr.mxu0 0.0
      %428 = vmatpush1.msra.mxu0 0.0
      %429 = vmatprep.subr.mxu0 0.0
      %430 = vmatpush1.msra.mxu0 0.0
      %431 = vmatprep.subr.mxu0 0.0
      %432 = vmatpush1.msra.mxu0 0.0
      %433 = vmatprep.subr.mxu0 0.0
      %434 = vmatpush1.msra.mxu0 0.0
      %435 = vmatprep.subr.mxu0 0.0
      %436 = vmatpush1.msra.mxu0 0.0
      %437 = vmatprep.subr.mxu0 0.0
      %438 = vmatpush1.msra.mxu0 0.0
      %439 = vmatprep.subr.mxu0 0.0
      %440 = vmatpush1.msra.mxu0 0.0
      %441 = vmatprep.subr.mxu0 0.0
      %442 = vmatpush1.msra.mxu0 0.0
      %443 = vmatprep.subr.mxu0 0.0
      %444 = vmatpush1.msra.mxu0 0.0
      %445 = vmatprep.subr.mxu0 0.0
      %446 = vmatpush1.msra.mxu0 0.0
      %447 = vmatprep.subr.mxu0 0.0
      %448 = vmatpush1.msra.mxu0 0.0
      %449 = vmatprep.subr.mxu0 0.0
      %450 = vmatpush1.msra.mxu0 0.0
      %451 = vmatprep.subr.mxu0 0.0
      %452 = vmatpush1.msra.mxu0 0.0
      %453 = vmatprep.subr.mxu0 0.0
      %454 = vmatpush1.msra.mxu0 0.0
      %455 = vmatprep.subr.mxu0 0.0
      %456 = vmatpush1.msra.mxu0 0.0
      %457 = vmatprep.subr.mxu0 0.0
      %458 = vmatpush1.msra.mxu0 0.0
      %459 = vmatprep.subr.mxu0 0.0
      %460 = vmatpush1.msra.mxu0 0.0
      %461 = vmatprep.mubr.f32.mxu0 0.0
      %v462 = vand.u32 %v373, 4294901760
      %v463 = vsub.f32 %v373, %v462
      %v464 = vand.u32 %v463, 4294901760
      %v465 = vsub.f32 %v463, %v464
      %v466 = vand.u32 %v465, 4294901760
      %467 = vmatmul.mubr.f32.gmra.mrb[0].mxu0 %v466
      %v468 = vpop.f32.mrb[0].mxu0
      %v469 = vadd.f32 %v370, %v468
      %v470 = vpop.f32.mrb[0].mxu0
      %471 = vmatprep.mubr.f32.mxu0 0.0
      %v472 = vand.u32 %v376, 4294901760
      %v473 = vsub.f32 %v376, %v472
      %v474 = vand.u32 %v473, 4294901760
      %v475 = vsub.f32 %v473, %v474
      %v476 = vand.u32 %v475, 4294901760
      %477 = vmatmul.mubr.f32.gmra.mrb[0].mxu0 %v476
      %v478 = vpop.f32.mrb[0].mxu0
      %v479 = vadd.f32 %v370, %v478
      %v480 = vpop.f32.mrb[0].mxu0
      %481 = vmatprep.mubr.f32.mxu0 0.0
      %v482 = vand.u32 %v379, 4294901760
      %v483 = vsub.f32 %v379, %v482
      %v484 = vand.u32 %v483, 4294901760
      %v485 = vsub.f32 %v483, %v484
      %v486 = vand.u32 %v485, 4294901760
      %487 = vmatmul.mubr.f32.gmra.mrb[0].mxu0 %v486
      %v488 = vpop.f32.mrb[0].mxu0
      %v489 = vadd.f32 %v370, %v488
      %v490 = vpop.f32.mrb[0].mxu0
      %491 = vmatprep.mubr.f32.mxu0 0.0
      %v492 = vand.u32 %v382, 4294901760
      %v493 = vsub.f32 %v382, %v492
      %v494 = vand.u32 %v493, 4294901760
      %v495 = vsub.f32 %v493, %v494
      %v496 = vand.u32 %v495, 4294901760
      %497 = vmatmul.mubr.f32.gmra.mrb[0].mxu0 %v496
      %v498 = vpop.f32.mrb[0].mxu0
      %v499 = vadd.f32 %v370, %v498
      %v500 = vpop.f32.mrb[0].mxu0
      %501 = vmatprep.mubr.f32.mxu0 0.0
      %v502 = vand.u32 %v385, 4294901760
      %v503 = vsub.f32 %v385, %v502
      %v504 = vand.u32 %v503, 4294901760
      %v505 = vsub.f32 %v503, %v504
      %v506 = vand.u32 %v505, 4294901760
      %507 = vmatmul.mubr.f32.gmra.mrb[0].mxu0 %v506
      %v508 = vpop.f32.mrb[0].mxu0
      %v509 = vadd.f32 %v370, %v508
      %v510 = vpop.f32.mrb[0].mxu0
      %511 = vmatprep.mubr.f32.mxu0 0.0
      %v512 = vand.u32 %v388, 4294901760
      %v513 = vsub.f32 %v388, %v512
      %v514 = vand.u32 %v513, 4294901760
      %v515 = vsub.f32 %v513, %v514
      %v516 = vand.u32 %v515, 4294901760
      %517 = vmatmul.mubr.f32.gmra.mrb[0].mxu0 %v516
      %v518 = vpop.f32.mrb[0].mxu0
      %v519 = vadd.f32 %v370, %v518
      %v520 = vpop.f32.mrb[0].mxu0
      %521 = vmatprep.mubr.f32.mxu0 0.0
      %v522 = vand.u32 %v391, 4294901760
      %v523 = vsub.f32 %v391, %v522
      %v524 = vand.u32 %v523, 4294901760
      %v525 = vsub.f32 %v523, %v524
      %v526 = vand.u32 %v525, 4294901760
      %527 = vmatmul.mubr.f32.gmra.mrb[0].mxu0 %v526
      %v528 = vpop.f32.mrb[0].mxu0
      %v529 = vadd.f32 %v370, %v528
      %v530 = vpop.f32.mrb[0].mxu0
      %531 = vdwg.mxu0
      %532 = vmatprep.subr.mxu0 0.0
      %v533 = vand.u32 %v361, 4294901760
      %v534 = vsub.f32 %v361, %v533
      %v535 = vand.u32 %v534, 4294901760
      %v536 = vsub.f32 %v534, %v535
      %v537 = vand.u32 %v536, 4294901760
      %538 = vmatpush1.msra.mxu0 %v537
      %539 = vmatprep.subr.mxu0 0.0
      %v540 = vand.u32 %v362, 4294901760
      %v541 = vsub.f32 %v362, %v540
      %v542 = vand.u32 %v541, 4294901760
      %v543 = vsub.f32 %v541, %v542
      %v544 = vand.u32 %v543, 4294901760
      %545 = vmatpush1.msra.mxu0 %v544
      %546 = vmatprep.subr.mxu0 0.0
      %v547 = vand.u32 %v363, 4294901760
      %v548 = vsub.f32 %v363, %v547
      %v549 = vand.u32 %v548, 4294901760
      %v550 = vsub.f32 %v548, %v549
      %v551 = vand.u32 %v550, 4294901760
      %552 = vmatpush1.msra.mxu0 %v551
      %553 = vmatprep.subr.mxu0 0.0
      %v554 = vand.u32 %v364, 4294901760
      %v555 = vsub.f32 %v364, %v554
      %v556 = vand.u32 %v555, 4294901760
      %v557 = vsub.f32 %v555, %v556
      %v558 = vand.u32 %v557, 4294901760
      %559 = vmatpush1.msra.mxu0 %v558
      %560 = vmatprep.subr.mxu0 0.0
      %561 = vmatpush1.msra.mxu0 0.0
      %562 = vmatprep.subr.mxu0 0.0
      %563 = vmatpush1.msra.mxu0 0.0
      %564 = vmatprep.subr.mxu0 0.0
      %565 = vmatpush1.msra.mxu0 0.0
      %566 = vmatprep.subr.mxu0 0.0
      %567 = vmatpush1.msra.mxu0 0.0
      %568 = vmatprep.subr.mxu0 0.0
      %569 = vmatpush1.msra.mxu0 0.0
      %570 = vmatprep.subr.mxu0 0.0
      %571 = vmatpush1.msra.mxu0 0.0
      %572 = vmatprep.subr.mxu0 0.0
      %573 = vmatpush1.msra.mxu0 0.0
      %574 = vmatprep.subr.mxu0 0.0
      %575 = vmatpush1.msra.mxu0 0.0
      %576 = vmatprep.subr.mxu0 0.0
      %577 = vmatpush1.msra.mxu0 0.0
      %578 = vmatprep.subr.mxu0 0.0
      %579 = vmatpush1.msra.mxu0 0.0
      %580 = vmatprep.subr.mxu0 0.0
      %581 = vmatpush1.msra.mxu0 0.0
      %582 = vmatprep.subr.mxu0 0.0
      %583 = vmatpush1.msra.mxu0 0.0
      %584 = vmatprep.subr.mxu0 0.0
      %585 = vmatpush1.msra.mxu0 0.0
      %586 = vmatprep.subr.mxu0 0.0
      %587 = vmatpush1.msra.mxu0 0.0
      %588 = vmatprep.subr.mxu0 0.0
      %589 = vmatpush1.msra.mxu0 0.0
      %590 = vmatprep.subr.mxu0 0.0
      %591 = vmatpush1.msra.mxu0 0.0
      %592 = vmatprep.subr.mxu0 0.0
      %593 = vmatpush1.msra.mxu0 0.0
      %594 = vmatprep.subr.mxu0 0.0
      %595 = vmatpush1.msra.mxu0 0.0
      %596 = vmatprep.subr.mxu0 0.0
      %597 = vmatpush1.msra.mxu0 0.0
      %598 = vmatprep.subr.mxu0 0.0
      %599 = vmatpush1.msra.mxu0 0.0
      %600 = vmatprep.subr.mxu0 0.0
      %601 = vmatpush1.msra.mxu0 0.0
      %602 = vmatprep.subr.mxu0 0.0
      %603 = vmatpush1.msra.mxu0 0.0
      %604 = vmatprep.subr.mxu0 0.0
      %605 = vmatpush1.msra.mxu0 0.0
      %606 = vmatprep.subr.mxu0 0.0
      %607 = vmatpush1.msra.mxu0 0.0
      %608 = vmatprep.subr.mxu0 0.0
      %609 = vmatpush1.msra.mxu0 0.0
      %610 = vmatprep.subr.mxu0 0.0
      %611 = vmatpush1.msra.mxu0 0.0
      %612 = vmatprep.subr.mxu0 0.0
      %613 = vmatpush1.msra.mxu0 0.0
      %614 = vmatprep.subr.mxu0 0.0
      %615 = vmatpush1.msra.mxu0 0.0
      %616 = vmatprep.mubr.f32.mxu0 0.0
      %v617 = vand.u32 %v373, 4294901760
      %618 = vmatmul.mubr.f32.gmra.mrb[0].mxu0 %v617
      %v619 = vpop.f32.mrb[0].mxu0
      %v620 = vadd.f32 %v469, %v619
      %v621 = vpop.f32.mrb[0].mxu0
      %622 = vmatprep.mubr.f32.mxu0 0.0
      %v623 = vand.u32 %v376, 4294901760
      %624 = vmatmul.mubr.f32.gmra.mrb[0].mxu0 %v623
      %v625 = vpop.f32.mrb[0].mxu0
      %v626 = vadd.f32 %v479, %v625
      %v627 = vpop.f32.mrb[0].mxu0
      %628 = vmatprep.mubr.f32.mxu0 0.0
      %v629 = vand.u32 %v379, 4294901760
      %630 = vmatmul.mubr.f32.gmra.mrb[0].mxu0 %v629
      %v631 = vpop.f32.mrb[0].mxu0
      %v632 = vadd.f32 %v489, %v631
      %v633 = vpop.f32.mrb[0].mxu0
      %634 = vmatprep.mubr.f32.mxu0 0.0
      %v635 = vand.u32 %v382, 4294901760
      %636 = vmatmul.mubr.f32.gmra.mrb[0].mxu0 %v635
      %v637 = vpop.f32.mrb[0].mxu0
      %v638 = vadd.f32 %v499, %v637
      %v639 = vpop.f32.mrb[0].mxu0
      %640 = vmatprep.mubr.f32.mxu0 0.0
      %v641 = vand.u32 %v385, 4294901760
      %642 = vmatmul.mubr.f32.gmra.mrb[0].mxu0 %v641
      %v643 = vpop.f32.mrb[0].mxu0
      %v644 = vadd.f32 %v509, %v643
      %v645 = vpop.f32.mrb[0].mxu0
      %646 = vmatprep.mubr.f32.mxu0 0.0
      %v647 = vand.u32 %v388, 4294901760
      %648 = vmatmul.mubr.f32.gmra.mrb[0].mxu0 %v647
      %v649 = vpop.f32.mrb[0].mxu0
      %v650 = vadd.f32 %v519, %v649
      %v651 = vpop.f32.mrb[0].mxu0
      %652 = vmatprep.mubr.f32.mxu0 0.0
      %v653 = vand.u32 %v391, 4294901760
      %654 = vmatmul.mubr.f32.gmra.mrb[0].mxu0 %v653
      %v655 = vpop.f32.mrb[0].mxu0
      %v656 = vadd.f32 %v529, %v655
      %v657 = vpop.f32.mrb[0].mxu0
      %658 = vdwg.mxu0
      %659 = vmatprep.subr.mxu0 0.0
      %v660 = vand.u32 %v361, 4294901760
      %v661 = vsub.f32 %v361, %v660
      %662 = vmatpush1.msra.mxu0 %v661
      %663 = vmatprep.subr.mxu0 0.0
      %v664 = vand.u32 %v362, 4294901760
      %v665 = vsub.f32 %v362, %v664
      %666 = vmatpush1.msra.mxu0 %v665
      %667 = vmatprep.subr.mxu0 0.0
      %v668 = vand.u32 %v363, 4294901760
      %v669 = vsub.f32 %v363, %v668
      %670 = vmatpush1.msra.mxu0 %v669
      %671 = vmatprep.subr.mxu0 0.0
      %v672 = vand.u32 %v364, 4294901760
      %v673 = vsub.f32 %v364, %v672
      %674 = vmatpush1.msra.mxu0 %v673
      %675 = vmatprep.subr.mxu0 0.0
      %676 = vmatpush1.msra.mxu0 0.0
      %677 = vmatprep.subr.mxu0 0.0
      %678 = vmatpush1.msra.mxu0 0.0
      %679 = vmatprep.subr.mxu0 0.0
      %680 = vmatpush1.msra.mxu0 0.0
      %681 = vmatprep.subr.mxu0 0.0
      %682 = vmatpush1.msra.mxu0 0.0
      %683 = vmatprep.subr.mxu0 0.0
      %684 = vmatpush1.msra.mxu0 0.0
      %685 = vmatprep.subr.mxu0 0.0
      %686 = vmatpush1.msra.mxu0 0.0
      %687 = vmatprep.subr.mxu0 0.0
      %688 = vmatpush1.msra.mxu0 0.0
      %689 = vmatprep.subr.mxu0 0.0
      %690 = vmatpush1.msra.mxu0 0.0
      %691 = vmatprep.subr.mxu0 0.0
      %692 = vmatpush1.msra.mxu0 0.0
      %693 = vmatprep.subr.mxu0 0.0
      %694 = vmatpush1.msra.mxu0 0.0
      %695 = vmatprep.subr.mxu0 0.0
      %696 = vmatpush1.msra.mxu0 0.0
      %697 = vmatprep.subr.mxu0 0.0
      %698 = vmatpush1.msra.mxu0 0.0
      %699 = vmatprep.subr.mxu0 0.0
      %700 = vmatpush1.msra.mxu0 0.0
      %701 = vmatprep.subr.mxu0 0.0
      %702 = vmatpush1.msra.mxu0 0.0
      %703 = vmatprep.subr.mxu0 0.0
      %704 = vmatpush1.msra.mxu0 0.0
      %705 = vmatprep.subr.mxu0 0.0
      %706 = vmatpush1.msra.mxu0 0.0
      %707 = vmatprep.subr.mxu0 0.0
      %708 = vmatpush1.msra.mxu0 0.0
      %709 = vmatprep.subr.mxu0 0.0
      %710 = vmatpush1.msra.mxu0 0.0
      %711 = vmatprep.subr.mxu0 0.0
      %712 = vmatpush1.msra.mxu0 0.0
      %713 = vmatprep.subr.mxu0 0.0
      %714 = vmatpush1.msra.mxu0 0.0
      %715 = vmatprep.subr.mxu0 0.0
      %716 = vmatpush1.msra.mxu0 0.0
      %717 = vmatprep.subr.mxu0 0.0
      %718 = vmatpush1.msra.mxu0 0.0
      %719 = vmatprep.subr.mxu0 0.0
      %720 = vmatpush1.msra.mxu0 0.0
      %721 = vmatprep.subr.mxu0 0.0
      %722 = vmatpush1.msra.mxu0 0.0
      %723 = vmatprep.subr.mxu0 0.0
      %724 = vmatpush1.msra.mxu0 0.0
      %725 = vmatprep.subr.mxu0 0.0
      %726 = vmatpush1.msra.mxu0 0.0
      %727 = vmatprep.subr.mxu0 0.0
      %728 = vmatpush1.msra.mxu0 0.0
      %729 = vmatprep.subr.mxu0 0.0
      %730 = vmatpush1.msra.mxu0 0.0
      %731 = vmatprep.mubr.f32.mxu0 0.0
      %v732 = vand.u32 %v373, 4294901760
      %v733 = vsub.f32 %v373, %v732
      %734 = vmatmul.mubr.f32.gmra.mrb[0].mxu0 %v733
      %v735 = vpop.f32.mrb[0].mxu0
      %v736 = vadd.f32 %v620, %v735
      %v737 = vpop.f32.mrb[0].mxu0
      %738 = vmatprep.mubr.f32.mxu0 0.0
      %v739 = vand.u32 %v376, 4294901760
      %v740 = vsub.f32 %v376, %v739
      %741 = vmatmul.mubr.f32.gmra.mrb[0].mxu0 %v740
      %v742 = vpop.f32.mrb[0].mxu0
      %v743 = vadd.f32 %v626, %v742
      %v744 = vpop.f32.mrb[0].mxu0
      %745 = vmatprep.mubr.f32.mxu0 0.0
      %v746 = vand.u32 %v379, 4294901760
      %v747 = vsub.f32 %v379, %v746
      %748 = vmatmul.mubr.f32.gmra.mrb[0].mxu0 %v747
      %v749 = vpop.f32.mrb[0].mxu0
      %v750 = vadd.f32 %v632, %v749
      %v751 = vpop.f32.mrb[0].mxu0
      %752 = vmatprep.mubr.f32.mxu0 0.0
      %v753 = vand.u32 %v382, 4294901760
      %v754 = vsub.f32 %v382, %v753
      %755 = vmatmul.mubr.f32.gmra.mrb[0].mxu0 %v754
      %v756 = vpop.f32.mrb[0].mxu0
      %v757 = vadd.f32 %v638, %v756
      %v758 = vpop.f32.mrb[0].mxu0
      %759 = vmatprep.mubr.f32.mxu0 0.0
      %v760 = vand.u32 %v385, 4294901760
      %v761 = vsub.f32 %v385, %v760
      %762 = vmatmul.mubr.f32.gmra.mrb[0].mxu0 %v761
      %v763 = vpop.f32.mrb[0].mxu0
      %v764 = vadd.f32 %v644, %v763
      %v765 = vpop.f32.mrb[0].mxu0
      %766 = vmatprep.mubr.f32.mxu0 0.0
      %v767 = vand.u32 %v388, 4294901760
      %v768 = vsub.f32 %v388, %v767
      %769 = vmatmul.mubr.f32.gmra.mrb[0].mxu0 %v768
      %v770 = vpop.f32.mrb[0].mxu0
      %v771 = vadd.f32 %v650, %v770
      %v772 = vpop.f32.mrb[0].mxu0
      %773 = vmatprep.mubr.f32.mxu0 0.0
      %v774 = vand.u32 %v391, 4294901760
      %v775 = vsub.f32 %v391, %v774
      %776 = vmatmul.mubr.f32.gmra.mrb[0].mxu0 %v775
      %v777 = vpop.f32.mrb[0].mxu0
      %v778 = vadd.f32 %v656, %v777
      %v779 = vpop.f32.mrb[0].mxu0
      %780 = vdwg.mxu0
      %781 = vmatprep.subr.mxu0 0.0
      %v782 = vand.u32 %v361, 4294901760
      %783 = vmatpush1.msra.mxu0 %v782
      %784 = vmatprep.subr.mxu0 0.0
      %v785 = vand.u32 %v362, 4294901760
      %786 = vmatpush1.msra.mxu0 %v785
      %787 = vmatprep.subr.mxu0 0.0
      %v788 = vand.u32 %v363, 4294901760
      %789 = vmatpush1.msra.mxu0 %v788
      %790 = vmatprep.subr.mxu0 0.0
      %v791 = vand.u32 %v364, 4294901760
      %792 = vmatpush1.msra.mxu0 %v791
      %793 = vmatprep.subr.mxu0 0.0
      %794 = vmatpush1.msra.mxu0 0.0
      %795 = vmatprep.subr.mxu0 0.0
      %796 = vmatpush1.msra.mxu0 0.0
      %797 = vmatprep.subr.mxu0 0.0
      %798 = vmatpush1.msra.mxu0 0.0
      %799 = vmatprep.subr.mxu0 0.0
      %800 = vmatpush1.msra.mxu0 0.0
      %801 = vmatprep.subr.mxu0 0.0
      %802 = vmatpush1.msra.mxu0 0.0
      %803 = vmatprep.subr.mxu0 0.0
      %804 = vmatpush1.msra.mxu0 0.0
      %805 = vmatprep.subr.mxu0 0.0
      %806 = vmatpush1.msra.mxu0 0.0
      %807 = vmatprep.subr.mxu0 0.0
      %808 = vmatpush1.msra.mxu0 0.0
      %809 = vmatprep.subr.mxu0 0.0
      %810 = vmatpush1.msra.mxu0 0.0
      %811 = vmatprep.subr.mxu0 0.0
      %812 = vmatpush1.msra.mxu0 0.0
      %813 = vmatprep.subr.mxu0 0.0
      %814 = vmatpush1.msra.mxu0 0.0
      %815 = vmatprep.subr.mxu0 0.0
      %816 = vmatpush1.msra.mxu0 0.0
      %817 = vmatprep.subr.mxu0 0.0
      %818 = vmatpush1.msra.mxu0 0.0
      %819 = vmatprep.subr.mxu0 0.0
      %820 = vmatpush1.msra.mxu0 0.0
      %821 = vmatprep.subr.mxu0 0.0
      %822 = vmatpush1.msra.mxu0 0.0
      %823 = vmatprep.subr.mxu0 0.0
      %824 = vmatpush1.msra.mxu0 0.0
      %825 = vmatprep.subr.mxu0 0.0
      %826 = vmatpush1.msra.mxu0 0.0
      %827 = vmatprep.subr.mxu0 0.0
      %828 = vmatpush1.msra.mxu0 0.0
      %829 = vmatprep.subr.mxu0 0.0
      %830 = vmatpush1.msra.mxu0 0.0
      %831 = vmatprep.subr.mxu0 0.0
      %832 = vmatpush1.msra.mxu0 0.0
      %833 = vmatprep.subr.mxu0 0.0
      %834 = vmatpush1.msra.mxu0 0.0
      %835 = vmatprep.subr.mxu0 0.0
      %836 = vmatpush1.msra.mxu0 0.0
      %837 = vmatprep.subr.mxu0 0.0
      %838 = vmatpush1.msra.mxu0 0.0
      %839 = vmatprep.subr.mxu0 0.0
      %840 = vmatpush1.msra.mxu0 0.0
      %841 = vmatprep.subr.mxu0 0.0
      %842 = vmatpush1.msra.mxu0 0.0
      %843 = vmatprep.subr.mxu0 0.0
      %844 = vmatpush1.msra.mxu0 0.0
      %845 = vmatprep.subr.mxu0 0.0
      %846 = vmatpush1.msra.mxu0 0.0
      %847 = vmatprep.subr.mxu0 0.0
      %848 = vmatpush1.msra.mxu0 0.0
      %849 = vmatprep.mubr.f32.mxu0 0.0
      %v850 = vand.u32 %v373, 4294901760
      %v851 = vsub.f32 %v373, %v850
      %v852 = vand.u32 %v851, 4294901760
      %853 = vmatmul.mubr.f32.gmra.mrb[0].mxu0 %v852
      %v854 = vpop.f32.mrb[0].mxu0
      %v855 = vadd.f32 %v736, %v854
      %v856 = vpop.f32.mrb[0].mxu0
      %857 = vmatprep.mubr.f32.mxu0 0.0
      %v858 = vand.u32 %v376, 4294901760
      %v859 = vsub.f32 %v376, %v858
      %v860 = vand.u32 %v859, 4294901760
      %861 = vmatmul.mubr.f32.gmra.mrb[0].mxu0 %v860
      %v862 = vpop.f32.mrb[0].mxu0
      %v863 = vadd.f32 %v743, %v862
      %v864 = vpop.f32.mrb[0].mxu0
      %865 = vmatprep.mubr.f32.mxu0 0.0
      %v866 = vand.u32 %v379, 4294901760
      %v867 = vsub.f32 %v379, %v866
      %v868 = vand.u32 %v867, 4294901760
      %869 = vmatmul.mubr.f32.gmra.mrb[0].mxu0 %v868
      %v870 = vpop.f32.mrb[0].mxu0
      %v871 = vadd.f32 %v750, %v870
      %v872 = vpop.f32.mrb[0].mxu0
      %873 = vmatprep.mubr.f32.mxu0 0.0
      %v874 = vand.u32 %v382, 4294901760
      %v875 = vsub.f32 %v382, %v874
      %v876 = vand.u32 %v875, 4294901760
      %877 = vmatmul.mubr.f32.gmra.mrb[0].mxu0 %v876
      %v878 = vpop.f32.mrb[0].mxu0
      %v879 = vadd.f32 %v757, %v878
      %v880 = vpop.f32.mrb[0].mxu0
      %881 = vmatprep.mubr.f32.mxu0 0.0
      %v882 = vand.u32 %v385, 4294901760
      %v883 = vsub.f32 %v385, %v882
      %v884 = vand.u32 %v883, 4294901760
      %885 = vmatmul.mubr.f32.gmra.mrb[0].mxu0 %v884
      %v886 = vpop.f32.mrb[0].mxu0
      %v887 = vadd.f32 %v764, %v886
      %v888 = vpop.f32.mrb[0].mxu0
      %889 = vmatprep.mubr.f32.mxu0 0.0
      %v890 = vand.u32 %v388, 4294901760
      %v891 = vsub.f32 %v388, %v890
      %v892 = vand.u32 %v891, 4294901760
      %893 = vmatmul.mubr.f32.gmra.mrb[0].mxu0 %v892
      %v894 = vpop.f32.mrb[0].mxu0
      %v895 = vadd.f32 %v771, %v894
      %v896 = vpop.f32.mrb[0].mxu0
      %897 = vmatprep.mubr.f32.mxu0 0.0
      %v898 = vand.u32 %v391, 4294901760
      %v899 = vsub.f32 %v391, %v898
      %v900 = vand.u32 %v899, 4294901760
      %901 = vmatmul.mubr.f32.gmra.mrb[0].mxu0 %v900
      %v902 = vpop.f32.mrb[0].mxu0
      %v903 = vadd.f32 %v778, %v902
      %v904 = vpop.f32.mrb[0].mxu0
      %905 = vdwg.mxu0
      %906 = vmatprep.subr.mxu0 0.0
      %v907 = vand.u32 %v361, 4294901760
      %v908 = vsub.f32 %v361, %v907
      %v909 = vand.u32 %v908, 4294901760
      %910 = vmatpush1.msra.mxu0 %v909
      %911 = vmatprep.subr.mxu0 0.0
      %v912 = vand.u32 %v362, 4294901760
      %v913 = vsub.f32 %v362, %v912
      %v914 = vand.u32 %v913, 4294901760
      %915 = vmatpush1.msra.mxu0 %v914
      %916 = vmatprep.subr.mxu0 0.0
      %v917 = vand.u32 %v363, 4294901760
      %v918 = vsub.f32 %v363, %v917
      %v919 = vand.u32 %v918, 4294901760
      %920 = vmatpush1.msra.mxu0 %v919
      %921 = vmatprep.subr.mxu0 0.0
      %v922 = vand.u32 %v364, 4294901760
      %v923 = vsub.f32 %v364, %v922
      %v924 = vand.u32 %v923, 4294901760
      %925 = vmatpush1.msra.mxu0 %v924
      %926 = vmatprep.subr.mxu0 0.0
      %927 = vmatpush1.msra.mxu0 0.0
      %928 = vmatprep.subr.mxu0 0.0
      %929 = vmatpush1.msra.mxu0 0.0
      %930 = vmatprep.subr.mxu0 0.0
      %931 = vmatpush1.msra.mxu0 0.0
      %932 = vmatprep.subr.mxu0 0.0
      %933 = vmatpush1.msra.mxu0 0.0
      %934 = vmatprep.subr.mxu0 0.0
      %935 = vmatpush1.msra.mxu0 0.0
      %936 = vmatprep.subr.mxu0 0.0
      %937 = vmatpush1.msra.mxu0 0.0
      %938 = vmatprep.subr.mxu0 0.0
      %939 = vmatpush1.msra.mxu0 0.0
      %940 = vmatprep.subr.mxu0 0.0
      %941 = vmatpush1.msra.mxu0 0.0
      %942 = vmatprep.subr.mxu0 0.0
      %943 = vmatpush1.msra.mxu0 0.0
      %944 = vmatprep.subr.mxu0 0.0
      %945 = vmatpush1.msra.mxu0 0.0
      %946 = vmatprep.subr.mxu0 0.0
      %947 = vmatpush1.msra.mxu0 0.0
      %948 = vmatprep.subr.mxu0 0.0
      %949 = vmatpush1.msra.mxu0 0.0
      %950 = vmatprep.subr.mxu0 0.0
      %951 = vmatpush1.msra.mxu0 0.0
      %952 = vmatprep.subr.mxu0 0.0
      %953 = vmatpush1.msra.mxu0 0.0
      %954 = vmatprep.subr.mxu0 0.0
      %955 = vmatpush1.msra.mxu0 0.0
      %956 = vmatprep.subr.mxu0 0.0
      %957 = vmatpush1.msra.mxu0 0.0
      %958 = vmatprep.subr.mxu0 0.0
      %959 = vmatpush1.msra.mxu0 0.0
      %960 = vmatprep.subr.mxu0 0.0
      %961 = vmatpush1.msra.mxu0 0.0
      %962 = vmatprep.subr.mxu0 0.0
      %963 = vmatpush1.msra.mxu0 0.0
      %964 = vmatprep.subr.mxu0 0.0
      %965 = vmatpush1.msra.mxu0 0.0
      %966 = vmatprep.subr.mxu0 0.0
      %967 = vmatpush1.msra.mxu0 0.0
      %968 = vmatprep.subr.mxu0 0.0
      %969 = vmatpush1.msra.mxu0 0.0
      %970 = vmatprep.subr.mxu0 0.0
      %971 = vmatpush1.msra.mxu0 0.0
      %972 = vmatprep.subr.mxu0 0.0
      %973 = vmatpush1.msra.mxu0 0.0
      %974 = vmatprep.subr.mxu0 0.0
      %975 = vmatpush1.msra.mxu0 0.0
      %976 = vmatprep.subr.mxu0 0.0
      %977 = vmatpush1.msra.mxu0 0.0
      %978 = vmatprep.subr.mxu0 0.0
      %979 = vmatpush1.msra.mxu0 0.0
      %980 = vmatprep.subr.mxu0 0.0
      %981 = vmatpush1.msra.mxu0 0.0
      %982 = vmatprep.mubr.f32.mxu0 0.0
      %v983 = vand.u32 %v373, 4294901760
      %984 = vmatmul.mubr.f32.gmra.mrb[0].mxu0 %v983
      %v985 = vpop.f32.mrb[0].mxu0
      %v986 = vadd.f32 %v855, %v985
      %v987 = vpop.f32.mrb[0].mxu0
      %988 = vmatprep.mubr.f32.mxu0 0.0
      %v989 = vand.u32 %v376, 4294901760
      %990 = vmatmul.mubr.f32.gmra.mrb[0].mxu0 %v989
      %v991 = vpop.f32.mrb[0].mxu0
      %v992 = vadd.f32 %v863, %v991
      %v993 = vpop.f32.mrb[0].mxu0
      %994 = vmatprep.mubr.f32.mxu0 0.0
      %v995 = vand.u32 %v379, 4294901760
      %996 = vmatmul.mubr.f32.gmra.mrb[0].mxu0 %v995
      %v997 = vpop.f32.mrb[0].mxu0
      %v998 = vadd.f32 %v871, %v997
      %v999 = vpop.f32.mrb[0].mxu0
      %1000 = vmatprep.mubr.f32.mxu0 0.0
      %v1001 = vand.u32 %v382, 4294901760
      %1002 = vmatmul.mubr.f32.gmra.mrb[0].mxu0 %v1001
      %v1003 = vpop.f32.mrb[0].mxu0
      %v1004 = vadd.f32 %v879, %v1003
      %v1005 = vpop.f32.mrb[0].mxu0
      %1006 = vmatprep.mubr.f32.mxu0 0.0
      %v1007 = vand.u32 %v385, 4294901760
      %1008 = vmatmul.mubr.f32.gmra.mrb[0].mxu0 %v1007
      %v1009 = vpop.f32.mrb[0].mxu0
      %v1010 = vadd.f32 %v887, %v1009
      %v1011 = vpop.f32.mrb[0].mxu0
      %1012 = vmatprep.mubr.f32.mxu0 0.0
      %v1013 = vand.u32 %v388, 4294901760
      %1014 = vmatmul.mubr.f32.gmra.mrb[0].mxu0 %v1013
      %v1015 = vpop.f32.mrb[0].mxu0
      %v1016 = vadd.f32 %v895, %v1015
      %v1017 = vpop.f32.mrb[0].mxu0
      %1018 = vmatprep.mubr.f32.mxu0 0.0
      %v1019 = vand.u32 %v391, 4294901760
      %1020 = vmatmul.mubr.f32.gmra.mrb[0].mxu0 %v1019
      %v1021 = vpop.f32.mrb[0].mxu0
      %v1022 = vadd.f32 %v903, %v1021
      %v1023 = vpop.f32.mrb[0].mxu0
      %1024 = vdwg.mxu0
      %1025 = vmatprep.subr.mxu0 0.0
      %v1026 = vand.u32 %v361, 4294901760
      %1027 = vmatpush1.msra.mxu0 %v1026
      %1028 = vmatprep.subr.mxu0 0.0
      %v1029 = vand.u32 %v362, 4294901760
      %1030 = vmatpush1.msra.mxu0 %v1029
      %1031 = vmatprep.subr.mxu0 0.0
      %v1032 = vand.u32 %v363, 4294901760
      %1033 = vmatpush1.msra.mxu0 %v1032
      %1034 = vmatprep.subr.mxu0 0.0
      %v1035 = vand.u32 %v364, 4294901760
      %1036 = vmatpush1.msra.mxu0 %v1035
      %1037 = vmatprep.subr.mxu0 0.0
      %1038 = vmatpush1.msra.mxu0 0.0
      %1039 = vmatprep.subr.mxu0 0.0
      %1040 = vmatpush1.msra.mxu0 0.0
      %1041 = vmatprep.subr.mxu0 0.0
      %1042 = vmatpush1.msra.mxu0 0.0
      %1043 = vmatprep.subr.mxu0 0.0
      %1044 = vmatpush1.msra.mxu0 0.0
      %1045 = vmatprep.subr.mxu0 0.0
      %1046 = vmatpush1.msra.mxu0 0.0
      %1047 = vmatprep.subr.mxu0 0.0
      %1048 = vmatpush1.msra.mxu0 0.0
      %1049 = vmatprep.subr.mxu0 0.0
      %1050 = vmatpush1.msra.mxu0 0.0
      %1051 = vmatprep.subr.mxu0 0.0
      %1052 = vmatpush1.msra.mxu0 0.0
      %1053 = vmatprep.subr.mxu0 0.0
      %1054 = vmatpush1.msra.mxu0 0.0
      %1055 = vmatprep.subr.mxu0 0.0
      %1056 = vmatpush1.msra.mxu0 0.0
      %1057 = vmatprep.subr.mxu0 0.0
      %1058 = vmatpush1.msra.mxu0 0.0
      %1059 = vmatprep.subr.mxu0 0.0
      %1060 = vmatpush1.msra.mxu0 0.0
      %1061 = vmatprep.subr.mxu0 0.0
      %1062 = vmatpush1.msra.mxu0 0.0
      %1063 = vmatprep.subr.mxu0 0.0
      %1064 = vmatpush1.msra.mxu0 0.0
      %1065 = vmatprep.subr.mxu0 0.0
      %1066 = vmatpush1.msra.mxu0 0.0
      %1067 = vmatprep.subr.mxu0 0.0
      %1068 = vmatpush1.msra.mxu0 0.0
      %1069 = vmatprep.subr.mxu0 0.0
      %1070 = vmatpush1.msra.mxu0 0.0
      %1071 = vmatprep.subr.mxu0 0.0
      %1072 = vmatpush1.msra.mxu0 0.0
      %1073 = vmatprep.subr.mxu0 0.0
      %1074 = vmatpush1.msra.mxu0 0.0
      %1075 = vmatprep.subr.mxu0 0.0
      %1076 = vmatpush1.msra.mxu0 0.0
      %1077 = vmatprep.subr.mxu0 0.0
      %1078 = vmatpush1.msra.mxu0 0.0
      %1079 = vmatprep.subr.mxu0 0.0
      %1080 = vmatpush1.msra.mxu0 0.0
      %1081 = vmatprep.subr.mxu0 0.0
      %1082 = vmatpush1.msra.mxu0 0.0
      %1083 = vmatprep.subr.mxu0 0.0
      %1084 = vmatpush1.msra.mxu0 0.0
      %1085 = vmatprep.subr.mxu0 0.0
      %1086 = vmatpush1.msra.mxu0 0.0
      %1087 = vmatprep.subr.mxu0 0.0
      %1088 = vmatpush1.msra.mxu0 0.0
      %1089 = vmatprep.subr.mxu0 0.0
      %1090 = vmatpush1.msra.mxu0 0.0
      %1091 = vmatprep.subr.mxu0 0.0
      %1092 = vmatpush1.msra.mxu0 0.0
      %1093 = vmatprep.mubr.f32.mxu0 0.0
      %v1094 = vand.u32 %v373, 4294901760
      %1095 = vmatmul.mubr.f32.gmra.mrb[0].mxu0 %v1094
      %v1096 = vpop.f32.mrb[0].mxu0
      %v1097 = vadd.f32 %v986, %v1096
      %v1098 = vpop.f32.mrb[0].mxu0
      %1099 = vmatprep.mubr.f32.mxu0 0.0
      %v1100 = vand.u32 %v376, 4294901760
      %1101 = vmatmul.mubr.f32.gmra.mrb[0].mxu0 %v1100
      %v1102 = vpop.f32.mrb[0].mxu0
      %v1103 = vadd.f32 %v992, %v1102
      %v1104 = vpop.f32.mrb[0].mxu0
      %1105 = vmatprep.mubr.f32.mxu0 0.0
      %v1106 = vand.u32 %v379, 4294901760
      %1107 = vmatmul.mubr.f32.gmra.mrb[0].mxu0 %v1106
      %v1108 = vpop.f32.mrb[0].mxu0
      %v1109 = vadd.f32 %v998, %v1108
      %v1110 = vpop.f32.mrb[0].mxu0
      %1111 = vmatprep.mubr.f32.mxu0 0.0
      %v1112 = vand.u32 %v382, 4294901760
      %1113 = vmatmul.mubr.f32.gmra.mrb[0].mxu0 %v1112
      %v1114 = vpop.f32.mrb[0].mxu0
      %v1115 = vadd.f32 %v1004, %v1114
      %v1116 = vpop.f32.mrb[0].mxu0
      %1117 = vmatprep.mubr.f32.mxu0 0.0
      %v1118 = vand.u32 %v385, 4294901760
      %1119 = vmatmul.mubr.f32.gmra.mrb[0].mxu0 %v1118
      %v1120 = vpop.f32.mrb[0].mxu0
      %v1121 = vadd.f32 %v1010, %v1120
      %v1122 = vpop.f32.mrb[0].mxu0
      %1123 = vmatprep.mubr.f32.mxu0 0.0
      %v1124 = vand.u32 %v388, 4294901760
      %1125 = vmatmul.mubr.f32.gmra.mrb[0].mxu0 %v1124
      %v1126 = vpop.f32.mrb[0].mxu0
      %v1127 = vadd.f32 %v1016, %v1126
      %v1128 = vpop.f32.mrb[0].mxu0
      %1129 = vmatprep.mubr.f32.mxu0 0.0
      %v1130 = vand.u32 %v391, 4294901760
      %1131 = vmatmul.mubr.f32.gmra.mrb[0].mxu0 %v1130
      %v1132 = vpop.f32.mrb[0].mxu0
      %v1133 = vadd.f32 %v1022, %v1132
      %v1134 = vpop.f32.mrb[0].mxu0
      %1135 = vdwg.mxu0
      %v1136 = vmul.f32 %v1097, %v1097
      %v1137 = vmul.f32 %v1103, %v1103
      %v1138 = vmul.f32 %v1109, %v1109
      %v1139 = vmul.f32 %v1115, %v1115
      %v1140 = vmul.f32 %v1121, %v1121
      %v1141 = vmul.f32 %v1127, %v1127
      %v1142 = vmul.f32 %v1133, %v1133
      %v1143 = vlaneseq
      %v1144 = vshrl.u32 %v1143, 7
      %v1145 = vsub.s32 0, %v1144
      %v1146 = vrot.slane %v366, %v1145
      %v1147 = vmul.f32 %v1136, %v1146
      %v1148 = vmul.f32 %v1137, %v1146
      %v1149 = vmul.f32 %v1138, %v1146
      %v1150 = vmul.f32 %v1139, %v1146
      %v1151 = vmul.f32 %v1140, %v1146
      %v1152 = vmul.f32 %v1141, %v1146
      %v1153 = vmul.f32 %v1142, %v1146
      %v1154 = vmul.f32 %v1147, 1.442695
      %v1155 = vpow.pop %v1154
      %v1156 = vmul.f32 %v1148, 1.442695
      %v1157 = vpow.pop %v1156
      %v1158 = vmul.f32 %v1149, 1.442695
      %v1159 = vpow.pop %v1158
      %v1160 = vmul.f32 %v1150, 1.442695
      %v1161 = vpow.pop %v1160
      %v1162 = vmul.f32 %v1151, 1.442695
      %v1163 = vpow.pop %v1162
      %v1164 = vmul.f32 %v1152, 1.442695
      %v1165 = vpow.pop %v1164
      %v1166 = vmul.f32 %v1153, 1.442695
      %v1167 = vpow.pop %v1166
      %v1168 = vld [vmem:[%s3] sm:$0xff]
      %v1169 = vld [vmem:[%s3 + $0x8] sm:$0xff]
      %v1170 = vld [vmem:[%s3 + $0x10] sm:$0xff]
      %v1171 = vld [vmem:[%s3 + $0x18] sm:$0xff]
      %v1172 = vld [vmem:[%s3 + $0x20] sm:$0xff]
      %v1173 = vld [vmem:[%s3 + $0x28] sm:$0xff]
      %v1174 = vld [vmem:[%s3 + $0x30] sm:$0xff]
      %v1175 = vld [vmem:[%s3 + $0x38] sm:$0xff]
      %v1176 = vld [vmem:[%s3 + $0x40] sm:$0xff]
      %v1177 = vld [vmem:[%s3 + $0x48] sm:$0xff]
      %v1178 = vld [vmem:[%s3 + $0x50] sm:$0xff]
      %v1179 = vld [vmem:[%s3 + $0x58] sm:$0xff]
      %v1180 = vld [vmem:[%s3 + $0x60] sm:$0xff]
      %v1181 = vld [vmem:[%s3 + $0x68] sm:$0xff]
      %v1182 = vld [vmem:[%s3 + $0x70] sm:$0xff]
      %v1183 = vld [vmem:[%s3 + $0x78] sm:$0xff]
      %v1184 = vld [vmem:[%s7 + $0x2] sm:$0x1]
      %v1185 = vld [vmem:[%s7 + $0x3] sm:$0x1]
      %v1186 = vlaneseq
      %v1187 = vshrl.u32 %v1186, 7
      %v1188 = vsub.s32 0, %v1187
      %v1189 = vrot.slane %v1184, %v1188
      %1190 = vmatprep.subr.mxu0 0.0
      %v1191 = vand.u32 %v1168, 4294901760
      %1192 = vmatpush1.msra.mxu0 %v1191
      %1193 = vmatprep.subr.mxu0 0.0
      %v1194 = vand.u32 %v1169, 4294901760
      %1195 = vmatpush1.msra.mxu0 %v1194
      %1196 = vmatprep.subr.mxu0 0.0
      %v1197 = vand.u32 %v1170, 4294901760
      %1198 = vmatpush1.msra.mxu0 %v1197
      %1199 = vmatprep.subr.mxu0 0.0
      %v1200 = vand.u32 %v1171, 4294901760
      %1201 = vmatpush1.msra.mxu0 %v1200
      %1202 = vmatprep.subr.mxu0 0.0
      %v1203 = vand.u32 %v1172, 4294901760
      %1204 = vmatpush1.msra.mxu0 %v1203
      %1205 = vmatprep.subr.mxu0 0.0
      %v1206 = vand.u32 %v1173, 4294901760
      %1207 = vmatpush1.msra.mxu0 %v1206
      %1208 = vmatprep.subr.mxu0 0.0
      %v1209 = vand.u32 %v1174, 4294901760
      %1210 = vmatpush1.msra.mxu0 %v1209
      %1211 = vmatprep.subr.mxu0 0.0
      %v1212 = vand.u32 %v1175, 4294901760
      %1213 = vmatpush1.msra.mxu0 %v1212
      %1214 = vmatprep.subr.mxu0 0.0
      %v1215 = vand.u32 %v1176, 4294901760
      %1216 = vmatpush1.msra.mxu0 %v1215
      %1217 = vmatprep.subr.mxu0 0.0
      %v1218 = vand.u32 %v1177, 4294901760
      %1219 = vmatpush1.msra.mxu0 %v1218
      %1220 = vmatprep.subr.mxu0 0.0
      %v1221 = vand.u32 %v1178, 4294901760
      %1222 = vmatpush1.msra.mxu0 %v1221
      %1223 = vmatprep.subr.mxu0 0.0
      %v1224 = vand.u32 %v1179, 4294901760
      %1225 = vmatpush1.msra.mxu0 %v1224
      %1226 = vmatprep.subr.mxu0 0.0
      %v1227 = vand.u32 %v1180, 4294901760
      %1228 = vmatpush1.msra.mxu0 %v1227
      %1229 = vmatprep.subr.mxu0 0.0
      %v1230 = vand.u32 %v1181, 4294901760
      %1231 = vmatpush1.msra.mxu0 %v1230
      %1232 = vmatprep.subr.mxu0 0.0
      %v1233 = vand.u32 %v1182, 4294901760
      %1234 = vmatpush1.msra.mxu0 %v1233
      %1235 = vmatprep.subr.mxu0 0.0
      %v1236 = vand.u32 %v1183, 4294901760
      %1237 = vmatpush1.msra.mxu0 %v1236
      %1238 = vmatprep.subr.mxu0 0.0
      %1239 = vmatpush1.msra.mxu0 0.0
      %1240 = vmatprep.subr.mxu0 0.0
      %1241 = vmatpush1.msra.mxu0 0.0
      %1242 = vmatprep.subr.mxu0 0.0
      %1243 = vmatpush1.msra.mxu0 0.0
      %1244 = vmatprep.subr.mxu0 0.0
      %1245 = vmatpush1.msra.mxu0 0.0
      %1246 = vmatprep.subr.mxu0 0.0
      %1247 = vmatpush1.msra.mxu0 0.0
      %1248 = vmatprep.subr.mxu0 0.0
      %1249 = vmatpush1.msra.mxu0 0.0
      %1250 = vmatprep.subr.mxu0 0.0
      %1251 = vmatpush1.msra.mxu0 0.0
      %1252 = vmatprep.subr.mxu0 0.0
      %1253 = vmatpush1.msra.mxu0 0.0
      %1254 = vmatprep.subr.mxu0 0.0
      %1255 = vmatpush1.msra.mxu0 0.0
      %1256 = vmatprep.subr.mxu0 0.0
      %1257 = vmatpush1.msra.mxu0 0.0
      %1258 = vmatprep.subr.mxu0 0.0
      %1259 = vmatpush1.msra.mxu0 0.0
      %1260 = vmatprep.subr.mxu0 0.0
      %1261 = vmatpush1.msra.mxu0 0.0
      %1262 = vmatprep.subr.mxu0 0.0
      %1263 = vmatpush1.msra.mxu0 0.0
      %1264 = vmatprep.subr.mxu0 0.0
      %1265 = vmatpush1.msra.mxu0 0.0
      %1266 = vmatprep.subr.mxu0 0.0
      %1267 = vmatpush1.msra.mxu0 0.0
      %1268 = vmatprep.subr.mxu0 0.0
      %1269 = vmatpush1.msra.mxu0 0.0
      %1270 = vmatprep.mubr.f32.mxu0 0.0
      %v1271 = vand.u32 %v1155, 4294901760
      %v1272 = vsub.f32 %v1155, %v1271
      %v1273 = vand.u32 %v1272, 4294901760
      %v1274 = vsub.f32 %v1272, %v1273
      %v1275 = vand.u32 %v1274, 4294901760
      %1276 = vmatmul.mubr.f32.gmra.mrb[0].mxu0 %v1275
      %v1277 = vpop.f32.mrb[0].mxu0
      %v1278 = vadd.f32 %v1189, %v1277
      %v1279 = vpop.f32.mrb[0].mxu0
      %1280 = vmatprep.mubr.f32.mxu0 0.0
      %v1281 = vand.u32 %v1157, 4294901760
      %v1282 = vsub.f32 %v1157, %v1281
      %v1283 = vand.u32 %v1282, 4294901760
      %v1284 = vsub.f32 %v1282, %v1283
      %v1285 = vand.u32 %v1284, 4294901760
      %1286 = vmatmul.mubr.f32.gmra.mrb[0].mxu0 %v1285
      %v1287 = vpop.f32.mrb[0].mxu0
      %v1288 = vadd.f32 %v1189, %v1287
      %v1289 = vpop.f32.mrb[0].mxu0
      %1290 = vmatprep.mubr.f32.mxu0 0.0
      %v1291 = vand.u32 %v1159, 4294901760
      %v1292 = vsub.f32 %v1159, %v1291
      %v1293 = vand.u32 %v1292, 4294901760
      %v1294 = vsub.f32 %v1292, %v1293
      %v1295 = vand.u32 %v1294, 4294901760
      %1296 = vmatmul.mubr.f32.gmra.mrb[0].mxu0 %v1295
      %v1297 = vpop.f32.mrb[0].mxu0
      %v1298 = vadd.f32 %v1189, %v1297
      %v1299 = vpop.f32.mrb[0].mxu0
      %1300 = vmatprep.mubr.f32.mxu0 0.0
      %v1301 = vand.u32 %v1161, 4294901760
      %v1302 = vsub.f32 %v1161, %v1301
      %v1303 = vand.u32 %v1302, 4294901760
      %v1304 = vsub.f32 %v1302, %v1303
      %v1305 = vand.u32 %v1304, 4294901760
      %1306 = vmatmul.mubr.f32.gmra.mrb[0].mxu0 %v1305
      %v1307 = vpop.f32.mrb[0].mxu0
      %v1308 = vadd.f32 %v1189, %v1307
      %v1309 = vpop.f32.mrb[0].mxu0
      %1310 = vmatprep.mubr.f32.mxu0 0.0
      %v1311 = vand.u32 %v1163, 4294901760
      %v1312 = vsub.f32 %v1163, %v1311
      %v1313 = vand.u32 %v1312, 4294901760
      %v1314 = vsub.f32 %v1312, %v1313
      %v1315 = vand.u32 %v1314, 4294901760
      %1316 = vmatmul.mubr.f32.gmra.mrb[0].mxu0 %v1315
      %v1317 = vpop.f32.mrb[0].mxu0
      %v1318 = vadd.f32 %v1189, %v1317
      %v1319 = vpop.f32.mrb[0].mxu0
      %1320 = vmatprep.mubr.f32.mxu0 0.0
      %v1321 = vand.u32 %v1165, 4294901760
      %v1322 = vsub.f32 %v1165, %v1321
      %v1323 = vand.u32 %v1322, 4294901760
      %v1324 = vsub.f32 %v1322, %v1323
      %v1325 = vand.u32 %v1324, 4294901760
      %1326 = vmatmul.mubr.f32.gmra.mrb[0].mxu0 %v1325
      %v1327 = vpop.f32.mrb[0].mxu0
      %v1328 = vadd.f32 %v1189, %v1327
      %v1329 = vpop.f32.mrb[0].mxu0
      %1330 = vmatprep.mubr.f32.mxu0 0.0
      %v1331 = vand.u32 %v1167, 4294901760
      %v1332 = vsub.f32 %v1167, %v1331
      %v1333 = vand.u32 %v1332, 4294901760
      %v1334 = vsub.f32 %v1332, %v1333
      %v1335 = vand.u32 %v1334, 4294901760
      %1336 = vmatmul.mubr.f32.gmra.mrb[0].mxu0 %v1335
      %v1337 = vpop.f32.mrb[0].mxu0
      %v1338 = vadd.f32 %v1189, %v1337
      %v1339 = vpop.f32.mrb[0].mxu0
      %1340 = vdwg.mxu0
      %1341 = vmatprep.subr.mxu0 0.0
      %v1342 = vand.u32 %v1168, 4294901760
      %v1343 = vsub.f32 %v1168, %v1342
      %v1344 = vand.u32 %v1343, 4294901760
      %v1345 = vsub.f32 %v1343, %v1344
      %v1346 = vand.u32 %v1345, 4294901760
      %1347 = vmatpush1.msra.mxu0 %v1346
      %1348 = vmatprep.subr.mxu0 0.0
      %v1349 = vand.u32 %v1169, 4294901760
      %v1350 = vsub.f32 %v1169, %v1349
      %v1351 = vand.u32 %v1350, 4294901760
      %v1352 = vsub.f32 %v1350, %v1351
      %v1353 = vand.u32 %v1352, 4294901760
      %1354 = vmatpush1.msra.mxu0 %v1353
      %1355 = vmatprep.subr.mxu0 0.0
      %v1356 = vand.u32 %v1170, 4294901760
      %v1357 = vsub.f32 %v1170, %v1356
      %v1358 = vand.u32 %v1357, 4294901760
      %v1359 = vsub.f32 %v1357, %v1358
      %v1360 = vand.u32 %v1359, 4294901760
      %1361 = vmatpush1.msra.mxu0 %v1360
      %1362 = vmatprep.subr.mxu0 0.0
      %v1363 = vand.u32 %v1171, 4294901760
      %v1364 = vsub.f32 %v1171, %v1363
      %v1365 = vand.u32 %v1364, 4294901760
      %v1366 = vsub.f32 %v1364, %v1365
      %v1367 = vand.u32 %v1366, 4294901760
      %1368 = vmatpush1.msra.mxu0 %v1367
      %1369 = vmatprep.subr.mxu0 0.0
      %v1370 = vand.u32 %v1172, 4294901760
      %v1371 = vsub.f32 %v1172, %v1370
      %v1372 = vand.u32 %v1371, 4294901760
      %v1373 = vsub.f32 %v1371, %v1372
      %v1374 = vand.u32 %v1373, 4294901760
      %1375 = vmatpush1.msra.mxu0 %v1374
      %1376 = vmatprep.subr.mxu0 0.0
      %v1377 = vand.u32 %v1173, 4294901760
      %v1378 = vsub.f32 %v1173, %v1377
      %v1379 = vand.u32 %v1378, 4294901760
      %v1380 = vsub.f32 %v1378, %v1379
      %v1381 = vand.u32 %v1380, 4294901760
      %1382 = vmatpush1.msra.mxu0 %v1381
      %1383 = vmatprep.subr.mxu0 0.0
      %v1384 = vand.u32 %v1174, 4294901760
      %v1385 = vsub.f32 %v1174, %v1384
      %v1386 = vand.u32 %v1385, 4294901760
      %v1387 = vsub.f32 %v1385, %v1386
      %v1388 = vand.u32 %v1387, 4294901760
      %1389 = vmatpush1.msra.mxu0 %v1388
      %1390 = vmatprep.subr.mxu0 0.0
      %v1391 = vand.u32 %v1175, 4294901760
      %v1392 = vsub.f32 %v1175, %v1391
      %v1393 = vand.u32 %v1392, 4294901760
      %v1394 = vsub.f32 %v1392, %v1393
      %v1395 = vand.u32 %v1394, 4294901760
      %1396 = vmatpush1.msra.mxu0 %v1395
      %1397 = vmatprep.subr.mxu0 0.0
      %v1398 = vand.u32 %v1176, 4294901760
      %v1399 = vsub.f32 %v1176, %v1398
      %v1400 = vand.u32 %v1399, 4294901760
      %v1401 = vsub.f32 %v1399, %v1400
      %v1402 = vand.u32 %v1401, 4294901760
      %1403 = vmatpush1.msra.mxu0 %v1402
      %1404 = vmatprep.subr.mxu0 0.0
      %v1405 = vand.u32 %v1177, 4294901760
      %v1406 = vsub.f32 %v1177, %v1405
      %v1407 = vand.u32 %v1406, 4294901760
      %v1408 = vsub.f32 %v1406, %v1407
      %v1409 = vand.u32 %v1408, 4294901760
      %1410 = vmatpush1.msra.mxu0 %v1409
      %1411 = vmatprep.subr.mxu0 0.0
      %v1412 = vand.u32 %v1178, 4294901760
      %v1413 = vsub.f32 %v1178, %v1412
      %v1414 = vand.u32 %v1413, 4294901760
      %v1415 = vsub.f32 %v1413, %v1414
      %v1416 = vand.u32 %v1415, 4294901760
      %1417 = vmatpush1.msra.mxu0 %v1416
      %1418 = vmatprep.subr.mxu0 0.0
      %v1419 = vand.u32 %v1179, 4294901760
      %v1420 = vsub.f32 %v1179, %v1419
      %v1421 = vand.u32 %v1420, 4294901760
      %v1422 = vsub.f32 %v1420, %v1421
      %v1423 = vand.u32 %v1422, 4294901760
      %1424 = vmatpush1.msra.mxu0 %v1423
      %1425 = vmatprep.subr.mxu0 0.0
      %v1426 = vand.u32 %v1180, 4294901760
      %v1427 = vsub.f32 %v1180, %v1426
      %v1428 = vand.u32 %v1427, 4294901760
      %v1429 = vsub.f32 %v1427, %v1428
      %v1430 = vand.u32 %v1429, 4294901760
      %1431 = vmatpush1.msra.mxu0 %v1430
      %1432 = vmatprep.subr.mxu0 0.0
      %v1433 = vand.u32 %v1181, 4294901760
      %v1434 = vsub.f32 %v1181, %v1433
      %v1435 = vand.u32 %v1434, 4294901760
      %v1436 = vsub.f32 %v1434, %v1435
      %v1437 = vand.u32 %v1436, 4294901760
      %1438 = vmatpush1.msra.mxu0 %v1437
      %1439 = vmatprep.subr.mxu0 0.0
      %v1440 = vand.u32 %v1182, 4294901760
      %v1441 = vsub.f32 %v1182, %v1440
      %v1442 = vand.u32 %v1441, 4294901760
      %v1443 = vsub.f32 %v1441, %v1442
      %v1444 = vand.u32 %v1443, 4294901760
      %1445 = vmatpush1.msra.mxu0 %v1444
      %1446 = vmatprep.subr.mxu0 0.0
      %v1447 = vand.u32 %v1183, 4294901760
      %v1448 = vsub.f32 %v1183, %v1447
      %v1449 = vand.u32 %v1448, 4294901760
      %v1450 = vsub.f32 %v1448, %v1449
      %v1451 = vand.u32 %v1450, 4294901760
      %1452 = vmatpush1.msra.mxu0 %v1451
      %1453 = vmatprep.subr.mxu0 0.0
      %1454 = vmatpush1.msra.mxu0 0.0
      %1455 = vmatprep.subr.mxu0 0.0
      %1456 = vmatpush1.msra.mxu0 0.0
      %1457 = vmatprep.subr.mxu0 0.0
      %1458 = vmatpush1.msra.mxu0 0.0
      %1459 = vmatprep.subr.mxu0 0.0
      %1460 = vmatpush1.msra.mxu0 0.0
      %1461 = vmatprep.subr.mxu0 0.0
      %1462 = vmatpush1.msra.mxu0 0.0
      %1463 = vmatprep.subr.mxu0 0.0
      %1464 = vmatpush1.msra.mxu0 0.0
      %1465 = vmatprep.subr.mxu0 0.0
      %1466 = vmatpush1.msra.mxu0 0.0
      %1467 = vmatprep.subr.mxu0 0.0
      %1468 = vmatpush1.msra.mxu0 0.0
      %1469 = vmatprep.subr.mxu0 0.0
      %1470 = vmatpush1.msra.mxu0 0.0
      %1471 = vmatprep.subr.mxu0 0.0
      %1472 = vmatpush1.msra.mxu0 0.0
      %1473 = vmatprep.subr.mxu0 0.0
      %1474 = vmatpush1.msra.mxu0 0.0
      %1475 = vmatprep.subr.mxu0 0.0
      %1476 = vmatpush1.msra.mxu0 0.0
      %1477 = vmatprep.subr.mxu0 0.0
      %1478 = vmatpush1.msra.mxu0 0.0
      %1479 = vmatprep.subr.mxu0 0.0
      %1480 = vmatpush1.msra.mxu0 0.0
      %1481 = vmatprep.subr.mxu0 0.0
      %1482 = vmatpush1.msra.mxu0 0.0
      %1483 = vmatprep.subr.mxu0 0.0
      %1484 = vmatpush1.msra.mxu0 0.0
      %1485 = vmatprep.mubr.f32.mxu0 0.0
      %v1486 = vand.u32 %v1155, 4294901760
      %1487 = vmatmul.mubr.f32.gmra.mrb[0].mxu0 %v1486
      %v1488 = vpop.f32.mrb[0].mxu0
      %v1489 = vadd.f32 %v1278, %v1488
      %v1490 = vpop.f32.mrb[0].mxu0
      %1491 = vmatprep.mubr.f32.mxu0 0.0
      %v1492 = vand.u32 %v1157, 4294901760
      %1493 = vmatmul.mubr.f32.gmra.mrb[0].mxu0 %v1492
      %v1494 = vpop.f32.mrb[0].mxu0
      %v1495 = vadd.f32 %v1288, %v1494
      %v1496 = vpop.f32.mrb[0].mxu0
      %1497 = vmatprep.mubr.f32.mxu0 0.0
      %v1498 = vand.u32 %v1159, 4294901760
      %1499 = vmatmul.mubr.f32.gmra.mrb[0].mxu0 %v1498
      %v1500 = vpop.f32.mrb[0].mxu0
      %v1501 = vadd.f32 %v1298, %v1500
      %v1502 = vpop.f32.mrb[0].mxu0
      %1503 = vmatprep.mubr.f32.mxu0 0.0
      %v1504 = vand.u32 %v1161, 4294901760
      %1505 = vmatmul.mubr.f32.gmra.mrb[0].mxu0 %v1504
      %v1506 = vpop.f32.mrb[0].mxu0
      %v1507 = vadd.f32 %v1308, %v1506
      %v1508 = vpop.f32.mrb[0].mxu0
      %1509 = vmatprep.mubr.f32.mxu0 0.0
      %v1510 = vand.u32 %v1163, 4294901760
      %1511 = vmatmul.mubr.f32.gmra.mrb[0].mxu0 %v1510
      %v1512 = vpop.f32.mrb[0].mxu0
      %v1513 = vadd.f32 %v1318, %v1512
      %v1514 = vpop.f32.mrb[0].mxu0
      %1515 = vmatprep.mubr.f32.mxu0 0.0
      %v1516 = vand.u32 %v1165, 4294901760
      %1517 = vmatmul.mubr.f32.gmra.mrb[0].mxu0 %v1516
      %v1518 = vpop.f32.mrb[0].mxu0
      %v1519 = vadd.f32 %v1328, %v1518
      %v1520 = vpop.f32.mrb[0].mxu0
      %1521 = vmatprep.mubr.f32.mxu0 0.0
      %v1522 = vand.u32 %v1167, 4294901760
      %1523 = vmatmul.mubr.f32.gmra.mrb[0].mxu0 %v1522
      %v1524 = vpop.f32.mrb[0].mxu0
      %v1525 = vadd.f32 %v1338, %v1524
      %v1526 = vpop.f32.mrb[0].mxu0
      %1527 = vdwg.mxu0
      %1528 = vmatprep.subr.mxu0 0.0
      %v1529 = vand.u32 %v1168, 4294901760
      %v1530 = vsub.f32 %v1168, %v1529
      %1531 = vmatpush1.msra.mxu0 %v1530
      %1532 = vmatprep.subr.mxu0 0.0
      %v1533 = vand.u32 %v1169, 4294901760
      %v1534 = vsub.f32 %v1169, %v1533
      %1535 = vmatpush1.msra.mxu0 %v1534
      %1536 = vmatprep.subr.mxu0 0.0
      %v1537 = vand.u32 %v1170, 4294901760
      %v1538 = vsub.f32 %v1170, %v1537
      %1539 = vmatpush1.msra.mxu0 %v1538
      %1540 = vmatprep.subr.mxu0 0.0
      %v1541 = vand.u32 %v1171, 4294901760
      %v1542 = vsub.f32 %v1171, %v1541
      %1543 = vmatpush1.msra.mxu0 %v1542
      %1544 = vmatprep.subr.mxu0 0.0
      %v1545 = vand.u32 %v1172, 4294901760
      %v1546 = vsub.f32 %v1172, %v1545
      %1547 = vmatpush1.msra.mxu0 %v1546
      %1548 = vmatprep.subr.mxu0 0.0
      %v1549 = vand.u32 %v1173, 4294901760
      %v1550 = vsub.f32 %v1173, %v1549
      %1551 = vmatpush1.msra.mxu0 %v1550
      %1552 = vmatprep.subr.mxu0 0.0
      %v1553 = vand.u32 %v1174, 4294901760
      %v1554 = vsub.f32 %v1174, %v1553
      %1555 = vmatpush1.msra.mxu0 %v1554
      %1556 = vmatprep.subr.mxu0 0.0
      %v1557 = vand.u32 %v1175, 4294901760
      %v1558 = vsub.f32 %v1175, %v1557
      %1559 = vmatpush1.msra.mxu0 %v1558
      %1560 = vmatprep.subr.mxu0 0.0
      %v1561 = vand.u32 %v1176, 4294901760
      %v1562 = vsub.f32 %v1176, %v1561
      %1563 = vmatpush1.msra.mxu0 %v1562
      %1564 = vmatprep.subr.mxu0 0.0
      %v1565 = vand.u32 %v1177, 4294901760
      %v1566 = vsub.f32 %v1177, %v1565
      %1567 = vmatpush1.msra.mxu0 %v1566
      %1568 = vmatprep.subr.mxu0 0.0
      %v1569 = vand.u32 %v1178, 4294901760
      %v1570 = vsub.f32 %v1178, %v1569
      %1571 = vmatpush1.msra.mxu0 %v1570
      %1572 = vmatprep.subr.mxu0 0.0
      %v1573 = vand.u32 %v1179, 4294901760
      %v1574 = vsub.f32 %v1179, %v1573
      %1575 = vmatpush1.msra.mxu0 %v1574
      %1576 = vmatprep.subr.mxu0 0.0
      %v1577 = vand.u32 %v1180, 4294901760
      %v1578 = vsub.f32 %v1180, %v1577
      %1579 = vmatpush1.msra.mxu0 %v1578
      %1580 = vmatprep.subr.mxu0 0.0
      %v1581 = vand.u32 %v1181, 4294901760
      %v1582 = vsub.f32 %v1181, %v1581
      %1583 = vmatpush1.msra.mxu0 %v1582
      %1584 = vmatprep.subr.mxu0 0.0
      %v1585 = vand.u32 %v1182, 4294901760
      %v1586 = vsub.f32 %v1182, %v1585
      %1587 = vmatpush1.msra.mxu0 %v1586
      %1588 = vmatprep.subr.mxu0 0.0
      %v1589 = vand.u32 %v1183, 4294901760
      %v1590 = vsub.f32 %v1183, %v1589
      %1591 = vmatpush1.msra.mxu0 %v1590
      %1592 = vmatprep.subr.mxu0 0.0
      %1593 = vmatpush1.msra.mxu0 0.0
      %1594 = vmatprep.subr.mxu0 0.0
      %1595 = vmatpush1.msra.mxu0 0.0
      %1596 = vmatprep.subr.mxu0 0.0
      %1597 = vmatpush1.msra.mxu0 0.0
      %1598 = vmatprep.subr.mxu0 0.0
      %1599 = vmatpush1.msra.mxu0 0.0
      %1600 = vmatprep.subr.mxu0 0.0
      %1601 = vmatpush1.msra.mxu0 0.0
      %1602 = vmatprep.subr.mxu0 0.0
      %1603 = vmatpush1.msra.mxu0 0.0
      %1604 = vmatprep.subr.mxu0 0.0
      %1605 = vmatpush1.msra.mxu0 0.0
      %1606 = vmatprep.subr.mxu0 0.0
      %1607 = vmatpush1.msra.mxu0 0.0
      %1608 = vmatprep.subr.mxu0 0.0
      %1609 = vmatpush1.msra.mxu0 0.0
      %1610 = vmatprep.subr.mxu0 0.0
      %1611 = vmatpush1.msra.mxu0 0.0
      %1612 = vmatprep.subr.mxu0 0.0
      %1613 = vmatpush1.msra.mxu0 0.0
      %1614 = vmatprep.subr.mxu0 0.0
      %1615 = vmatpush1.msra.mxu0 0.0
      %1616 = vmatprep.subr.mxu0 0.0
      %1617 = vmatpush1.msra.mxu0 0.0
      %1618 = vmatprep.subr.mxu0 0.0
      %1619 = vmatpush1.msra.mxu0 0.0
      %1620 = vmatprep.subr.mxu0 0.0
      %1621 = vmatpush1.msra.mxu0 0.0
      %1622 = vmatprep.subr.mxu0 0.0
      %1623 = vmatpush1.msra.mxu0 0.0
      %1624 = vmatprep.mubr.f32.mxu0 0.0
      %v1625 = vand.u32 %v1155, 4294901760
      %v1626 = vsub.f32 %v1155, %v1625
      %1627 = vmatmul.mubr.f32.gmra.mrb[0].mxu0 %v1626
      %v1628 = vpop.f32.mrb[0].mxu0
      %v1629 = vadd.f32 %v1489, %v1628
      %v1630 = vpop.f32.mrb[0].mxu0
      %1631 = vmatprep.mubr.f32.mxu0 0.0
      %v1632 = vand.u32 %v1157, 4294901760
      %v1633 = vsub.f32 %v1157, %v1632
      %1634 = vmatmul.mubr.f32.gmra.mrb[0].mxu0 %v1633
      %v1635 = vpop.f32.mrb[0].mxu0
      %v1636 = vadd.f32 %v1495, %v1635
      %v1637 = vpop.f32.mrb[0].mxu0
      %1638 = vmatprep.mubr.f32.mxu0 0.0
      %v1639 = vand.u32 %v1159, 4294901760
      %v1640 = vsub.f32 %v1159, %v1639
      %1641 = vmatmul.mubr.f32.gmra.mrb[0].mxu0 %v1640
      %v1642 = vpop.f32.mrb[0].mxu0
      %v1643 = vadd.f32 %v1501, %v1642
      %v1644 = vpop.f32.mrb[0].mxu0
      %1645 = vmatprep.mubr.f32.mxu0 0.0
      %v1646 = vand.u32 %v1161, 4294901760
      %v1647 = vsub.f32 %v1161, %v1646
      %1648 = vmatmul.mubr.f32.gmra.mrb[0].mxu0 %v1647
      %v1649 = vpop.f32.mrb[0].mxu0
      %v1650 = vadd.f32 %v1507, %v1649
      %v1651 = vpop.f32.mrb[0].mxu0
      %1652 = vmatprep.mubr.f32.mxu0 0.0
      %v1653 = vand.u32 %v1163, 4294901760
      %v1654 = vsub.f32 %v1163, %v1653
      %1655 = vmatmul.mubr.f32.gmra.mrb[0].mxu0 %v1654
      %v1656 = vpop.f32.mrb[0].mxu0
      %v1657 = vadd.f32 %v1513, %v1656
      %v1658 = vpop.f32.mrb[0].mxu0
      %1659 = vmatprep.mubr.f32.mxu0 0.0
      %v1660 = vand.u32 %v1165, 4294901760
      %v1661 = vsub.f32 %v1165, %v1660
      %1662 = vmatmul.mubr.f32.gmra.mrb[0].mxu0 %v1661
      %v1663 = vpop.f32.mrb[0].mxu0
      %v1664 = vadd.f32 %v1519, %v1663
      %v1665 = vpop.f32.mrb[0].mxu0
      %1666 = vmatprep.mubr.f32.mxu0 0.0
      %v1667 = vand.u32 %v1167, 4294901760
      %v1668 = vsub.f32 %v1167, %v1667
      %1669 = vmatmul.mubr.f32.gmra.mrb[0].mxu0 %v1668
      %v1670 = vpop.f32.mrb[0].mxu0
      %v1671 = vadd.f32 %v1525, %v1670
      %v1672 = vpop.f32.mrb[0].mxu0
      %1673 = vdwg.mxu0
      %1674 = vmatprep.subr.mxu0 0.0
      %v1675 = vand.u32 %v1168, 4294901760
      %1676 = vmatpush1.msra.mxu0 %v1675
      %1677 = vmatprep.subr.mxu0 0.0
      %v1678 = vand.u32 %v1169, 4294901760
      %1679 = vmatpush1.msra.mxu0 %v1678
      %1680 = vmatprep.subr.mxu0 0.0
      %v1681 = vand.u32 %v1170, 4294901760
      %1682 = vmatpush1.msra.mxu0 %v1681
      %1683 = vmatprep.subr.mxu0 0.0
      %v1684 = vand.u32 %v1171, 4294901760
      %1685 = vmatpush1.msra.mxu0 %v1684
      %1686 = vmatprep.subr.mxu0 0.0
      %v1687 = vand.u32 %v1172, 4294901760
      %1688 = vmatpush1.msra.mxu0 %v1687
      %1689 = vmatprep.subr.mxu0 0.0
      %v1690 = vand.u32 %v1173, 4294901760
      %1691 = vmatpush1.msra.mxu0 %v1690
      %1692 = vmatprep.subr.mxu0 0.0
      %v1693 = vand.u32 %v1174, 4294901760
      %1694 = vmatpush1.msra.mxu0 %v1693
      %1695 = vmatprep.subr.mxu0 0.0
      %v1696 = vand.u32 %v1175, 4294901760
      %1697 = vmatpush1.msra.mxu0 %v1696
      %1698 = vmatprep.subr.mxu0 0.0
      %v1699 = vand.u32 %v1176, 4294901760
      %1700 = vmatpush1.msra.mxu0 %v1699
      %1701 = vmatprep.subr.mxu0 0.0
      %v1702 = vand.u32 %v1177, 4294901760
      %1703 = vmatpush1.msra.mxu0 %v1702
      %1704 = vmatprep.subr.mxu0 0.0
      %v1705 = vand.u32 %v1178, 4294901760
      %1706 = vmatpush1.msra.mxu0 %v1705
      %1707 = vmatprep.subr.mxu0 0.0
      %v1708 = vand.u32 %v1179, 4294901760
      %1709 = vmatpush1.msra.mxu0 %v1708
      %1710 = vmatprep.subr.mxu0 0.0
      %v1711 = vand.u32 %v1180, 4294901760
      %1712 = vmatpush1.msra.mxu0 %v1711
      %1713 = vmatprep.subr.mxu0 0.0
      %v1714 = vand.u32 %v1181, 4294901760
      %1715 = vmatpush1.msra.mxu0 %v1714
      %1716 = vmatprep.subr.mxu0 0.0
      %v1717 = vand.u32 %v1182, 4294901760
      %1718 = vmatpush1.msra.mxu0 %v1717
      %1719 = vmatprep.subr.mxu0 0.0
      %v1720 = vand.u32 %v1183, 4294901760
      %1721 = vmatpush1.msra.mxu0 %v1720
      %1722 = vmatprep.subr.mxu0 0.0
      %1723 = vmatpush1.msra.mxu0 0.0
      %1724 = vmatprep.subr.mxu0 0.0
      %1725 = vmatpush1.msra.mxu0 0.0
      %1726 = vmatprep.subr.mxu0 0.0
      %1727 = vmatpush1.msra.mxu0 0.0
      %1728 = vmatprep.subr.mxu0 0.0
      %1729 = vmatpush1.msra.mxu0 0.0
      %1730 = vmatprep.subr.mxu0 0.0
      %1731 = vmatpush1.msra.mxu0 0.0
      %1732 = vmatprep.subr.mxu0 0.0
      %1733 = vmatpush1.msra.mxu0 0.0
      %1734 = vmatprep.subr.mxu0 0.0
      %1735 = vmatpush1.msra.mxu0 0.0
      %1736 = vmatprep.subr.mxu0 0.0
      %1737 = vmatpush1.msra.mxu0 0.0
      %1738 = vmatprep.subr.mxu0 0.0
      %1739 = vmatpush1.msra.mxu0 0.0
      %1740 = vmatprep.subr.mxu0 0.0
      %1741 = vmatpush1.msra.mxu0 0.0
      %1742 = vmatprep.subr.mxu0 0.0
      %1743 = vmatpush1.msra.mxu0 0.0
      %1744 = vmatprep.subr.mxu0 0.0
      %1745 = vmatpush1.msra.mxu0 0.0
      %1746 = vmatprep.subr.mxu0 0.0
      %1747 = vmatpush1.msra.mxu0 0.0
      %1748 = vmatprep.subr.mxu0 0.0
      %1749 = vmatpush1.msra.mxu0 0.0
      %1750 = vmatprep.subr.mxu0 0.0
      %1751 = vmatpush1.msra.mxu0 0.0
      %1752 = vmatprep.subr.mxu0 0.0
      %1753 = vmatpush1.msra.mxu0 0.0
      %1754 = vmatprep.mubr.f32.mxu0 0.0
      %v1755 = vand.u32 %v1155, 4294901760
      %v1756 = vsub.f32 %v1155, %v1755
      %v1757 = vand.u32 %v1756, 4294901760
      %1758 = vmatmul.mubr.f32.gmra.mrb[0].mxu0 %v1757
      %v1759 = vpop.f32.mrb[0].mxu0
      %v1760 = vadd.f32 %v1629, %v1759
      %v1761 = vpop.f32.mrb[0].mxu0
      %1762 = vmatprep.mubr.f32.mxu0 0.0
      %v1763 = vand.u32 %v1157, 4294901760
      %v1764 = vsub.f32 %v1157, %v1763
      %v1765 = vand.u32 %v1764, 4294901760
      %1766 = vmatmul.mubr.f32.gmra.mrb[0].mxu0 %v1765
      %v1767 = vpop.f32.mrb[0].mxu0
      %v1768 = vadd.f32 %v1636, %v1767
      %v1769 = vpop.f32.mrb[0].mxu0
      %1770 = vmatprep.mubr.f32.mxu0 0.0
      %v1771 = vand.u32 %v1159, 4294901760
      %v1772 = vsub.f32 %v1159, %v1771
      %v1773 = vand.u32 %v1772, 4294901760
      %1774 = vmatmul.mubr.f32.gmra.mrb[0].mxu0 %v1773
      %v1775 = vpop.f32.mrb[0].mxu0
      %v1776 = vadd.f32 %v1643, %v1775
      %v1777 = vpop.f32.mrb[0].mxu0
      %1778 = vmatprep.mubr.f32.mxu0 0.0
      %v1779 = vand.u32 %v1161, 4294901760
      %v1780 = vsub.f32 %v1161, %v1779
      %v1781 = vand.u32 %v1780, 4294901760
      %1782 = vmatmul.mubr.f32.gmra.mrb[0].mxu0 %v1781
      %v1783 = vpop.f32.mrb[0].mxu0
      %v1784 = vadd.f32 %v1650, %v1783
      %v1785 = vpop.f32.mrb[0].mxu0
      %1786 = vmatprep.mubr.f32.mxu0 0.0
      %v1787 = vand.u32 %v1163, 4294901760
      %v1788 = vsub.f32 %v1163, %v1787
      %v1789 = vand.u32 %v1788, 4294901760
      %1790 = vmatmul.mubr.f32.gmra.mrb[0].mxu0 %v1789
      %v1791 = vpop.f32.mrb[0].mxu0
      %v1792 = vadd.f32 %v1657, %v1791
      %v1793 = vpop.f32.mrb[0].mxu0
      %1794 = vmatprep.mubr.f32.mxu0 0.0
      %v1795 = vand.u32 %v1165, 4294901760
      %v1796 = vsub.f32 %v1165, %v1795
      %v1797 = vand.u32 %v1796, 4294901760
      %1798 = vmatmul.mubr.f32.gmra.mrb[0].mxu0 %v1797
      %v1799 = vpop.f32.mrb[0].mxu0
      %v1800 = vadd.f32 %v1664, %v1799
      %v1801 = vpop.f32.mrb[0].mxu0
      %1802 = vmatprep.mubr.f32.mxu0 0.0
      %v1803 = vand.u32 %v1167, 4294901760
      %v1804 = vsub.f32 %v1167, %v1803
      %v1805 = vand.u32 %v1804, 4294901760
      %1806 = vmatmul.mubr.f32.gmra.mrb[0].mxu0 %v1805
      %v1807 = vpop.f32.mrb[0].mxu0
      %v1808 = vadd.f32 %v1671, %v1807
      %v1809 = vpop.f32.mrb[0].mxu0
      %1810 = vdwg.mxu0
      %1811 = vmatprep.subr.mxu0 0.0
      %v1812 = vand.u32 %v1168, 4294901760
      %v1813 = vsub.f32 %v1168, %v1812
      %v1814 = vand.u32 %v1813, 4294901760
      %1815 = vmatpush1.msra.mxu0 %v1814
      %1816 = vmatprep.subr.mxu0 0.0
      %v1817 = vand.u32 %v1169, 4294901760
      %v1818 = vsub.f32 %v1169, %v1817
      %v1819 = vand.u32 %v1818, 4294901760
      %1820 = vmatpush1.msra.mxu0 %v1819
      %1821 = vmatprep.subr.mxu0 0.0
      %v1822 = vand.u32 %v1170, 4294901760
      %v1823 = vsub.f32 %v1170, %v1822
      %v1824 = vand.u32 %v1823, 4294901760
      %1825 = vmatpush1.msra.mxu0 %v1824
      %1826 = vmatprep.subr.mxu0 0.0
      %v1827 = vand.u32 %v1171, 4294901760
      %v1828 = vsub.f32 %v1171, %v1827
      %v1829 = vand.u32 %v1828, 4294901760
      %1830 = vmatpush1.msra.mxu0 %v1829
      %1831 = vmatprep.subr.mxu0 0.0
      %v1832 = vand.u32 %v1172, 4294901760
      %v1833 = vsub.f32 %v1172, %v1832
      %v1834 = vand.u32 %v1833, 4294901760
      %1835 = vmatpush1.msra.mxu0 %v1834
      %1836 = vmatprep.subr.mxu0 0.0
      %v1837 = vand.u32 %v1173, 4294901760
      %v1838 = vsub.f32 %v1173, %v1837
      %v1839 = vand.u32 %v1838, 4294901760
      %1840 = vmatpush1.msra.mxu0 %v1839
      %1841 = vmatprep.subr.mxu0 0.0
      %v1842 = vand.u32 %v1174, 4294901760
      %v1843 = vsub.f32 %v1174, %v1842
      %v1844 = vand.u32 %v1843, 4294901760
      %1845 = vmatpush1.msra.mxu0 %v1844
      %1846 = vmatprep.subr.mxu0 0.0
      %v1847 = vand.u32 %v1175, 4294901760
      %v1848 = vsub.f32 %v1175, %v1847
      %v1849 = vand.u32 %v1848, 4294901760
      %1850 = vmatpush1.msra.mxu0 %v1849
      %1851 = vmatprep.subr.mxu0 0.0
      %v1852 = vand.u32 %v1176, 4294901760
      %v1853 = vsub.f32 %v1176, %v1852
      %v1854 = vand.u32 %v1853, 4294901760
      %1855 = vmatpush1.msra.mxu0 %v1854
      %1856 = vmatprep.subr.mxu0 0.0
      %v1857 = vand.u32 %v1177, 4294901760
      %v1858 = vsub.f32 %v1177, %v1857
      %v1859 = vand.u32 %v1858, 4294901760
      %1860 = vmatpush1.msra.mxu0 %v1859
      %1861 = vmatprep.subr.mxu0 0.0
      %v1862 = vand.u32 %v1178, 4294901760
      %v1863 = vsub.f32 %v1178, %v1862
      %v1864 = vand.u32 %v1863, 4294901760
      %1865 = vmatpush1.msra.mxu0 %v1864
      %1866 = vmatprep.subr.mxu0 0.0
      %v1867 = vand.u32 %v1179, 4294901760
      %v1868 = vsub.f32 %v1179, %v1867
      %v1869 = vand.u32 %v1868, 4294901760
      %1870 = vmatpush1.msra.mxu0 %v1869
      %1871 = vmatprep.subr.mxu0 0.0
      %v1872 = vand.u32 %v1180, 4294901760
      %v1873 = vsub.f32 %v1180, %v1872
      %v1874 = vand.u32 %v1873, 4294901760
      %1875 = vmatpush1.msra.mxu0 %v1874
      %1876 = vmatprep.subr.mxu0 0.0
      %v1877 = vand.u32 %v1181, 4294901760
      %v1878 = vsub.f32 %v1181, %v1877
      %v1879 = vand.u32 %v1878, 4294901760
      %1880 = vmatpush1.msra.mxu0 %v1879
      %1881 = vmatprep.subr.mxu0 0.0
      %v1882 = vand.u32 %v1182, 4294901760
      %v1883 = vsub.f32 %v1182, %v1882
      %v1884 = vand.u32 %v1883, 4294901760
      %1885 = vmatpush1.msra.mxu0 %v1884
      %1886 = vmatprep.subr.mxu0 0.0
      %v1887 = vand.u32 %v1183, 4294901760
      %v1888 = vsub.f32 %v1183, %v1887
      %v1889 = vand.u32 %v1888, 4294901760
      %1890 = vmatpush1.msra.mxu0 %v1889
      %1891 = vmatprep.subr.mxu0 0.0
      %1892 = vmatpush1.msra.mxu0 0.0
      %1893 = vmatprep.subr.mxu0 0.0
      %1894 = vmatpush1.msra.mxu0 0.0
      %1895 = vmatprep.subr.mxu0 0.0
      %1896 = vmatpush1.msra.mxu0 0.0
      %1897 = vmatprep.subr.mxu0 0.0
      %1898 = vmatpush1.msra.mxu0 0.0
      %1899 = vmatprep.subr.mxu0 0.0
      %1900 = vmatpush1.msra.mxu0 0.0
      %1901 = vmatprep.subr.mxu0 0.0
      %1902 = vmatpush1.msra.mxu0 0.0
      %1903 = vmatprep.subr.mxu0 0.0
      %1904 = vmatpush1.msra.mxu0 0.0
      %1905 = vmatprep.subr.mxu0 0.0
      %1906 = vmatpush1.msra.mxu0 0.0
      %1907 = vmatprep.subr.mxu0 0.0
      %1908 = vmatpush1.msra.mxu0 0.0
      %1909 = vmatprep.subr.mxu0 0.0
      %1910 = vmatpush1.msra.mxu0 0.0
      %1911 = vmatprep.subr.mxu0 0.0
      %1912 = vmatpush1.msra.mxu0 0.0
      %1913 = vmatprep.subr.mxu0 0.0
      %1914 = vmatpush1.msra.mxu0 0.0
      %1915 = vmatprep.subr.mxu0 0.0
      %1916 = vmatpush1.msra.mxu0 0.0
      %1917 = vmatprep.subr.mxu0 0.0
      %1918 = vmatpush1.msra.mxu0 0.0
      %1919 = vmatprep.subr.mxu0 0.0
      %1920 = vmatpush1.msra.mxu0 0.0
      %1921 = vmatprep.subr.mxu0 0.0
      %1922 = vmatpush1.msra.mxu0 0.0
      %1923 = vmatprep.mubr.f32.mxu0 0.0
      %v1924 = vand.u32 %v1155, 4294901760
      %1925 = vmatmul.mubr.f32.gmra.mrb[0].mxu0 %v1924
      %v1926 = vpop.f32.mrb[0].mxu0
      %v1927 = vadd.f32 %v1760, %v1926
      %v1928 = vpop.f32.mrb[0].mxu0
      %1929 = vmatprep.mubr.f32.mxu0 0.0
      %v1930 = vand.u32 %v1157, 4294901760
      %1931 = vmatmul.mubr.f32.gmra.mrb[0].mxu0 %v1930
      %v1932 = vpop.f32.mrb[0].mxu0
      %v1933 = vadd.f32 %v1768, %v1932
      %v1934 = vpop.f32.mrb[0].mxu0
      %1935 = vmatprep.mubr.f32.mxu0 0.0
      %v1936 = vand.u32 %v1159, 4294901760
      %1937 = vmatmul.mubr.f32.gmra.mrb[0].mxu0 %v1936
      %v1938 = vpop.f32.mrb[0].mxu0
      %v1939 = vadd.f32 %v1776, %v1938
      %v1940 = vpop.f32.mrb[0].mxu0
      %1941 = vmatprep.mubr.f32.mxu0 0.0
      %v1942 = vand.u32 %v1161, 4294901760
      %1943 = vmatmul.mubr.f32.gmra.mrb[0].mxu0 %v1942
      %v1944 = vpop.f32.mrb[0].mxu0
      %v1945 = vadd.f32 %v1784, %v1944
      %v1946 = vpop.f32.mrb[0].mxu0
      %1947 = vmatprep.mubr.f32.mxu0 0.0
      %v1948 = vand.u32 %v1163, 4294901760
      %1949 = vmatmul.mubr.f32.gmra.mrb[0].mxu0 %v1948
      %v1950 = vpop.f32.mrb[0].mxu0
      %v1951 = vadd.f32 %v1792, %v1950
      %v1952 = vpop.f32.mrb[0].mxu0
      %1953 = vmatprep.mubr.f32.mxu0 0.0
      %v1954 = vand.u32 %v1165, 4294901760
      %1955 = vmatmul.mubr.f32.gmra.mrb[0].mxu0 %v1954
      %v1956 = vpop.f32.mrb[0].mxu0
      %v1957 = vadd.f32 %v1800, %v1956
      %v1958 = vpop.f32.mrb[0].mxu0
      %1959 = vmatprep.mubr.f32.mxu0 0.0
      %v1960 = vand.u32 %v1167, 4294901760
      %1961 = vmatmul.mubr.f32.gmra.mrb[0].mxu0 %v1960
      %v1962 = vpop.f32.mrb[0].mxu0
      %v1963 = vadd.f32 %v1808, %v1962
      %v1964 = vpop.f32.mrb[0].mxu0
      %1965 = vdwg.mxu0
      %1966 = vmatprep.subr.mxu0 0.0
      %v1967 = vand.u32 %v1168, 4294901760
      %1968 = vmatpush1.msra.mxu0 %v1967
      %1969 = vmatprep.subr.mxu0 0.0
      %v1970 = vand.u32 %v1169, 4294901760
      %1971 = vmatpush1.msra.mxu0 %v1970
      %1972 = vmatprep.subr.mxu0 0.0
      %v1973 = vand.u32 %v1170, 4294901760
      %1974 = vmatpush1.msra.mxu0 %v1973
      %1975 = vmatprep.subr.mxu0 0.0
      %v1976 = vand.u32 %v1171, 4294901760
      %1977 = vmatpush1.msra.mxu0 %v1976
      %1978 = vmatprep.subr.mxu0 0.0
      %v1979 = vand.u32 %v1172, 4294901760
      %1980 = vmatpush1.msra.mxu0 %v1979
      %1981 = vmatprep.subr.mxu0 0.0
      %v1982 = vand.u32 %v1173, 4294901760
      %1983 = vmatpush1.msra.mxu0 %v1982
      %1984 = vmatprep.subr.mxu0 0.0
      %v1985 = vand.u32 %v1174, 4294901760
      %1986 = vmatpush1.msra.mxu0 %v1985
      %1987 = vmatprep.subr.mxu0 0.0
      %v1988 = vand.u32 %v1175, 4294901760
      %1989 = vmatpush1.msra.mxu0 %v1988
      %1990 = vmatprep.subr.mxu0 0.0
      %v1991 = vand.u32 %v1176, 4294901760
      %1992 = vmatpush1.msra.mxu0 %v1991
      %1993 = vmatprep.subr.mxu0 0.0
      %v1994 = vand.u32 %v1177, 4294901760
      %1995 = vmatpush1.msra.mxu0 %v1994
      %1996 = vmatprep.subr.mxu0 0.0
      %v1997 = vand.u32 %v1178, 4294901760
      %1998 = vmatpush1.msra.mxu0 %v1997
      %1999 = vmatprep.subr.mxu0 0.0
      %v2000 = vand.u32 %v1179, 4294901760
      %2001 = vmatpush1.msra.mxu0 %v2000
      %2002 = vmatprep.subr.mxu0 0.0
      %v2003 = vand.u32 %v1180, 4294901760
      %2004 = vmatpush1.msra.mxu0 %v2003
      %2005 = vmatprep.subr.mxu0 0.0
      %v2006 = vand.u32 %v1181, 4294901760
      %2007 = vmatpush1.msra.mxu0 %v2006
      %2008 = vmatprep.subr.mxu0 0.0
      %v2009 = vand.u32 %v1182, 4294901760
      %2010 = vmatpush1.msra.mxu0 %v2009
      %2011 = vmatprep.subr.mxu0 0.0
      %v2012 = vand.u32 %v1183, 4294901760
      %2013 = vmatpush1.msra.mxu0 %v2012
      %2014 = vmatprep.subr.mxu0 0.0
      %2015 = vmatpush1.msra.mxu0 0.0
      %2016 = vmatprep.subr.mxu0 0.0
      %2017 = vmatpush1.msra.mxu0 0.0
      %2018 = vmatprep.subr.mxu0 0.0
      %2019 = vmatpush1.msra.mxu0 0.0
      %2020 = vmatprep.subr.mxu0 0.0
      %2021 = vmatpush1.msra.mxu0 0.0
      %2022 = vmatprep.subr.mxu0 0.0
      %2023 = vmatpush1.msra.mxu0 0.0
      %2024 = vmatprep.subr.mxu0 0.0
      %2025 = vmatpush1.msra.mxu0 0.0
      %2026 = vmatprep.subr.mxu0 0.0
      %2027 = vmatpush1.msra.mxu0 0.0
      %2028 = vmatprep.subr.mxu0 0.0
      %2029 = vmatpush1.msra.mxu0 0.0
      %2030 = vmatprep.subr.mxu0 0.0
      %2031 = vmatpush1.msra.mxu0 0.0
      %2032 = vmatprep.subr.mxu0 0.0
      %2033 = vmatpush1.msra.mxu0 0.0
      %2034 = vmatprep.subr.mxu0 0.0
      %2035 = vmatpush1.msra.mxu0 0.0
      %2036 = vmatprep.subr.mxu0 0.0
      %2037 = vmatpush1.msra.mxu0 0.0
      %2038 = vmatprep.subr.mxu0 0.0
      %2039 = vmatpush1.msra.mxu0 0.0
      %2040 = vmatprep.subr.mxu0 0.0
      %2041 = vmatpush1.msra.mxu0 0.0
      %2042 = vmatprep.subr.mxu0 0.0
      %2043 = vmatpush1.msra.mxu0 0.0
      %2044 = vmatprep.subr.mxu0 0.0
      %2045 = vmatpush1.msra.mxu0 0.0
      %2046 = vmatprep.mubr.f32.mxu0 0.0
      %v2047 = vand.u32 %v1155, 4294901760
      %2048 = vmatmul.mubr.f32.gmra.mrb[0].mxu0 %v2047
      %v2049 = vpop.f32.mrb[0].mxu0
      %v2050 = vadd.f32 %v1927, %v2049
      %v2051 = vpop.f32.mrb[0].mxu0
      %2052 = vmatprep.mubr.f32.mxu0 0.0
      %v2053 = vand.u32 %v1157, 4294901760
      %2054 = vmatmul.mubr.f32.gmra.mrb[0].mxu0 %v2053
      %v2055 = vpop.f32.mrb[0].mxu0
      %v2056 = vadd.f32 %v1933, %v2055
      %v2057 = vpop.f32.mrb[0].mxu0
      %2058 = vmatprep.mubr.f32.mxu0 0.0
      %v2059 = vand.u32 %v1159, 4294901760
      %2060 = vmatmul.mubr.f32.gmra.mrb[0].mxu0 %v2059
      %v2061 = vpop.f32.mrb[0].mxu0
      %v2062 = vadd.f32 %v1939, %v2061
      %v2063 = vpop.f32.mrb[0].mxu0
      %2064 = vmatprep.mubr.f32.mxu0 0.0
      %v2065 = vand.u32 %v1161, 4294901760
      %2066 = vmatmul.mubr.f32.gmra.mrb[0].mxu0 %v2065
      %v2067 = vpop.f32.mrb[0].mxu0
      %v2068 = vadd.f32 %v1945, %v2067
      %v2069 = vpop.f32.mrb[0].mxu0
      %2070 = vmatprep.mubr.f32.mxu0 0.0
      %v2071 = vand.u32 %v1163, 4294901760
      %2072 = vmatmul.mubr.f32.gmra.mrb[0].mxu0 %v2071
      %v2073 = vpop.f32.mrb[0].mxu0
      %v2074 = vadd.f32 %v1951, %v2073
      %v2075 = vpop.f32.mrb[0].mxu0
      %2076 = vmatprep.mubr.f32.mxu0 0.0
      %v2077 = vand.u32 %v1165, 4294901760
      %2078 = vmatmul.mubr.f32.gmra.mrb[0].mxu0 %v2077
      %v2079 = vpop.f32.mrb[0].mxu0
      %v2080 = vadd.f32 %v1957, %v2079
      %v2081 = vpop.f32.mrb[0].mxu0
      %2082 = vmatprep.mubr.f32.mxu0 0.0
      %v2083 = vand.u32 %v1167, 4294901760
      %2084 = vmatmul.mubr.f32.gmra.mrb[0].mxu0 %v2083
      %v2085 = vpop.f32.mrb[0].mxu0
      %v2086 = vadd.f32 %v1963, %v2085
      %v2087 = vpop.f32.mrb[0].mxu0
      %2088 = vdwg.mxu0
      %v2089 = vmul.f32 %v2050, %v2050
      %v2090 = vmul.f32 %v2056, %v2056
      %v2091 = vmul.f32 %v2062, %v2062
      %v2092 = vmul.f32 %v2068, %v2068
      %v2093 = vmul.f32 %v2074, %v2074
      %v2094 = vmul.f32 %v2080, %v2080
      %v2095 = vmul.f32 %v2086, %v2086
      %v2096 = vlaneseq
      %v2097 = vshrl.u32 %v2096, 7
      %v2098 = vsub.s32 0, %v2097
      %v2099 = vrot.slane %v1185, %v2098
      %v2100 = vmul.f32 %v2089, %v2099
      %v2101 = vmul.f32 %v2090, %v2099
      %v2102 = vmul.f32 %v2091, %v2099
      %v2103 = vmul.f32 %v2092, %v2099
      %v2104 = vmul.f32 %v2093, %v2099
      %v2105 = vmul.f32 %v2094, %v2099
      %v2106 = vmul.f32 %v2095, %v2099
      %v2107 = vmul.f32 %v2100, 1.442695
      %v2108 = vpow.pop %v2107
      %v2109 = vmul.f32 %v2101, 1.442695
      %v2110 = vpow.pop %v2109
      %v2111 = vmul.f32 %v2102, 1.442695
      %v2112 = vpow.pop %v2111
      %v2113 = vmul.f32 %v2103, 1.442695
      %v2114 = vpow.pop %v2113
      %v2115 = vmul.f32 %v2104, 1.442695
      %v2116 = vpow.pop %v2115
      %v2117 = vmul.f32 %v2105, 1.442695
      %v2118 = vpow.pop %v2117
      %v2119 = vmul.f32 %v2106, 1.442695
      %v2120 = vpow.pop %v2119
      %v2121 = vld [vmem:[%s4] sm:$0xff]
      %v2122 = vld [vmem:[%s4 + $0x8] sm:$0xff]
      %v2123 = vld [vmem:[%s4 + $0x10] sm:$0xff]
      %v2124 = vld [vmem:[%s4 + $0x18] sm:$0xff]
      %v2125 = vld [vmem:[%s4 + $0x20] sm:$0xff]
      %v2126 = vld [vmem:[%s4 + $0x28] sm:$0xff]
      %v2127 = vld [vmem:[%s4 + $0x30] sm:$0xff]
      %v2128 = vld [vmem:[%s4 + $0x38] sm:$0xff]
      %v2129 = vld [vmem:[%s4 + $0x40] sm:$0xff]
      %v2130 = vld [vmem:[%s4 + $0x48] sm:$0xff]
      %v2131 = vld [vmem:[%s4 + $0x50] sm:$0xff]
      %v2132 = vld [vmem:[%s4 + $0x58] sm:$0xff]
      %v2133 = vld [vmem:[%s4 + $0x60] sm:$0xff]
      %v2134 = vld [vmem:[%s4 + $0x68] sm:$0xff]
      %v2135 = vld [vmem:[%s4 + $0x70] sm:$0xff]
      %v2136 = vld [vmem:[%s4 + $0x78] sm:$0xff]
      %v2137 = vld [vmem:[%s7 + $0x4] sm:$0x1]
      %v2138 = vld [vmem:[%s7 + $0x5] sm:$0x1]
      %v2139 = vlaneseq
      %v2140 = vshrl.u32 %v2139, 7
      %v2141 = vsub.s32 0, %v2140
      %v2142 = vrot.slane %v2137, %v2141
      %2143 = vmatprep.subr.mxu0 0.0
      %v2144 = vand.u32 %v2121, 4294901760
      %2145 = vmatpush1.msra.mxu0 %v2144
      %2146 = vmatprep.subr.mxu0 0.0
      %v2147 = vand.u32 %v2122, 4294901760
      %2148 = vmatpush1.msra.mxu0 %v2147
      %2149 = vmatprep.subr.mxu0 0.0
      %v2150 = vand.u32 %v2123, 4294901760
      %2151 = vmatpush1.msra.mxu0 %v2150
      %2152 = vmatprep.subr.mxu0 0.0
      %v2153 = vand.u32 %v2124, 4294901760
      %2154 = vmatpush1.msra.mxu0 %v2153
      %2155 = vmatprep.subr.mxu0 0.0
      %v2156 = vand.u32 %v2125, 4294901760
      %2157 = vmatpush1.msra.mxu0 %v2156
      %2158 = vmatprep.subr.mxu0 0.0
      %v2159 = vand.u32 %v2126, 4294901760
      %2160 = vmatpush1.msra.mxu0 %v2159
      %2161 = vmatprep.subr.mxu0 0.0
      %v2162 = vand.u32 %v2127, 4294901760
      %2163 = vmatpush1.msra.mxu0 %v2162
      %2164 = vmatprep.subr.mxu0 0.0
      %v2165 = vand.u32 %v2128, 4294901760
      %2166 = vmatpush1.msra.mxu0 %v2165
      %2167 = vmatprep.subr.mxu0 0.0
      %v2168 = vand.u32 %v2129, 4294901760
      %2169 = vmatpush1.msra.mxu0 %v2168
      %2170 = vmatprep.subr.mxu0 0.0
      %v2171 = vand.u32 %v2130, 4294901760
      %2172 = vmatpush1.msra.mxu0 %v2171
      %2173 = vmatprep.subr.mxu0 0.0
      %v2174 = vand.u32 %v2131, 4294901760
      %2175 = vmatpush1.msra.mxu0 %v2174
      %2176 = vmatprep.subr.mxu0 0.0
      %v2177 = vand.u32 %v2132, 4294901760
      %2178 = vmatpush1.msra.mxu0 %v2177
      %2179 = vmatprep.subr.mxu0 0.0
      %v2180 = vand.u32 %v2133, 4294901760
      %2181 = vmatpush1.msra.mxu0 %v2180
      %2182 = vmatprep.subr.mxu0 0.0
      %v2183 = vand.u32 %v2134, 4294901760
      %2184 = vmatpush1.msra.mxu0 %v2183
      %2185 = vmatprep.subr.mxu0 0.0
      %v2186 = vand.u32 %v2135, 4294901760
      %2187 = vmatpush1.msra.mxu0 %v2186
      %2188 = vmatprep.subr.mxu0 0.0
      %v2189 = vand.u32 %v2136, 4294901760
      %2190 = vmatpush1.msra.mxu0 %v2189
      %2191 = vmatprep.subr.mxu0 0.0
      %2192 = vmatpush1.msra.mxu0 0.0
      %2193 = vmatprep.subr.mxu0 0.0
      %2194 = vmatpush1.msra.mxu0 0.0
      %2195 = vmatprep.subr.mxu0 0.0
      %2196 = vmatpush1.msra.mxu0 0.0
      %2197 = vmatprep.subr.mxu0 0.0
      %2198 = vmatpush1.msra.mxu0 0.0
      %2199 = vmatprep.subr.mxu0 0.0
      %2200 = vmatpush1.msra.mxu0 0.0
      %2201 = vmatprep.subr.mxu0 0.0
      %2202 = vmatpush1.msra.mxu0 0.0
      %2203 = vmatprep.subr.mxu0 0.0
      %2204 = vmatpush1.msra.mxu0 0.0
      %2205 = vmatprep.subr.mxu0 0.0
      %2206 = vmatpush1.msra.mxu0 0.0
      %2207 = vmatprep.subr.mxu0 0.0
      %2208 = vmatpush1.msra.mxu0 0.0
      %2209 = vmatprep.subr.mxu0 0.0
      %2210 = vmatpush1.msra.mxu0 0.0
      %2211 = vmatprep.subr.mxu0 0.0
      %2212 = vmatpush1.msra.mxu0 0.0
      %2213 = vmatprep.subr.mxu0 0.0
      %2214 = vmatpush1.msra.mxu0 0.0
      %2215 = vmatprep.subr.mxu0 0.0
      %2216 = vmatpush1.msra.mxu0 0.0
      %2217 = vmatprep.subr.mxu0 0.0
      %2218 = vmatpush1.msra.mxu0 0.0
      %2219 = vmatprep.subr.mxu0 0.0
      %2220 = vmatpush1.msra.mxu0 0.0
      %2221 = vmatprep.subr.mxu0 0.0
      %2222 = vmatpush1.msra.mxu0 0.0
      %2223 = vmatprep.mubr.f32.mxu0 0.0
      %v2224 = vand.u32 %v2108, 4294901760
      %v2225 = vsub.f32 %v2108, %v2224
      %v2226 = vand.u32 %v2225, 4294901760
      %v2227 = vsub.f32 %v2225, %v2226
      %v2228 = vand.u32 %v2227, 4294901760
      %2229 = vmatmul.mubr.f32.gmra.mrb[0].mxu0 %v2228
      %v2230 = vpop.f32.mrb[0].mxu0
      %v2231 = vadd.f32 %v2142, %v2230
      %v2232 = vpop.f32.mrb[0].mxu0
      %2233 = vmatprep.mubr.f32.mxu0 0.0
      %v2234 = vand.u32 %v2110, 4294901760
      %v2235 = vsub.f32 %v2110, %v2234
      %v2236 = vand.u32 %v2235, 4294901760
      %v2237 = vsub.f32 %v2235, %v2236
      %v2238 = vand.u32 %v2237, 4294901760
      %2239 = vmatmul.mubr.f32.gmra.mrb[0].mxu0 %v2238
      %v2240 = vpop.f32.mrb[0].mxu0
      %v2241 = vadd.f32 %v2142, %v2240
      %v2242 = vpop.f32.mrb[0].mxu0
      %2243 = vmatprep.mubr.f32.mxu0 0.0
      %v2244 = vand.u32 %v2112, 4294901760
      %v2245 = vsub.f32 %v2112, %v2244
      %v2246 = vand.u32 %v2245, 4294901760
      %v2247 = vsub.f32 %v2245, %v2246
      %v2248 = vand.u32 %v2247, 4294901760
      %2249 = vmatmul.mubr.f32.gmra.mrb[0].mxu0 %v2248
      %v2250 = vpop.f32.mrb[0].mxu0
      %v2251 = vadd.f32 %v2142, %v2250
      %v2252 = vpop.f32.mrb[0].mxu0
      %2253 = vmatprep.mubr.f32.mxu0 0.0
      %v2254 = vand.u32 %v2114, 4294901760
      %v2255 = vsub.f32 %v2114, %v2254
      %v2256 = vand.u32 %v2255, 4294901760
      %v2257 = vsub.f32 %v2255, %v2256
      %v2258 = vand.u32 %v2257, 4294901760
      %2259 = vmatmul.mubr.f32.gmra.mrb[0].mxu0 %v2258
      %v2260 = vpop.f32.mrb[0].mxu0
      %v2261 = vadd.f32 %v2142, %v2260
      %v2262 = vpop.f32.mrb[0].mxu0
      %2263 = vmatprep.mubr.f32.mxu0 0.0
      %v2264 = vand.u32 %v2116, 4294901760
      %v2265 = vsub.f32 %v2116, %v2264
      %v2266 = vand.u32 %v2265, 4294901760
      %v2267 = vsub.f32 %v2265, %v2266
      %v2268 = vand.u32 %v2267, 4294901760
      %2269 = vmatmul.mubr.f32.gmra.mrb[0].mxu0 %v2268
      %v2270 = vpop.f32.mrb[0].mxu0
      %v2271 = vadd.f32 %v2142, %v2270
      %v2272 = vpop.f32.mrb[0].mxu0
      %2273 = vmatprep.mubr.f32.mxu0 0.0
      %v2274 = vand.u32 %v2118, 4294901760
      %v2275 = vsub.f32 %v2118, %v2274
      %v2276 = vand.u32 %v2275, 4294901760
      %v2277 = vsub.f32 %v2275, %v2276
      %v2278 = vand.u32 %v2277, 4294901760
      %2279 = vmatmul.mubr.f32.gmra.mrb[0].mxu0 %v2278
      %v2280 = vpop.f32.mrb[0].mxu0
      %v2281 = vadd.f32 %v2142, %v2280
      %v2282 = vpop.f32.mrb[0].mxu0
      %2283 = vmatprep.mubr.f32.mxu0 0.0
      %v2284 = vand.u32 %v2120, 4294901760
      %v2285 = vsub.f32 %v2120, %v2284
      %v2286 = vand.u32 %v2285, 4294901760
      %v2287 = vsub.f32 %v2285, %v2286
      %v2288 = vand.u32 %v2287, 4294901760
      %2289 = vmatmul.mubr.f32.gmra.mrb[0].mxu0 %v2288
      %v2290 = vpop.f32.mrb[0].mxu0
      %v2291 = vadd.f32 %v2142, %v2290
      %v2292 = vpop.f32.mrb[0].mxu0
      %2293 = vdwg.mxu0
      %2294 = vmatprep.subr.mxu0 0.0
      %v2295 = vand.u32 %v2121, 4294901760
      %v2296 = vsub.f32 %v2121, %v2295
      %v2297 = vand.u32 %v2296, 4294901760
      %v2298 = vsub.f32 %v2296, %v2297
      %v2299 = vand.u32 %v2298, 4294901760
      %2300 = vmatpush1.msra.mxu0 %v2299
      %2301 = vmatprep.subr.mxu0 0.0
      %v2302 = vand.u32 %v2122, 4294901760
      %v2303 = vsub.f32 %v2122, %v2302
      %v2304 = vand.u32 %v2303, 4294901760
      %v2305 = vsub.f32 %v2303, %v2304
      %v2306 = vand.u32 %v2305, 4294901760
      %2307 = vmatpush1.msra.mxu0 %v2306
      %2308 = vmatprep.subr.mxu0 0.0
      %v2309 = vand.u32 %v2123, 4294901760
      %v2310 = vsub.f32 %v2123, %v2309
      %v2311 = vand.u32 %v2310, 4294901760
      %v2312 = vsub.f32 %v2310, %v2311
      %v2313 = vand.u32 %v2312, 4294901760
      %2314 = vmatpush1.msra.mxu0 %v2313
      %2315 = vmatprep.subr.mxu0 0.0
      %v2316 = vand.u32 %v2124, 4294901760
      %v2317 = vsub.f32 %v2124, %v2316
      %v2318 = vand.u32 %v2317, 4294901760
      %v2319 = vsub.f32 %v2317, %v2318
      %v2320 = vand.u32 %v2319, 4294901760
      %2321 = vmatpush1.msra.mxu0 %v2320
      %2322 = vmatprep.subr.mxu0 0.0
      %v2323 = vand.u32 %v2125, 4294901760
      %v2324 = vsub.f32 %v2125, %v2323
      %v2325 = vand.u32 %v2324, 4294901760
      %v2326 = vsub.f32 %v2324, %v2325
      %v2327 = vand.u32 %v2326, 4294901760
      %2328 = vmatpush1.msra.mxu0 %v2327
      %2329 = vmatprep.subr.mxu0 0.0
      %v2330 = vand.u32 %v2126, 4294901760
      %v2331 = vsub.f32 %v2126, %v2330
      %v2332 = vand.u32 %v2331, 4294901760
      %v2333 = vsub.f32 %v2331, %v2332
      %v2334 = vand.u32 %v2333, 4294901760
      %2335 = vmatpush1.msra.mxu0 %v2334
      %2336 = vmatprep.subr.mxu0 0.0
      %v2337 = vand.u32 %v2127, 4294901760
      %v2338 = vsub.f32 %v2127, %v2337
      %v2339 = vand.u32 %v2338, 4294901760
      %v2340 = vsub.f32 %v2338, %v2339
      %v2341 = vand.u32 %v2340, 4294901760
      %2342 = vmatpush1.msra.mxu0 %v2341
      %2343 = vmatprep.subr.mxu0 0.0
      %v2344 = vand.u32 %v2128, 4294901760
      %v2345 = vsub.f32 %v2128, %v2344
      %v2346 = vand.u32 %v2345, 4294901760
      %v2347 = vsub.f32 %v2345, %v2346
      %v2348 = vand.u32 %v2347, 4294901760
      %2349 = vmatpush1.msra.mxu0 %v2348
      %2350 = vmatprep.subr.mxu0 0.0
      %v2351 = vand.u32 %v2129, 4294901760
      %v2352 = vsub.f32 %v2129, %v2351
      %v2353 = vand.u32 %v2352, 4294901760
      %v2354 = vsub.f32 %v2352, %v2353
      %v2355 = vand.u32 %v2354, 4294901760
      %2356 = vmatpush1.msra.mxu0 %v2355
      %2357 = vmatprep.subr.mxu0 0.0
      %v2358 = vand.u32 %v2130, 4294901760
      %v2359 = vsub.f32 %v2130, %v2358
      %v2360 = vand.u32 %v2359, 4294901760
      %v2361 = vsub.f32 %v2359, %v2360
      %v2362 = vand.u32 %v2361, 4294901760
      %2363 = vmatpush1.msra.mxu0 %v2362
      %2364 = vmatprep.subr.mxu0 0.0
      %v2365 = vand.u32 %v2131, 4294901760
      %v2366 = vsub.f32 %v2131, %v2365
      %v2367 = vand.u32 %v2366, 4294901760
      %v2368 = vsub.f32 %v2366, %v2367
      %v2369 = vand.u32 %v2368, 4294901760
      %2370 = vmatpush1.msra.mxu0 %v2369
      %2371 = vmatprep.subr.mxu0 0.0
      %v2372 = vand.u32 %v2132, 4294901760
      %v2373 = vsub.f32 %v2132, %v2372
      %v2374 = vand.u32 %v2373, 4294901760
      %v2375 = vsub.f32 %v2373, %v2374
      %v2376 = vand.u32 %v2375, 4294901760
      %2377 = vmatpush1.msra.mxu0 %v2376
      %2378 = vmatprep.subr.mxu0 0.0
      %v2379 = vand.u32 %v2133, 4294901760
      %v2380 = vsub.f32 %v2133, %v2379
      %v2381 = vand.u32 %v2380, 4294901760
      %v2382 = vsub.f32 %v2380, %v2381
      %v2383 = vand.u32 %v2382, 4294901760
      %2384 = vmatpush1.msra.mxu0 %v2383
      %2385 = vmatprep.subr.mxu0 0.0
      %v2386 = vand.u32 %v2134, 4294901760
      %v2387 = vsub.f32 %v2134, %v2386
      %v2388 = vand.u32 %v2387, 4294901760
      %v2389 = vsub.f32 %v2387, %v2388
      %v2390 = vand.u32 %v2389, 4294901760
      %2391 = vmatpush1.msra.mxu0 %v2390
      %2392 = vmatprep.subr.mxu0 0.0
      %v2393 = vand.u32 %v2135, 4294901760
      %v2394 = vsub.f32 %v2135, %v2393
      %v2395 = vand.u32 %v2394, 4294901760
      %v2396 = vsub.f32 %v2394, %v2395
      %v2397 = vand.u32 %v2396, 4294901760
      %2398 = vmatpush1.msra.mxu0 %v2397
      %2399 = vmatprep.subr.mxu0 0.0
      %v2400 = vand.u32 %v2136, 4294901760
      %v2401 = vsub.f32 %v2136, %v2400
      %v2402 = vand.u32 %v2401, 4294901760
      %v2403 = vsub.f32 %v2401, %v2402
      %v2404 = vand.u32 %v2403, 4294901760
      %2405 = vmatpush1.msra.mxu0 %v2404
      %2406 = vmatprep.subr.mxu0 0.0
      %2407 = vmatpush1.msra.mxu0 0.0
      %2408 = vmatprep.subr.mxu0 0.0
      %2409 = vmatpush1.msra.mxu0 0.0
      %2410 = vmatprep.subr.mxu0 0.0
      %2411 = vmatpush1.msra.mxu0 0.0
      %2412 = vmatprep.subr.mxu0 0.0
      %2413 = vmatpush1.msra.mxu0 0.0
      %2414 = vmatprep.subr.mxu0 0.0
      %2415 = vmatpush1.msra.mxu0 0.0
      %2416 = vmatprep.subr.mxu0 0.0
      %2417 = vmatpush1.msra.mxu0 0.0
      %2418 = vmatprep.subr.mxu0 0.0
      %2419 = vmatpush1.msra.mxu0 0.0
      %2420 = vmatprep.subr.mxu0 0.0
      %2421 = vmatpush1.msra.mxu0 0.0
      %2422 = vmatprep.subr.mxu0 0.0
      %2423 = vmatpush1.msra.mxu0 0.0
      %2424 = vmatprep.subr.mxu0 0.0
      %2425 = vmatpush1.msra.mxu0 0.0
      %2426 = vmatprep.subr.mxu0 0.0
      %2427 = vmatpush1.msra.mxu0 0.0
      %2428 = vmatprep.subr.mxu0 0.0
      %2429 = vmatpush1.msra.mxu0 0.0
      %2430 = vmatprep.subr.mxu0 0.0
      %2431 = vmatpush1.msra.mxu0 0.0
      %2432 = vmatprep.subr.mxu0 0.0
      %2433 = vmatpush1.msra.mxu0 0.0
      %2434 = vmatprep.subr.mxu0 0.0
      %2435 = vmatpush1.msra.mxu0 0.0
      %2436 = vmatprep.subr.mxu0 0.0
      %2437 = vmatpush1.msra.mxu0 0.0
      %2438 = vmatprep.mubr.f32.mxu0 0.0
      %v2439 = vand.u32 %v2108, 4294901760
      %2440 = vmatmul.mubr.f32.gmra.mrb[0].mxu0 %v2439
      %v2441 = vpop.f32.mrb[0].mxu0
      %v2442 = vadd.f32 %v2231, %v2441
      %v2443 = vpop.f32.mrb[0].mxu0
      %2444 = vmatprep.mubr.f32.mxu0 0.0
      %v2445 = vand.u32 %v2110, 4294901760
      %2446 = vmatmul.mubr.f32.gmra.mrb[0].mxu0 %v2445
      %v2447 = vpop.f32.mrb[0].mxu0
      %v2448 = vadd.f32 %v2241, %v2447
      %v2449 = vpop.f32.mrb[0].mxu0
      %2450 = vmatprep.mubr.f32.mxu0 0.0
      %v2451 = vand.u32 %v2112, 4294901760
      %2452 = vmatmul.mubr.f32.gmra.mrb[0].mxu0 %v2451
      %v2453 = vpop.f32.mrb[0].mxu0
      %v2454 = vadd.f32 %v2251, %v2453
      %v2455 = vpop.f32.mrb[0].mxu0
      %2456 = vmatprep.mubr.f32.mxu0 0.0
      %v2457 = vand.u32 %v2114, 4294901760
      %2458 = vmatmul.mubr.f32.gmra.mrb[0].mxu0 %v2457
      %v2459 = vpop.f32.mrb[0].mxu0
      %v2460 = vadd.f32 %v2261, %v2459
      %v2461 = vpop.f32.mrb[0].mxu0
      %2462 = vmatprep.mubr.f32.mxu0 0.0
      %v2463 = vand.u32 %v2116, 4294901760
      %2464 = vmatmul.mubr.f32.gmra.mrb[0].mxu0 %v2463
      %v2465 = vpop.f32.mrb[0].mxu0
      %v2466 = vadd.f32 %v2271, %v2465
      %v2467 = vpop.f32.mrb[0].mxu0
      %2468 = vmatprep.mubr.f32.mxu0 0.0
      %v2469 = vand.u32 %v2118, 4294901760
      %2470 = vmatmul.mubr.f32.gmra.mrb[0].mxu0 %v2469
      %v2471 = vpop.f32.mrb[0].mxu0
      %v2472 = vadd.f32 %v2281, %v2471
      %v2473 = vpop.f32.mrb[0].mxu0
      %2474 = vmatprep.mubr.f32.mxu0 0.0
      %v2475 = vand.u32 %v2120, 4294901760
      %2476 = vmatmul.mubr.f32.gmra.mrb[0].mxu0 %v2475
      %v2477 = vpop.f32.mrb[0].mxu0
      %v2478 = vadd.f32 %v2291, %v2477
      %v2479 = vpop.f32.mrb[0].mxu0
      %2480 = vdwg.mxu0
      %2481 = vmatprep.subr.mxu0 0.0
      %v2482 = vand.u32 %v2121, 4294901760
      %v2483 = vsub.f32 %v2121, %v2482
      %2484 = vmatpush1.msra.mxu0 %v2483
      %2485 = vmatprep.subr.mxu0 0.0
      %v2486 = vand.u32 %v2122, 4294901760
      %v2487 = vsub.f32 %v2122, %v2486
      %2488 = vmatpush1.msra.mxu0 %v2487
      %2489 = vmatprep.subr.mxu0 0.0
      %v2490 = vand.u32 %v2123, 4294901760
      %v2491 = vsub.f32 %v2123, %v2490
      %2492 = vmatpush1.msra.mxu0 %v2491
      %2493 = vmatprep.subr.mxu0 0.0
      %v2494 = vand.u32 %v2124, 4294901760
      %v2495 = vsub.f32 %v2124, %v2494
      %2496 = vmatpush1.msra.mxu0 %v2495
      %2497 = vmatprep.subr.mxu0 0.0
      %v2498 = vand.u32 %v2125, 4294901760
      %v2499 = vsub.f32 %v2125, %v2498
      %2500 = vmatpush1.msra.mxu0 %v2499
      %2501 = vmatprep.subr.mxu0 0.0
      %v2502 = vand.u32 %v2126, 4294901760
      %v2503 = vsub.f32 %v2126, %v2502
      %2504 = vmatpush1.msra.mxu0 %v2503
      %2505 = vmatprep.subr.mxu0 0.0
      %v2506 = vand.u32 %v2127, 4294901760
      %v2507 = vsub.f32 %v2127, %v2506
      %2508 = vmatpush1.msra.mxu0 %v2507
      %2509 = vmatprep.subr.mxu0 0.0
      %v2510 = vand.u32 %v2128, 4294901760
      %v2511 = vsub.f32 %v2128, %v2510
      %2512 = vmatpush1.msra.mxu0 %v2511
      %2513 = vmatprep.subr.mxu0 0.0
      %v2514 = vand.u32 %v2129, 4294901760
      %v2515 = vsub.f32 %v2129, %v2514
      %2516 = vmatpush1.msra.mxu0 %v2515
      %2517 = vmatprep.subr.mxu0 0.0
      %v2518 = vand.u32 %v2130, 4294901760
      %v2519 = vsub.f32 %v2130, %v2518
      %2520 = vmatpush1.msra.mxu0 %v2519
      %2521 = vmatprep.subr.mxu0 0.0
      %v2522 = vand.u32 %v2131, 4294901760
      %v2523 = vsub.f32 %v2131, %v2522
      %2524 = vmatpush1.msra.mxu0 %v2523
      %2525 = vmatprep.subr.mxu0 0.0
      %v2526 = vand.u32 %v2132, 4294901760
      %v2527 = vsub.f32 %v2132, %v2526
      %2528 = vmatpush1.msra.mxu0 %v2527
      %2529 = vmatprep.subr.mxu0 0.0
      %v2530 = vand.u32 %v2133, 4294901760
      %v2531 = vsub.f32 %v2133, %v2530
      %2532 = vmatpush1.msra.mxu0 %v2531
      %2533 = vmatprep.subr.mxu0 0.0
      %v2534 = vand.u32 %v2134, 4294901760
      %v2535 = vsub.f32 %v2134, %v2534
      %2536 = vmatpush1.msra.mxu0 %v2535
      %2537 = vmatprep.subr.mxu0 0.0
      %v2538 = vand.u32 %v2135, 4294901760
      %v2539 = vsub.f32 %v2135, %v2538
      %2540 = vmatpush1.msra.mxu0 %v2539
      %2541 = vmatprep.subr.mxu0 0.0
      %v2542 = vand.u32 %v2136, 4294901760
      %v2543 = vsub.f32 %v2136, %v2542
      %2544 = vmatpush1.msra.mxu0 %v2543
      %2545 = vmatprep.subr.mxu0 0.0
      %2546 = vmatpush1.msra.mxu0 0.0
      %2547 = vmatprep.subr.mxu0 0.0
      %2548 = vmatpush1.msra.mxu0 0.0
      %2549 = vmatprep.subr.mxu0 0.0
      %2550 = vmatpush1.msra.mxu0 0.0
      %2551 = vmatprep.subr.mxu0 0.0
      %2552 = vmatpush1.msra.mxu0 0.0
      %2553 = vmatprep.subr.mxu0 0.0
      %2554 = vmatpush1.msra.mxu0 0.0
      %2555 = vmatprep.subr.mxu0 0.0
      %2556 = vmatpush1.msra.mxu0 0.0
      %2557 = vmatprep.subr.mxu0 0.0
      %2558 = vmatpush1.msra.mxu0 0.0
      %2559 = vmatprep.subr.mxu0 0.0
      %2560 = vmatpush1.msra.mxu0 0.0
      %2561 = vmatprep.subr.mxu0 0.0
      %2562 = vmatpush1.msra.mxu0 0.0
      %2563 = vmatprep.subr.mxu0 0.0
      %2564 = vmatpush1.msra.mxu0 0.0
      %2565 = vmatprep.subr.mxu0 0.0
      %2566 = vmatpush1.msra.mxu0 0.0
      %2567 = vmatprep.subr.mxu0 0.0
      %2568 = vmatpush1.msra.mxu0 0.0
      %2569 = vmatprep.subr.mxu0 0.0
      %2570 = vmatpush1.msra.mxu0 0.0
      %2571 = vmatprep.subr.mxu0 0.0
      %2572 = vmatpush1.msra.mxu0 0.0
      %2573 = vmatprep.subr.mxu0 0.0
      %2574 = vmatpush1.msra.mxu0 0.0
      %2575 = vmatprep.subr.mxu0 0.0
      %2576 = vmatpush1.msra.mxu0 0.0
      %2577 = vmatprep.mubr.f32.mxu0 0.0
      %v2578 = vand.u32 %v2108, 4294901760
      %v2579 = vsub.f32 %v2108, %v2578
      %2580 = vmatmul.mubr.f32.gmra.mrb[0].mxu0 %v2579
      %v2581 = vpop.f32.mrb[0].mxu0
      %v2582 = vadd.f32 %v2442, %v2581
      %v2583 = vpop.f32.mrb[0].mxu0
      %2584 = vmatprep.mubr.f32.mxu0 0.0
      %v2585 = vand.u32 %v2110, 4294901760
      %v2586 = vsub.f32 %v2110, %v2585
      %2587 = vmatmul.mubr.f32.gmra.mrb[0].mxu0 %v2586
      %v2588 = vpop.f32.mrb[0].mxu0
      %v2589 = vadd.f32 %v2448, %v2588
      %v2590 = vpop.f32.mrb[0].mxu0
      %2591 = vmatprep.mubr.f32.mxu0 0.0
      %v2592 = vand.u32 %v2112, 4294901760
      %v2593 = vsub.f32 %v2112, %v2592
      %2594 = vmatmul.mubr.f32.gmra.mrb[0].mxu0 %v2593
      %v2595 = vpop.f32.mrb[0].mxu0
      %v2596 = vadd.f32 %v2454, %v2595
      %v2597 = vpop.f32.mrb[0].mxu0
      %2598 = vmatprep.mubr.f32.mxu0 0.0
      %v2599 = vand.u32 %v2114, 4294901760
      %v2600 = vsub.f32 %v2114, %v2599
      %2601 = vmatmul.mubr.f32.gmra.mrb[0].mxu0 %v2600
      %v2602 = vpop.f32.mrb[0].mxu0
      %v2603 = vadd.f32 %v2460, %v2602
      %v2604 = vpop.f32.mrb[0].mxu0
      %2605 = vmatprep.mubr.f32.mxu0 0.0
      %v2606 = vand.u32 %v2116, 4294901760
      %v2607 = vsub.f32 %v2116, %v2606
      %2608 = vmatmul.mubr.f32.gmra.mrb[0].mxu0 %v2607
      %v2609 = vpop.f32.mrb[0].mxu0
      %v2610 = vadd.f32 %v2466, %v2609
      %v2611 = vpop.f32.mrb[0].mxu0
      %2612 = vmatprep.mubr.f32.mxu0 0.0
      %v2613 = vand.u32 %v2118, 4294901760
      %v2614 = vsub.f32 %v2118, %v2613
      %2615 = vmatmul.mubr.f32.gmra.mrb[0].mxu0 %v2614
      %v2616 = vpop.f32.mrb[0].mxu0
      %v2617 = vadd.f32 %v2472, %v2616
      %v2618 = vpop.f32.mrb[0].mxu0
      %2619 = vmatprep.mubr.f32.mxu0 0.0
      %v2620 = vand.u32 %v2120, 4294901760
      %v2621 = vsub.f32 %v2120, %v2620
      %2622 = vmatmul.mubr.f32.gmra.mrb[0].mxu0 %v2621
      %v2623 = vpop.f32.mrb[0].mxu0
      %v2624 = vadd.f32 %v2478, %v2623
      %v2625 = vpop.f32.mrb[0].mxu0
      %2626 = vdwg.mxu0
      %2627 = vmatprep.subr.mxu0 0.0
      %v2628 = vand.u32 %v2121, 4294901760
      %2629 = vmatpush1.msra.mxu0 %v2628
      %2630 = vmatprep.subr.mxu0 0.0
      %v2631 = vand.u32 %v2122, 4294901760
      %2632 = vmatpush1.msra.mxu0 %v2631
      %2633 = vmatprep.subr.mxu0 0.0
      %v2634 = vand.u32 %v2123, 4294901760
      %2635 = vmatpush1.msra.mxu0 %v2634
      %2636 = vmatprep.subr.mxu0 0.0
      %v2637 = vand.u32 %v2124, 4294901760
      %2638 = vmatpush1.msra.mxu0 %v2637
      %2639 = vmatprep.subr.mxu0 0.0
      %v2640 = vand.u32 %v2125, 4294901760
      %2641 = vmatpush1.msra.mxu0 %v2640
      %2642 = vmatprep.subr.mxu0 0.0
      %v2643 = vand.u32 %v2126, 4294901760
      %2644 = vmatpush1.msra.mxu0 %v2643
      %2645 = vmatprep.subr.mxu0 0.0
      %v2646 = vand.u32 %v2127, 4294901760
      %2647 = vmatpush1.msra.mxu0 %v2646
      %2648 = vmatprep.subr.mxu0 0.0
      %v2649 = vand.u32 %v2128, 4294901760
      %2650 = vmatpush1.msra.mxu0 %v2649
      %2651 = vmatprep.subr.mxu0 0.0
      %v2652 = vand.u32 %v2129, 4294901760
      %2653 = vmatpush1.msra.mxu0 %v2652
      %2654 = vmatprep.subr.mxu0 0.0
      %v2655 = vand.u32 %v2130, 4294901760
      %2656 = vmatpush1.msra.mxu0 %v2655
      %2657 = vmatprep.subr.mxu0 0.0
      %v2658 = vand.u32 %v2131, 4294901760
      %2659 = vmatpush1.msra.mxu0 %v2658
      %2660 = vmatprep.subr.mxu0 0.0
      %v2661 = vand.u32 %v2132, 4294901760
      %2662 = vmatpush1.msra.mxu0 %v2661
      %2663 = vmatprep.subr.mxu0 0.0
      %v2664 = vand.u32 %v2133, 4294901760
      %2665 = vmatpush1.msra.mxu0 %v2664
      %2666 = vmatprep.subr.mxu0 0.0
      %v2667 = vand.u32 %v2134, 4294901760
      %2668 = vmatpush1.msra.mxu0 %v2667
      %2669 = vmatprep.subr.mxu0 0.0
      %v2670 = vand.u32 %v2135, 4294901760
      %2671 = vmatpush1.msra.mxu0 %v2670
      %2672 = vmatprep.subr.mxu0 0.0
      %v2673 = vand.u32 %v2136, 4294901760
      %2674 = vmatpush1.msra.mxu0 %v2673
      %2675 = vmatprep.subr.mxu0 0.0
      %2676 = vmatpush1.msra.mxu0 0.0
      %2677 = vmatprep.subr.mxu0 0.0
      %2678 = vmatpush1.msra.mxu0 0.0
      %2679 = vmatprep.subr.mxu0 0.0
      %2680 = vmatpush1.msra.mxu0 0.0
      %2681 = vmatprep.subr.mxu0 0.0
      %2682 = vmatpush1.msra.mxu0 0.0
      %2683 = vmatprep.subr.mxu0 0.0
      %2684 = vmatpush1.msra.mxu0 0.0
      %2685 = vmatprep.subr.mxu0 0.0
      %2686 = vmatpush1.msra.mxu0 0.0
      %2687 = vmatprep.subr.mxu0 0.0
      %2688 = vmatpush1.msra.mxu0 0.0
      %2689 = vmatprep.subr.mxu0 0.0
      %2690 = vmatpush1.msra.mxu0 0.0
      %2691 = vmatprep.subr.mxu0 0.0
      %2692 = vmatpush1.msra.mxu0 0.0
      %2693 = vmatprep.subr.mxu0 0.0
      %2694 = vmatpush1.msra.mxu0 0.0
      %2695 = vmatprep.subr.mxu0 0.0
      %2696 = vmatpush1.msra.mxu0 0.0
      %2697 = vmatprep.subr.mxu0 0.0
      %2698 = vmatpush1.msra.mxu0 0.0
      %2699 = vmatprep.subr.mxu0 0.0
      %2700 = vmatpush1.msra.mxu0 0.0
      %2701 = vmatprep.subr.mxu0 0.0
      %2702 = vmatpush1.msra.mxu0 0.0
      %2703 = vmatprep.subr.mxu0 0.0
      %2704 = vmatpush1.msra.mxu0 0.0
      %2705 = vmatprep.subr.mxu0 0.0
      %2706 = vmatpush1.msra.mxu0 0.0
      %2707 = vmatprep.mubr.f32.mxu0 0.0
      %v2708 = vand.u32 %v2108, 4294901760
      %v2709 = vsub.f32 %v2108, %v2708
      %v2710 = vand.u32 %v2709, 4294901760
      %2711 = vmatmul.mubr.f32.gmra.mrb[0].mxu0 %v2710
      %v2712 = vpop.f32.mrb[0].mxu0
      %v2713 = vadd.f32 %v2582, %v2712
      %v2714 = vpop.f32.mrb[0].mxu0
      %2715 = vmatprep.mubr.f32.mxu0 0.0
      %v2716 = vand.u32 %v2110, 4294901760
      %v2717 = vsub.f32 %v2110, %v2716
      %v2718 = vand.u32 %v2717, 4294901760
      %2719 = vmatmul.mubr.f32.gmra.mrb[0].mxu0 %v2718
      %v2720 = vpop.f32.mrb[0].mxu0
      %v2721 = vadd.f32 %v2589, %v2720
      %v2722 = vpop.f32.mrb[0].mxu0
      %2723 = vmatprep.mubr.f32.mxu0 0.0
      %v2724 = vand.u32 %v2112, 4294901760
      %v2725 = vsub.f32 %v2112, %v2724
      %v2726 = vand.u32 %v2725, 4294901760
      %2727 = vmatmul.mubr.f32.gmra.mrb[0].mxu0 %v2726
      %v2728 = vpop.f32.mrb[0].mxu0
      %v2729 = vadd.f32 %v2596, %v2728
      %v2730 = vpop.f32.mrb[0].mxu0
      %2731 = vmatprep.mubr.f32.mxu0 0.0
      %v2732 = vand.u32 %v2114, 4294901760
      %v2733 = vsub.f32 %v2114, %v2732
      %v2734 = vand.u32 %v2733, 4294901760
      %2735 = vmatmul.mubr.f32.gmra.mrb[0].mxu0 %v2734
      %v2736 = vpop.f32.mrb[0].mxu0
      %v2737 = vadd.f32 %v2603, %v2736
      %v2738 = vpop.f32.mrb[0].mxu0
      %2739 = vmatprep.mubr.f32.mxu0 0.0
      %v2740 = vand.u32 %v2116, 4294901760
      %v2741 = vsub.f32 %v2116, %v2740
      %v2742 = vand.u32 %v2741, 4294901760
      %2743 = vmatmul.mubr.f32.gmra.mrb[0].mxu0 %v2742
      %v2744 = vpop.f32.mrb[0].mxu0
      %v2745 = vadd.f32 %v2610, %v2744
      %v2746 = vpop.f32.mrb[0].mxu0
      %2747 = vmatprep.mubr.f32.mxu0 0.0
      %v2748 = vand.u32 %v2118, 4294901760
      %v2749 = vsub.f32 %v2118, %v2748
      %v2750 = vand.u32 %v2749, 4294901760
      %2751 = vmatmul.mubr.f32.gmra.mrb[0].mxu0 %v2750
      %v2752 = vpop.f32.mrb[0].mxu0
      %v2753 = vadd.f32 %v2617, %v2752
      %v2754 = vpop.f32.mrb[0].mxu0
      %2755 = vmatprep.mubr.f32.mxu0 0.0
      %v2756 = vand.u32 %v2120, 4294901760
      %v2757 = vsub.f32 %v2120, %v2756
      %v2758 = vand.u32 %v2757, 4294901760
      %2759 = vmatmul.mubr.f32.gmra.mrb[0].mxu0 %v2758
      %v2760 = vpop.f32.mrb[0].mxu0
      %v2761 = vadd.f32 %v2624, %v2760
      %v2762 = vpop.f32.mrb[0].mxu0
      %2763 = vdwg.mxu0
      %2764 = vmatprep.subr.mxu0 0.0
      %v2765 = vand.u32 %v2121, 4294901760
      %v2766 = vsub.f32 %v2121, %v2765
      %v2767 = vand.u32 %v2766, 4294901760
      %2768 = vmatpush1.msra.mxu0 %v2767
      %2769 = vmatprep.subr.mxu0 0.0
      %v2770 = vand.u32 %v2122, 4294901760
      %v2771 = vsub.f32 %v2122, %v2770
      %v2772 = vand.u32 %v2771, 4294901760
      %2773 = vmatpush1.msra.mxu0 %v2772
      %2774 = vmatprep.subr.mxu0 0.0
      %v2775 = vand.u32 %v2123, 4294901760
      %v2776 = vsub.f32 %v2123, %v2775
      %v2777 = vand.u32 %v2776, 4294901760
      %2778 = vmatpush1.msra.mxu0 %v2777
      %2779 = vmatprep.subr.mxu0 0.0
      %v2780 = vand.u32 %v2124, 4294901760
      %v2781 = vsub.f32 %v2124, %v2780
      %v2782 = vand.u32 %v2781, 4294901760
      %2783 = vmatpush1.msra.mxu0 %v2782
      %2784 = vmatprep.subr.mxu0 0.0
      %v2785 = vand.u32 %v2125, 4294901760
      %v2786 = vsub.f32 %v2125, %v2785
      %v2787 = vand.u32 %v2786, 4294901760
      %2788 = vmatpush1.msra.mxu0 %v2787
      %2789 = vmatprep.subr.mxu0 0.0
      %v2790 = vand.u32 %v2126, 4294901760
      %v2791 = vsub.f32 %v2126, %v2790
      %v2792 = vand.u32 %v2791, 4294901760
      %2793 = vmatpush1.msra.mxu0 %v2792
      %2794 = vmatprep.subr.mxu0 0.0
      %v2795 = vand.u32 %v2127, 4294901760
      %v2796 = vsub.f32 %v2127, %v2795
      %v2797 = vand.u32 %v2796, 4294901760
      %2798 = vmatpush1.msra.mxu0 %v2797
      %2799 = vmatprep.subr.mxu0 0.0
      %v2800 = vand.u32 %v2128, 4294901760
      %v2801 = vsub.f32 %v2128, %v2800
      %v2802 = vand.u32 %v2801, 4294901760
      %2803 = vmatpush1.msra.mxu0 %v2802
      %2804 = vmatprep.subr.mxu0 0.0
      %v2805 = vand.u32 %v2129, 4294901760
      %v2806 = vsub.f32 %v2129, %v2805
      %v2807 = vand.u32 %v2806, 4294901760
      %2808 = vmatpush1.msra.mxu0 %v2807
      %2809 = vmatprep.subr.mxu0 0.0
      %v2810 = vand.u32 %v2130, 4294901760
      %v2811 = vsub.f32 %v2130, %v2810
      %v2812 = vand.u32 %v2811, 4294901760
      %2813 = vmatpush1.msra.mxu0 %v2812
      %2814 = vmatprep.subr.mxu0 0.0
      %v2815 = vand.u32 %v2131, 4294901760
      %v2816 = vsub.f32 %v2131, %v2815
      %v2817 = vand.u32 %v2816, 4294901760
      %2818 = vmatpush1.msra.mxu0 %v2817
      %2819 = vmatprep.subr.mxu0 0.0
      %v2820 = vand.u32 %v2132, 4294901760
      %v2821 = vsub.f32 %v2132, %v2820
      %v2822 = vand.u32 %v2821, 4294901760
      %2823 = vmatpush1.msra.mxu0 %v2822
      %2824 = vmatprep.subr.mxu0 0.0
      %v2825 = vand.u32 %v2133, 4294901760
      %v2826 = vsub.f32 %v2133, %v2825
      %v2827 = vand.u32 %v2826, 4294901760
      %2828 = vmatpush1.msra.mxu0 %v2827
      %2829 = vmatprep.subr.mxu0 0.0
      %v2830 = vand.u32 %v2134, 4294901760
      %v2831 = vsub.f32 %v2134, %v2830
      %v2832 = vand.u32 %v2831, 4294901760
      %2833 = vmatpush1.msra.mxu0 %v2832
      %2834 = vmatprep.subr.mxu0 0.0
      %v2835 = vand.u32 %v2135, 4294901760
      %v2836 = vsub.f32 %v2135, %v2835
      %v2837 = vand.u32 %v2836, 4294901760
      %2838 = vmatpush1.msra.mxu0 %v2837
      %2839 = vmatprep.subr.mxu0 0.0
      %v2840 = vand.u32 %v2136, 4294901760
      %v2841 = vsub.f32 %v2136, %v2840
      %v2842 = vand.u32 %v2841, 4294901760
      %2843 = vmatpush1.msra.mxu0 %v2842
      %2844 = vmatprep.subr.mxu0 0.0
      %2845 = vmatpush1.msra.mxu0 0.0
      %2846 = vmatprep.subr.mxu0 0.0
      %2847 = vmatpush1.msra.mxu0 0.0
      %2848 = vmatprep.subr.mxu0 0.0
      %2849 = vmatpush1.msra.mxu0 0.0
      %2850 = vmatprep.subr.mxu0 0.0
      %2851 = vmatpush1.msra.mxu0 0.0
      %2852 = vmatprep.subr.mxu0 0.0
      %2853 = vmatpush1.msra.mxu0 0.0
      %2854 = vmatprep.subr.mxu0 0.0
      %2855 = vmatpush1.msra.mxu0 0.0
      %2856 = vmatprep.subr.mxu0 0.0
      %2857 = vmatpush1.msra.mxu0 0.0
      %2858 = vmatprep.subr.mxu0 0.0
      %2859 = vmatpush1.msra.mxu0 0.0
      %2860 = vmatprep.subr.mxu0 0.0
      %2861 = vmatpush1.msra.mxu0 0.0
      %2862 = vmatprep.subr.mxu0 0.0
      %2863 = vmatpush1.msra.mxu0 0.0
      %2864 = vmatprep.subr.mxu0 0.0
      %2865 = vmatpush1.msra.mxu0 0.0
      %2866 = vmatprep.subr.mxu0 0.0
      %2867 = vmatpush1.msra.mxu0 0.0
      %2868 = vmatprep.subr.mxu0 0.0
      %2869 = vmatpush1.msra.mxu0 0.0
      %2870 = vmatprep.subr.mxu0 0.0
      %2871 = vmatpush1.msra.mxu0 0.0
      %2872 = vmatprep.subr.mxu0 0.0
      %2873 = vmatpush1.msra.mxu0 0.0
      %2874 = vmatprep.subr.mxu0 0.0
      %2875 = vmatpush1.msra.mxu0 0.0
      %2876 = vmatprep.mubr.f32.mxu0 0.0
      %v2877 = vand.u32 %v2108, 4294901760
      %2878 = vmatmul.mubr.f32.gmra.mrb[0].mxu0 %v2877
      %v2879 = vpop.f32.mrb[0].mxu0
      %v2880 = vadd.f32 %v2713, %v2879
      %v2881 = vpop.f32.mrb[0].mxu0
      %2882 = vmatprep.mubr.f32.mxu0 0.0
      %v2883 = vand.u32 %v2110, 4294901760
      %2884 = vmatmul.mubr.f32.gmra.mrb[0].mxu0 %v2883
      %v2885 = vpop.f32.mrb[0].mxu0
      %v2886 = vadd.f32 %v2721, %v2885
      %v2887 = vpop.f32.mrb[0].mxu0
      %2888 = vmatprep.mubr.f32.mxu0 0.0
      %v2889 = vand.u32 %v2112, 4294901760
      %2890 = vmatmul.mubr.f32.gmra.mrb[0].mxu0 %v2889
      %v2891 = vpop.f32.mrb[0].mxu0
      %v2892 = vadd.f32 %v2729, %v2891
      %v2893 = vpop.f32.mrb[0].mxu0
      %2894 = vmatprep.mubr.f32.mxu0 0.0
      %v2895 = vand.u32 %v2114, 4294901760
      %2896 = vmatmul.mubr.f32.gmra.mrb[0].mxu0 %v2895
      %v2897 = vpop.f32.mrb[0].mxu0
      %v2898 = vadd.f32 %v2737, %v2897
      %v2899 = vpop.f32.mrb[0].mxu0
      %2900 = vmatprep.mubr.f32.mxu0 0.0
      %v2901 = vand.u32 %v2116, 4294901760
      %2902 = vmatmul.mubr.f32.gmra.mrb[0].mxu0 %v2901
      %v2903 = vpop.f32.mrb[0].mxu0
      %v2904 = vadd.f32 %v2745, %v2903
      %v2905 = vpop.f32.mrb[0].mxu0
      %2906 = vmatprep.mubr.f32.mxu0 0.0
      %v2907 = vand.u32 %v2118, 4294901760
      %2908 = vmatmul.mubr.f32.gmra.mrb[0].mxu0 %v2907
      %v2909 = vpop.f32.mrb[0].mxu0
      %v2910 = vadd.f32 %v2753, %v2909
      %v2911 = vpop.f32.mrb[0].mxu0
      %2912 = vmatprep.mubr.f32.mxu0 0.0
      %v2913 = vand.u32 %v2120, 4294901760
      %2914 = vmatmul.mubr.f32.gmra.mrb[0].mxu0 %v2913
      %v2915 = vpop.f32.mrb[0].mxu0
      %v2916 = vadd.f32 %v2761, %v2915
      %v2917 = vpop.f32.mrb[0].mxu0
      %2918 = vdwg.mxu0
      %2919 = vmatprep.subr.mxu0 0.0
      %v2920 = vand.u32 %v2121, 4294901760
      %2921 = vmatpush1.msra.mxu0 %v2920
      %2922 = vmatprep.subr.mxu0 0.0
      %v2923 = vand.u32 %v2122, 4294901760
      %2924 = vmatpush1.msra.mxu0 %v2923
      %2925 = vmatprep.subr.mxu0 0.0
      %v2926 = vand.u32 %v2123, 4294901760
      %2927 = vmatpush1.msra.mxu0 %v2926
      %2928 = vmatprep.subr.mxu0 0.0
      %v2929 = vand.u32 %v2124, 4294901760
      %2930 = vmatpush1.msra.mxu0 %v2929
      %2931 = vmatprep.subr.mxu0 0.0
      %v2932 = vand.u32 %v2125, 4294901760
      %2933 = vmatpush1.msra.mxu0 %v2932
      %2934 = vmatprep.subr.mxu0 0.0
      %v2935 = vand.u32 %v2126, 4294901760
      %2936 = vmatpush1.msra.mxu0 %v2935
      %2937 = vmatprep.subr.mxu0 0.0
      %v2938 = vand.u32 %v2127, 4294901760
      %2939 = vmatpush1.msra.mxu0 %v2938
      %2940 = vmatprep.subr.mxu0 0.0
      %v2941 = vand.u32 %v2128, 4294901760
      %2942 = vmatpush1.msra.mxu0 %v2941
      %2943 = vmatprep.subr.mxu0 0.0
      %v2944 = vand.u32 %v2129, 4294901760
      %2945 = vmatpush1.msra.mxu0 %v2944
      %2946 = vmatprep.subr.mxu0 0.0
      %v2947 = vand.u32 %v2130, 4294901760
      %2948 = vmatpush1.msra.mxu0 %v2947
      %2949 = vmatprep.subr.mxu0 0.0
      %v2950 = vand.u32 %v2131, 4294901760
      %2951 = vmatpush1.msra.mxu0 %v2950
      %2952 = vmatprep.subr.mxu0 0.0
      %v2953 = vand.u32 %v2132, 4294901760
      %2954 = vmatpush1.msra.mxu0 %v2953
      %2955 = vmatprep.subr.mxu0 0.0
      %v2956 = vand.u32 %v2133, 4294901760
      %2957 = vmatpush1.msra.mxu0 %v2956
      %2958 = vmatprep.subr.mxu0 0.0
      %v2959 = vand.u32 %v2134, 4294901760
      %2960 = vmatpush1.msra.mxu0 %v2959
      %2961 = vmatprep.subr.mxu0 0.0
      %v2962 = vand.u32 %v2135, 4294901760
      %2963 = vmatpush1.msra.mxu0 %v2962
      %2964 = vmatprep.subr.mxu0 0.0
      %v2965 = vand.u32 %v2136, 4294901760
      %2966 = vmatpush1.msra.mxu0 %v2965
      %2967 = vmatprep.subr.mxu0 0.0
      %2968 = vmatpush1.msra.mxu0 0.0
      %2969 = vmatprep.subr.mxu0 0.0
      %2970 = vmatpush1.msra.mxu0 0.0
      %2971 = vmatprep.subr.mxu0 0.0
      %2972 = vmatpush1.msra.mxu0 0.0
      %2973 = vmatprep.subr.mxu0 0.0
      %2974 = vmatpush1.msra.mxu0 0.0
      %2975 = vmatprep.subr.mxu0 0.0
      %2976 = vmatpush1.msra.mxu0 0.0
      %2977 = vmatprep.subr.mxu0 0.0
      %2978 = vmatpush1.msra.mxu0 0.0
      %2979 = vmatprep.subr.mxu0 0.0
      %2980 = vmatpush1.msra.mxu0 0.0
      %2981 = vmatprep.subr.mxu0 0.0
      %2982 = vmatpush1.msra.mxu0 0.0
      %2983 = vmatprep.subr.mxu0 0.0
      %2984 = vmatpush1.msra.mxu0 0.0
      %2985 = vmatprep.subr.mxu0 0.0
      %2986 = vmatpush1.msra.mxu0 0.0
      %2987 = vmatprep.subr.mxu0 0.0
      %2988 = vmatpush1.msra.mxu0 0.0
      %2989 = vmatprep.subr.mxu0 0.0
      %2990 = vmatpush1.msra.mxu0 0.0
      %2991 = vmatprep.subr.mxu0 0.0
      %2992 = vmatpush1.msra.mxu0 0.0
      %2993 = vmatprep.subr.mxu0 0.0
      %2994 = vmatpush1.msra.mxu0 0.0
      %2995 = vmatprep.subr.mxu0 0.0
      %2996 = vmatpush1.msra.mxu0 0.0
      %2997 = vmatprep.subr.mxu0 0.0
      %2998 = vmatpush1.msra.mxu0 0.0
      %2999 = vmatprep.mubr.f32.mxu0 0.0
      %v3000 = vand.u32 %v2108, 4294901760
      %3001 = vmatmul.mubr.f32.gmra.mrb[0].mxu0 %v3000
      %v3002 = vpop.f32.mrb[0].mxu0
      %v3003 = vadd.f32 %v2880, %v3002
      %v3004 = vpop.f32.mrb[0].mxu0
      %3005 = vmatprep.mubr.f32.mxu0 0.0
      %v3006 = vand.u32 %v2110, 4294901760
      %3007 = vmatmul.mubr.f32.gmra.mrb[0].mxu0 %v3006
      %v3008 = vpop.f32.mrb[0].mxu0
      %v3009 = vadd.f32 %v2886, %v3008
      %v3010 = vpop.f32.mrb[0].mxu0
      %3011 = vmatprep.mubr.f32.mxu0 0.0
      %v3012 = vand.u32 %v2112, 4294901760
      %3013 = vmatmul.mubr.f32.gmra.mrb[0].mxu0 %v3012
      %v3014 = vpop.f32.mrb[0].mxu0
      %v3015 = vadd.f32 %v2892, %v3014
      %v3016 = vpop.f32.mrb[0].mxu0
      %3017 = vmatprep.mubr.f32.mxu0 0.0
      %v3018 = vand.u32 %v2114, 4294901760
      %3019 = vmatmul.mubr.f32.gmra.mrb[0].mxu0 %v3018
      %v3020 = vpop.f32.mrb[0].mxu0
      %v3021 = vadd.f32 %v2898, %v3020
      %v3022 = vpop.f32.mrb[0].mxu0
      %3023 = vmatprep.mubr.f32.mxu0 0.0
      %v3024 = vand.u32 %v2116, 4294901760
      %3025 = vmatmul.mubr.f32.gmra.mrb[0].mxu0 %v3024
      %v3026 = vpop.f32.mrb[0].mxu0
      %v3027 = vadd.f32 %v2904, %v3026
      %v3028 = vpop.f32.mrb[0].mxu0
      %3029 = vmatprep.mubr.f32.mxu0 0.0
      %v3030 = vand.u32 %v2118, 4294901760
      %3031 = vmatmul.mubr.f32.gmra.mrb[0].mxu0 %v3030
      %v3032 = vpop.f32.mrb[0].mxu0
      %v3033 = vadd.f32 %v2910, %v3032
      %v3034 = vpop.f32.mrb[0].mxu0
      %3035 = vmatprep.mubr.f32.mxu0 0.0
      %v3036 = vand.u32 %v2120, 4294901760
      %3037 = vmatmul.mubr.f32.gmra.mrb[0].mxu0 %v3036
      %v3038 = vpop.f32.mrb[0].mxu0
      %v3039 = vadd.f32 %v2916, %v3038
      %v3040 = vpop.f32.mrb[0].mxu0
      %3041 = vdwg.mxu0
      %v3042 = vmul.f32 %v3003, %v3003
      %v3043 = vmul.f32 %v3009, %v3009
      %v3044 = vmul.f32 %v3015, %v3015
      %v3045 = vmul.f32 %v3021, %v3021
      %v3046 = vmul.f32 %v3027, %v3027
      %v3047 = vmul.f32 %v3033, %v3033
      %v3048 = vmul.f32 %v3039, %v3039
      %v3049 = vlaneseq
      %v3050 = vshrl.u32 %v3049, 7
      %v3051 = vsub.s32 0, %v3050
      %v3052 = vrot.slane %v2138, %v3051
      %v3053 = vmul.f32 %v3042, %v3052
      %v3054 = vmul.f32 %v3043, %v3052
      %v3055 = vmul.f32 %v3044, %v3052
      %v3056 = vmul.f32 %v3045, %v3052
      %v3057 = vmul.f32 %v3046, %v3052
      %v3058 = vmul.f32 %v3047, %v3052
      %v3059 = vmul.f32 %v3048, %v3052
      %v3060 = vmul.f32 %v3053, 1.442695
      %v3061 = vpow.pop %v3060
      %v3062 = vmul.f32 %v3054, 1.442695
      %v3063 = vpow.pop %v3062
      %v3064 = vmul.f32 %v3055, 1.442695
      %v3065 = vpow.pop %v3064
      %v3066 = vmul.f32 %v3056, 1.442695
      %v3067 = vpow.pop %v3066
      %v3068 = vmul.f32 %v3057, 1.442695
      %v3069 = vpow.pop %v3068
      %v3070 = vmul.f32 %v3058, 1.442695
      %v3071 = vpow.pop %v3070
      %v3072 = vmul.f32 %v3059, 1.442695
      %v3073 = vpow.pop %v3072
      %v3074 = vld [vmem:[%s5] sm:$0xff]
      %v3075 = vld [vmem:[%s5 + $0x8] sm:$0xff]
      %v3076 = vld [vmem:[%s5 + $0x10] sm:$0xff]
      %v3077 = vld [vmem:[%s5 + $0x18] sm:$0xff]
      %v3078 = vld [vmem:[%s5 + $0x20] sm:$0xff]
      %v3079 = vld [vmem:[%s5 + $0x28] sm:$0xff]
      %v3080 = vld [vmem:[%s5 + $0x30] sm:$0xff]
      %v3081 = vld [vmem:[%s5 + $0x38] sm:$0xff]
      %v3082 = vld [vmem:[%s5 + $0x40] sm:$0xff]
      %v3083 = vld [vmem:[%s5 + $0x48] sm:$0xff]
      %v3084 = vld [vmem:[%s5 + $0x50] sm:$0xff]
      %v3085 = vld [vmem:[%s5 + $0x58] sm:$0xff]
      %v3086 = vld [vmem:[%s5 + $0x60] sm:$0xff]
      %v3087 = vld [vmem:[%s5 + $0x68] sm:$0xff]
      %v3088 = vld [vmem:[%s5 + $0x70] sm:$0xff]
      %v3089 = vld [vmem:[%s5 + $0x78] sm:$0xff]
      %v3090 = vld [vmem:[%s7 + $0x6] sm:$0x1]
      %v3091 = vld [vmem:[%s7 + $0x7] sm:$0x1]
      %v3092 = vlaneseq
      %v3093 = vshrl.u32 %v3092, 7
      %v3094 = vsub.s32 0, %v3093
      %v3095 = vrot.slane %v3090, %v3094
      %3096 = vmatprep.subr.mxu0 0.0
      %v3097 = vand.u32 %v3074, 4294901760
      %3098 = vmatpush1.msra.mxu0 %v3097
      %3099 = vmatprep.subr.mxu0 0.0
      %v3100 = vand.u32 %v3075, 4294901760
      %3101 = vmatpush1.msra.mxu0 %v3100
      %3102 = vmatprep.subr.mxu0 0.0
      %v3103 = vand.u32 %v3076, 4294901760
      %3104 = vmatpush1.msra.mxu0 %v3103
      %3105 = vmatprep.subr.mxu0 0.0
      %v3106 = vand.u32 %v3077, 4294901760
      %3107 = vmatpush1.msra.mxu0 %v3106
      %3108 = vmatprep.subr.mxu0 0.0
      %v3109 = vand.u32 %v3078, 4294901760
      %3110 = vmatpush1.msra.mxu0 %v3109
      %3111 = vmatprep.subr.mxu0 0.0
      %v3112 = vand.u32 %v3079, 4294901760
      %3113 = vmatpush1.msra.mxu0 %v3112
      %3114 = vmatprep.subr.mxu0 0.0
      %v3115 = vand.u32 %v3080, 4294901760
      %3116 = vmatpush1.msra.mxu0 %v3115
      %3117 = vmatprep.subr.mxu0 0.0
      %v3118 = vand.u32 %v3081, 4294901760
      %3119 = vmatpush1.msra.mxu0 %v3118
      %3120 = vmatprep.subr.mxu0 0.0
      %v3121 = vand.u32 %v3082, 4294901760
      %3122 = vmatpush1.msra.mxu0 %v3121
      %3123 = vmatprep.subr.mxu0 0.0
      %v3124 = vand.u32 %v3083, 4294901760
      %3125 = vmatpush1.msra.mxu0 %v3124
      %3126 = vmatprep.subr.mxu0 0.0
      %v3127 = vand.u32 %v3084, 4294901760
      %3128 = vmatpush1.msra.mxu0 %v3127
      %3129 = vmatprep.subr.mxu0 0.0
      %v3130 = vand.u32 %v3085, 4294901760
      %3131 = vmatpush1.msra.mxu0 %v3130
      %3132 = vmatprep.subr.mxu0 0.0
      %v3133 = vand.u32 %v3086, 4294901760
      %3134 = vmatpush1.msra.mxu0 %v3133
      %3135 = vmatprep.subr.mxu0 0.0
      %v3136 = vand.u32 %v3087, 4294901760
      %3137 = vmatpush1.msra.mxu0 %v3136
      %3138 = vmatprep.subr.mxu0 0.0
      %v3139 = vand.u32 %v3088, 4294901760
      %3140 = vmatpush1.msra.mxu0 %v3139
      %3141 = vmatprep.subr.mxu0 0.0
      %v3142 = vand.u32 %v3089, 4294901760
      %3143 = vmatpush1.msra.mxu0 %v3142
      %3144 = vmatprep.subr.mxu0 0.0
      %3145 = vmatpush1.msra.mxu0 0.0
      %3146 = vmatprep.subr.mxu0 0.0
      %3147 = vmatpush1.msra.mxu0 0.0
      %3148 = vmatprep.subr.mxu0 0.0
      %3149 = vmatpush1.msra.mxu0 0.0
      %3150 = vmatprep.subr.mxu0 0.0
      %3151 = vmatpush1.msra.mxu0 0.0
      %3152 = vmatprep.subr.mxu0 0.0
      %3153 = vmatpush1.msra.mxu0 0.0
      %3154 = vmatprep.subr.mxu0 0.0
      %3155 = vmatpush1.msra.mxu0 0.0
      %3156 = vmatprep.subr.mxu0 0.0
      %3157 = vmatpush1.msra.mxu0 0.0
      %3158 = vmatprep.subr.mxu0 0.0
      %3159 = vmatpush1.msra.mxu0 0.0
      %3160 = vmatprep.subr.mxu0 0.0
      %3161 = vmatpush1.msra.mxu0 0.0
      %3162 = vmatprep.subr.mxu0 0.0
      %3163 = vmatpush1.msra.mxu0 0.0
      %3164 = vmatprep.subr.mxu0 0.0
      %3165 = vmatpush1.msra.mxu0 0.0
      %3166 = vmatprep.subr.mxu0 0.0
      %3167 = vmatpush1.msra.mxu0 0.0
      %3168 = vmatprep.subr.mxu0 0.0
      %3169 = vmatpush1.msra.mxu0 0.0
      %3170 = vmatprep.subr.mxu0 0.0
      %3171 = vmatpush1.msra.mxu0 0.0
      %3172 = vmatprep.subr.mxu0 0.0
      %3173 = vmatpush1.msra.mxu0 0.0
      %3174 = vmatprep.subr.mxu0 0.0
      %3175 = vmatpush1.msra.mxu0 0.0
      %3176 = vmatprep.mubr.f32.mxu0 0.0
      %v3177 = vand.u32 %v3061, 4294901760
      %v3178 = vsub.f32 %v3061, %v3177
      %v3179 = vand.u32 %v3178, 4294901760
      %v3180 = vsub.f32 %v3178, %v3179
      %v3181 = vand.u32 %v3180, 4294901760
      %3182 = vmatmul.mubr.f32.gmra.mrb[0].mxu0 %v3181
      %v3183 = vpop.f32.mrb[0].mxu0
      %v3184 = vadd.f32 %v3095, %v3183
      %v3185 = vpop.f32.mrb[0].mxu0
      %3186 = vmatprep.mubr.f32.mxu0 0.0
      %v3187 = vand.u32 %v3063, 4294901760
      %v3188 = vsub.f32 %v3063, %v3187
      %v3189 = vand.u32 %v3188, 4294901760
      %v3190 = vsub.f32 %v3188, %v3189
      %v3191 = vand.u32 %v3190, 4294901760
      %3192 = vmatmul.mubr.f32.gmra.mrb[0].mxu0 %v3191
      %v3193 = vpop.f32.mrb[0].mxu0
      %v3194 = vadd.f32 %v3095, %v3193
      %v3195 = vpop.f32.mrb[0].mxu0
      %3196 = vmatprep.mubr.f32.mxu0 0.0
      %v3197 = vand.u32 %v3065, 4294901760
      %v3198 = vsub.f32 %v3065, %v3197
      %v3199 = vand.u32 %v3198, 4294901760
      %v3200 = vsub.f32 %v3198, %v3199
      %v3201 = vand.u32 %v3200, 4294901760
      %3202 = vmatmul.mubr.f32.gmra.mrb[0].mxu0 %v3201
      %v3203 = vpop.f32.mrb[0].mxu0
      %v3204 = vadd.f32 %v3095, %v3203
      %v3205 = vpop.f32.mrb[0].mxu0
      %3206 = vmatprep.mubr.f32.mxu0 0.0
      %v3207 = vand.u32 %v3067, 4294901760
      %v3208 = vsub.f32 %v3067, %v3207
      %v3209 = vand.u32 %v3208, 4294901760
      %v3210 = vsub.f32 %v3208, %v3209
      %v3211 = vand.u32 %v3210, 4294901760
      %3212 = vmatmul.mubr.f32.gmra.mrb[0].mxu0 %v3211
      %v3213 = vpop.f32.mrb[0].mxu0
      %v3214 = vadd.f32 %v3095, %v3213
      %v3215 = vpop.f32.mrb[0].mxu0
      %3216 = vmatprep.mubr.f32.mxu0 0.0
      %v3217 = vand.u32 %v3069, 4294901760
      %v3218 = vsub.f32 %v3069, %v3217
      %v3219 = vand.u32 %v3218, 4294901760
      %v3220 = vsub.f32 %v3218, %v3219
      %v3221 = vand.u32 %v3220, 4294901760
      %3222 = vmatmul.mubr.f32.gmra.mrb[0].mxu0 %v3221
      %v3223 = vpop.f32.mrb[0].mxu0
      %v3224 = vadd.f32 %v3095, %v3223
      %v3225 = vpop.f32.mrb[0].mxu0
      %3226 = vmatprep.mubr.f32.mxu0 0.0
      %v3227 = vand.u32 %v3071, 4294901760
      %v3228 = vsub.f32 %v3071, %v3227
      %v3229 = vand.u32 %v3228, 4294901760
      %v3230 = vsub.f32 %v3228, %v3229
      %v3231 = vand.u32 %v3230, 4294901760
      %3232 = vmatmul.mubr.f32.gmra.mrb[0].mxu0 %v3231
      %v3233 = vpop.f32.mrb[0].mxu0
      %v3234 = vadd.f32 %v3095, %v3233
      %v3235 = vpop.f32.mrb[0].mxu0
      %3236 = vmatprep.mubr.f32.mxu0 0.0
      %v3237 = vand.u32 %v3073, 4294901760
      %v3238 = vsub.f32 %v3073, %v3237
      %v3239 = vand.u32 %v3238, 4294901760
      %v3240 = vsub.f32 %v3238, %v3239
      %v3241 = vand.u32 %v3240, 4294901760
      %3242 = vmatmul.mubr.f32.gmra.mrb[0].mxu0 %v3241
      %v3243 = vpop.f32.mrb[0].mxu0
      %v3244 = vadd.f32 %v3095, %v3243
      %v3245 = vpop.f32.mrb[0].mxu0
      %3246 = vdwg.mxu0
      %3247 = vmatprep.subr.mxu0 0.0
      %v3248 = vand.u32 %v3074, 4294901760
      %v3249 = vsub.f32 %v3074, %v3248
      %v3250 = vand.u32 %v3249, 4294901760
      %v3251 = vsub.f32 %v3249, %v3250
      %v3252 = vand.u32 %v3251, 4294901760
      %3253 = vmatpush1.msra.mxu0 %v3252
      %3254 = vmatprep.subr.mxu0 0.0
      %v3255 = vand.u32 %v3075, 4294901760
      %v3256 = vsub.f32 %v3075, %v3255
      %v3257 = vand.u32 %v3256, 4294901760
      %v3258 = vsub.f32 %v3256, %v3257
      %v3259 = vand.u32 %v3258, 4294901760
      %3260 = vmatpush1.msra.mxu0 %v3259
      %3261 = vmatprep.subr.mxu0 0.0
      %v3262 = vand.u32 %v3076, 4294901760
      %v3263 = vsub.f32 %v3076, %v3262
      %v3264 = vand.u32 %v3263, 4294901760
      %v3265 = vsub.f32 %v3263, %v3264
      %v3266 = vand.u32 %v3265, 4294901760
      %3267 = vmatpush1.msra.mxu0 %v3266
      %3268 = vmatprep.subr.mxu0 0.0
      %v3269 = vand.u32 %v3077, 4294901760
      %v3270 = vsub.f32 %v3077, %v3269
      %v3271 = vand.u32 %v3270, 4294901760
      %v3272 = vsub.f32 %v3270, %v3271
      %v3273 = vand.u32 %v3272, 4294901760
      %3274 = vmatpush1.msra.mxu0 %v3273
      %3275 = vmatprep.subr.mxu0 0.0
      %v3276 = vand.u32 %v3078, 4294901760
      %v3277 = vsub.f32 %v3078, %v3276
      %v3278 = vand.u32 %v3277, 4294901760
      %v3279 = vsub.f32 %v3277, %v3278
      %v3280 = vand.u32 %v3279, 4294901760
      %3281 = vmatpush1.msra.mxu0 %v3280
      %3282 = vmatprep.subr.mxu0 0.0
      %v3283 = vand.u32 %v3079, 4294901760
      %v3284 = vsub.f32 %v3079, %v3283
      %v3285 = vand.u32 %v3284, 4294901760
      %v3286 = vsub.f32 %v3284, %v3285
      %v3287 = vand.u32 %v3286, 4294901760
      %3288 = vmatpush1.msra.mxu0 %v3287
      %3289 = vmatprep.subr.mxu0 0.0
      %v3290 = vand.u32 %v3080, 4294901760
      %v3291 = vsub.f32 %v3080, %v3290
      %v3292 = vand.u32 %v3291, 4294901760
      %v3293 = vsub.f32 %v3291, %v3292
      %v3294 = vand.u32 %v3293, 4294901760
      %3295 = vmatpush1.msra.mxu0 %v3294
      %3296 = vmatprep.subr.mxu0 0.0
      %v3297 = vand.u32 %v3081, 4294901760
      %v3298 = vsub.f32 %v3081, %v3297
      %v3299 = vand.u32 %v3298, 4294901760
      %v3300 = vsub.f32 %v3298, %v3299
      %v3301 = vand.u32 %v3300, 4294901760
      %3302 = vmatpush1.msra.mxu0 %v3301
      %3303 = vmatprep.subr.mxu0 0.0
      %v3304 = vand.u32 %v3082, 4294901760
      %v3305 = vsub.f32 %v3082, %v3304
      %v3306 = vand.u32 %v3305, 4294901760
      %v3307 = vsub.f32 %v3305, %v3306
      %v3308 = vand.u32 %v3307, 4294901760
      %3309 = vmatpush1.msra.mxu0 %v3308
      %3310 = vmatprep.subr.mxu0 0.0
      %v3311 = vand.u32 %v3083, 4294901760
      %v3312 = vsub.f32 %v3083, %v3311
      %v3313 = vand.u32 %v3312, 4294901760
      %v3314 = vsub.f32 %v3312, %v3313
      %v3315 = vand.u32 %v3314, 4294901760
      %3316 = vmatpush1.msra.mxu0 %v3315
      %3317 = vmatprep.subr.mxu0 0.0
      %v3318 = vand.u32 %v3084, 4294901760
      %v3319 = vsub.f32 %v3084, %v3318
      %v3320 = vand.u32 %v3319, 4294901760
      %v3321 = vsub.f32 %v3319, %v3320
      %v3322 = vand.u32 %v3321, 4294901760
      %3323 = vmatpush1.msra.mxu0 %v3322
      %3324 = vmatprep.subr.mxu0 0.0
      %v3325 = vand.u32 %v3085, 4294901760
      %v3326 = vsub.f32 %v3085, %v3325
      %v3327 = vand.u32 %v3326, 4294901760
      %v3328 = vsub.f32 %v3326, %v3327
      %v3329 = vand.u32 %v3328, 4294901760
      %3330 = vmatpush1.msra.mxu0 %v3329
      %3331 = vmatprep.subr.mxu0 0.0
      %v3332 = vand.u32 %v3086, 4294901760
      %v3333 = vsub.f32 %v3086, %v3332
      %v3334 = vand.u32 %v3333, 4294901760
      %v3335 = vsub.f32 %v3333, %v3334
      %v3336 = vand.u32 %v3335, 4294901760
      %3337 = vmatpush1.msra.mxu0 %v3336
      %3338 = vmatprep.subr.mxu0 0.0
      %v3339 = vand.u32 %v3087, 4294901760
      %v3340 = vsub.f32 %v3087, %v3339
      %v3341 = vand.u32 %v3340, 4294901760
      %v3342 = vsub.f32 %v3340, %v3341
      %v3343 = vand.u32 %v3342, 4294901760
      %3344 = vmatpush1.msra.mxu0 %v3343
      %3345 = vmatprep.subr.mxu0 0.0
      %v3346 = vand.u32 %v3088, 4294901760
      %v3347 = vsub.f32 %v3088, %v3346
      %v3348 = vand.u32 %v3347, 4294901760
      %v3349 = vsub.f32 %v3347, %v3348
      %v3350 = vand.u32 %v3349, 4294901760
      %3351 = vmatpush1.msra.mxu0 %v3350
      %3352 = vmatprep.subr.mxu0 0.0
      %v3353 = vand.u32 %v3089, 4294901760
      %v3354 = vsub.f32 %v3089, %v3353
      %v3355 = vand.u32 %v3354, 4294901760
      %v3356 = vsub.f32 %v3354, %v3355
      %v3357 = vand.u32 %v3356, 4294901760
      %3358 = vmatpush1.msra.mxu0 %v3357
      %3359 = vmatprep.subr.mxu0 0.0
      %3360 = vmatpush1.msra.mxu0 0.0
      %3361 = vmatprep.subr.mxu0 0.0
      %3362 = vmatpush1.msra.mxu0 0.0
      %3363 = vmatprep.subr.mxu0 0.0
      %3364 = vmatpush1.msra.mxu0 0.0
      %3365 = vmatprep.subr.mxu0 0.0
      %3366 = vmatpush1.msra.mxu0 0.0
      %3367 = vmatprep.subr.mxu0 0.0
      %3368 = vmatpush1.msra.mxu0 0.0
      %3369 = vmatprep.subr.mxu0 0.0
      %3370 = vmatpush1.msra.mxu0 0.0
      %3371 = vmatprep.subr.mxu0 0.0
      %3372 = vmatpush1.msra.mxu0 0.0
      %3373 = vmatprep.subr.mxu0 0.0
      %3374 = vmatpush1.msra.mxu0 0.0
      %3375 = vmatprep.subr.mxu0 0.0
      %3376 = vmatpush1.msra.mxu0 0.0
      %3377 = vmatprep.subr.mxu0 0.0
      %3378 = vmatpush1.msra.mxu0 0.0
      %3379 = vmatprep.subr.mxu0 0.0
      %3380 = vmatpush1.msra.mxu0 0.0
      %3381 = vmatprep.subr.mxu0 0.0
      %3382 = vmatpush1.msra.mxu0 0.0
      %3383 = vmatprep.subr.mxu0 0.0
      %3384 = vmatpush1.msra.mxu0 0.0
      %3385 = vmatprep.subr.mxu0 0.0
      %3386 = vmatpush1.msra.mxu0 0.0
      %3387 = vmatprep.subr.mxu0 0.0
      %3388 = vmatpush1.msra.mxu0 0.0
      %3389 = vmatprep.subr.mxu0 0.0
      %3390 = vmatpush1.msra.mxu0 0.0
      %3391 = vmatprep.mubr.f32.mxu0 0.0
      %v3392 = vand.u32 %v3061, 4294901760
      %3393 = vmatmul.mubr.f32.gmra.mrb[0].mxu0 %v3392
      %v3394 = vpop.f32.mrb[0].mxu0
      %v3395 = vadd.f32 %v3184, %v3394
      %v3396 = vpop.f32.mrb[0].mxu0
      %3397 = vmatprep.mubr.f32.mxu0 0.0
      %v3398 = vand.u32 %v3063, 4294901760
      %3399 = vmatmul.mubr.f32.gmra.mrb[0].mxu0 %v3398
      %v3400 = vpop.f32.mrb[0].mxu0
      %v3401 = vadd.f32 %v3194, %v3400
      %v3402 = vpop.f32.mrb[0].mxu0
      %3403 = vmatprep.mubr.f32.mxu0 0.0
      %v3404 = vand.u32 %v3065, 4294901760
      %3405 = vmatmul.mubr.f32.gmra.mrb[0].mxu0 %v3404
      %v3406 = vpop.f32.mrb[0].mxu0
      %v3407 = vadd.f32 %v3204, %v3406
      %v3408 = vpop.f32.mrb[0].mxu0
      %3409 = vmatprep.mubr.f32.mxu0 0.0
      %v3410 = vand.u32 %v3067, 4294901760
      %3411 = vmatmul.mubr.f32.gmra.mrb[0].mxu0 %v3410
      %v3412 = vpop.f32.mrb[0].mxu0
      %v3413 = vadd.f32 %v3214, %v3412
      %v3414 = vpop.f32.mrb[0].mxu0
      %3415 = vmatprep.mubr.f32.mxu0 0.0
      %v3416 = vand.u32 %v3069, 4294901760
      %3417 = vmatmul.mubr.f32.gmra.mrb[0].mxu0 %v3416
      %v3418 = vpop.f32.mrb[0].mxu0
      %v3419 = vadd.f32 %v3224, %v3418
      %v3420 = vpop.f32.mrb[0].mxu0
      %3421 = vmatprep.mubr.f32.mxu0 0.0
      %v3422 = vand.u32 %v3071, 4294901760
      %3423 = vmatmul.mubr.f32.gmra.mrb[0].mxu0 %v3422
      %v3424 = vpop.f32.mrb[0].mxu0
      %v3425 = vadd.f32 %v3234, %v3424
      %v3426 = vpop.f32.mrb[0].mxu0
      %3427 = vmatprep.mubr.f32.mxu0 0.0
      %v3428 = vand.u32 %v3073, 4294901760
      %3429 = vmatmul.mubr.f32.gmra.mrb[0].mxu0 %v3428
      %v3430 = vpop.f32.mrb[0].mxu0
      %v3431 = vadd.f32 %v3244, %v3430
      %v3432 = vpop.f32.mrb[0].mxu0
      %3433 = vdwg.mxu0
      %3434 = vmatprep.subr.mxu0 0.0
      %v3435 = vand.u32 %v3074, 4294901760
      %v3436 = vsub.f32 %v3074, %v3435
      %3437 = vmatpush1.msra.mxu0 %v3436
      %3438 = vmatprep.subr.mxu0 0.0
      %v3439 = vand.u32 %v3075, 4294901760
      %v3440 = vsub.f32 %v3075, %v3439
      %3441 = vmatpush1.msra.mxu0 %v3440
      %3442 = vmatprep.subr.mxu0 0.0
      %v3443 = vand.u32 %v3076, 4294901760
      %v3444 = vsub.f32 %v3076, %v3443
      %3445 = vmatpush1.msra.mxu0 %v3444
      %3446 = vmatprep.subr.mxu0 0.0
      %v3447 = vand.u32 %v3077, 4294901760
      %v3448 = vsub.f32 %v3077, %v3447
      %3449 = vmatpush1.msra.mxu0 %v3448
      %3450 = vmatprep.subr.mxu0 0.0
      %v3451 = vand.u32 %v3078, 4294901760
      %v3452 = vsub.f32 %v3078, %v3451
      %3453 = vmatpush1.msra.mxu0 %v3452
      %3454 = vmatprep.subr.mxu0 0.0
      %v3455 = vand.u32 %v3079, 4294901760
      %v3456 = vsub.f32 %v3079, %v3455
      %3457 = vmatpush1.msra.mxu0 %v3456
      %3458 = vmatprep.subr.mxu0 0.0
      %v3459 = vand.u32 %v3080, 4294901760
      %v3460 = vsub.f32 %v3080, %v3459
      %3461 = vmatpush1.msra.mxu0 %v3460
      %3462 = vmatprep.subr.mxu0 0.0
      %v3463 = vand.u32 %v3081, 4294901760
      %v3464 = vsub.f32 %v3081, %v3463
      %3465 = vmatpush1.msra.mxu0 %v3464
      %3466 = vmatprep.subr.mxu0 0.0
      %v3467 = vand.u32 %v3082, 4294901760
      %v3468 = vsub.f32 %v3082, %v3467
      %3469 = vmatpush1.msra.mxu0 %v3468
      %3470 = vmatprep.subr.mxu0 0.0
      %v3471 = vand.u32 %v3083, 4294901760
      %v3472 = vsub.f32 %v3083, %v3471
      %3473 = vmatpush1.msra.mxu0 %v3472
      %3474 = vmatprep.subr.mxu0 0.0
      %v3475 = vand.u32 %v3084, 4294901760
      %v3476 = vsub.f32 %v3084, %v3475
      %3477 = vmatpush1.msra.mxu0 %v3476
      %3478 = vmatprep.subr.mxu0 0.0
      %v3479 = vand.u32 %v3085, 4294901760
      %v3480 = vsub.f32 %v3085, %v3479
      %3481 = vmatpush1.msra.mxu0 %v3480
      %3482 = vmatprep.subr.mxu0 0.0
      %v3483 = vand.u32 %v3086, 4294901760
      %v3484 = vsub.f32 %v3086, %v3483
      %3485 = vmatpush1.msra.mxu0 %v3484
      %3486 = vmatprep.subr.mxu0 0.0
      %v3487 = vand.u32 %v3087, 4294901760
      %v3488 = vsub.f32 %v3087, %v3487
      %3489 = vmatpush1.msra.mxu0 %v3488
      %3490 = vmatprep.subr.mxu0 0.0
      %v3491 = vand.u32 %v3088, 4294901760
      %v3492 = vsub.f32 %v3088, %v3491
      %3493 = vmatpush1.msra.mxu0 %v3492
      %3494 = vmatprep.subr.mxu0 0.0
      %v3495 = vand.u32 %v3089, 4294901760
      %v3496 = vsub.f32 %v3089, %v3495
      %3497 = vmatpush1.msra.mxu0 %v3496
      %3498 = vmatprep.subr.mxu0 0.0
      %3499 = vmatpush1.msra.mxu0 0.0
      %3500 = vmatprep.subr.mxu0 0.0
      %3501 = vmatpush1.msra.mxu0 0.0
      %3502 = vmatprep.subr.mxu0 0.0
      %3503 = vmatpush1.msra.mxu0 0.0
      %3504 = vmatprep.subr.mxu0 0.0
      %3505 = vmatpush1.msra.mxu0 0.0
      %3506 = vmatprep.subr.mxu0 0.0
      %3507 = vmatpush1.msra.mxu0 0.0
      %3508 = vmatprep.subr.mxu0 0.0
      %3509 = vmatpush1.msra.mxu0 0.0
      %3510 = vmatprep.subr.mxu0 0.0
      %3511 = vmatpush1.msra.mxu0 0.0
      %3512 = vmatprep.subr.mxu0 0.0
      %3513 = vmatpush1.msra.mxu0 0.0
      %3514 = vmatprep.subr.mxu0 0.0
      %3515 = vmatpush1.msra.mxu0 0.0
      %3516 = vmatprep.subr.mxu0 0.0
      %3517 = vmatpush1.msra.mxu0 0.0
      %3518 = vmatprep.subr.mxu0 0.0
      %3519 = vmatpush1.msra.mxu0 0.0
      %3520 = vmatprep.subr.mxu0 0.0
      %3521 = vmatpush1.msra.mxu0 0.0
      %3522 = vmatprep.subr.mxu0 0.0
      %3523 = vmatpush1.msra.mxu0 0.0
      %3524 = vmatprep.subr.mxu0 0.0
      %3525 = vmatpush1.msra.mxu0 0.0
      %3526 = vmatprep.subr.mxu0 0.0
      %3527 = vmatpush1.msra.mxu0 0.0
      %3528 = vmatprep.subr.mxu0 0.0
      %3529 = vmatpush1.msra.mxu0 0.0
      %3530 = vmatprep.mubr.f32.mxu0 0.0
      %v3531 = vand.u32 %v3061, 4294901760
      %v3532 = vsub.f32 %v3061, %v3531
      %3533 = vmatmul.mubr.f32.gmra.mrb[0].mxu0 %v3532
      %v3534 = vpop.f32.mrb[0].mxu0
      %v3535 = vadd.f32 %v3395, %v3534
      %v3536 = vpop.f32.mrb[0].mxu0
      %3537 = vmatprep.mubr.f32.mxu0 0.0
      %v3538 = vand.u32 %v3063, 4294901760
      %v3539 = vsub.f32 %v3063, %v3538
      %3540 = vmatmul.mubr.f32.gmra.mrb[0].mxu0 %v3539
      %v3541 = vpop.f32.mrb[0].mxu0
      %v3542 = vadd.f32 %v3401, %v3541
      %v3543 = vpop.f32.mrb[0].mxu0
      %3544 = vmatprep.mubr.f32.mxu0 0.0
      %v3545 = vand.u32 %v3065, 4294901760
      %v3546 = vsub.f32 %v3065, %v3545
      %3547 = vmatmul.mubr.f32.gmra.mrb[0].mxu0 %v3546
      %v3548 = vpop.f32.mrb[0].mxu0
      %v3549 = vadd.f32 %v3407, %v3548
      %v3550 = vpop.f32.mrb[0].mxu0
      %3551 = vmatprep.mubr.f32.mxu0 0.0
      %v3552 = vand.u32 %v3067, 4294901760
      %v3553 = vsub.f32 %v3067, %v3552
      %3554 = vmatmul.mubr.f32.gmra.mrb[0].mxu0 %v3553
      %v3555 = vpop.f32.mrb[0].mxu0
      %v3556 = vadd.f32 %v3413, %v3555
      %v3557 = vpop.f32.mrb[0].mxu0
      %3558 = vmatprep.mubr.f32.mxu0 0.0
      %v3559 = vand.u32 %v3069, 4294901760
      %v3560 = vsub.f32 %v3069, %v3559
      %3561 = vmatmul.mubr.f32.gmra.mrb[0].mxu0 %v3560
      %v3562 = vpop.f32.mrb[0].mxu0
      %v3563 = vadd.f32 %v3419, %v3562
      %v3564 = vpop.f32.mrb[0].mxu0
      %3565 = vmatprep.mubr.f32.mxu0 0.0
      %v3566 = vand.u32 %v3071, 4294901760
      %v3567 = vsub.f32 %v3071, %v3566
      %3568 = vmatmul.mubr.f32.gmra.mrb[0].mxu0 %v3567
      %v3569 = vpop.f32.mrb[0].mxu0
      %v3570 = vadd.f32 %v3425, %v3569
      %v3571 = vpop.f32.mrb[0].mxu0
      %3572 = vmatprep.mubr.f32.mxu0 0.0
      %v3573 = vand.u32 %v3073, 4294901760
      %v3574 = vsub.f32 %v3073, %v3573
      %3575 = vmatmul.mubr.f32.gmra.mrb[0].mxu0 %v3574
      %v3576 = vpop.f32.mrb[0].mxu0
      %v3577 = vadd.f32 %v3431, %v3576
      %v3578 = vpop.f32.mrb[0].mxu0
      %3579 = vdwg.mxu0
      %3580 = vmatprep.subr.mxu0 0.0
      %v3581 = vand.u32 %v3074, 4294901760
      %3582 = vmatpush1.msra.mxu0 %v3581
      %3583 = vmatprep.subr.mxu0 0.0
      %v3584 = vand.u32 %v3075, 4294901760
      %3585 = vmatpush1.msra.mxu0 %v3584
      %3586 = vmatprep.subr.mxu0 0.0
      %v3587 = vand.u32 %v3076, 4294901760
      %3588 = vmatpush1.msra.mxu0 %v3587
      %3589 = vmatprep.subr.mxu0 0.0
      %v3590 = vand.u32 %v3077, 4294901760
      %3591 = vmatpush1.msra.mxu0 %v3590
      %3592 = vmatprep.subr.mxu0 0.0
      %v3593 = vand.u32 %v3078, 4294901760
      %3594 = vmatpush1.msra.mxu0 %v3593
      %3595 = vmatprep.subr.mxu0 0.0
      %v3596 = vand.u32 %v3079, 4294901760
      %3597 = vmatpush1.msra.mxu0 %v3596
      %3598 = vmatprep.subr.mxu0 0.0
      %v3599 = vand.u32 %v3080, 4294901760
      %3600 = vmatpush1.msra.mxu0 %v3599
      %3601 = vmatprep.subr.mxu0 0.0
      %v3602 = vand.u32 %v3081, 4294901760
      %3603 = vmatpush1.msra.mxu0 %v3602
      %3604 = vmatprep.subr.mxu0 0.0
      %v3605 = vand.u32 %v3082, 4294901760
      %3606 = vmatpush1.msra.mxu0 %v3605
      %3607 = vmatprep.subr.mxu0 0.0
      %v3608 = vand.u32 %v3083, 4294901760
      %3609 = vmatpush1.msra.mxu0 %v3608
      %3610 = vmatprep.subr.mxu0 0.0
      %v3611 = vand.u32 %v3084, 4294901760
      %3612 = vmatpush1.msra.mxu0 %v3611
      %3613 = vmatprep.subr.mxu0 0.0
      %v3614 = vand.u32 %v3085, 4294901760
      %3615 = vmatpush1.msra.mxu0 %v3614
      %3616 = vmatprep.subr.mxu0 0.0
      %v3617 = vand.u32 %v3086, 4294901760
      %3618 = vmatpush1.msra.mxu0 %v3617
      %3619 = vmatprep.subr.mxu0 0.0
      %v3620 = vand.u32 %v3087, 4294901760
      %3621 = vmatpush1.msra.mxu0 %v3620
      %3622 = vmatprep.subr.mxu0 0.0
      %v3623 = vand.u32 %v3088, 4294901760
      %3624 = vmatpush1.msra.mxu0 %v3623
      %3625 = vmatprep.subr.mxu0 0.0
      %v3626 = vand.u32 %v3089, 4294901760
      %3627 = vmatpush1.msra.mxu0 %v3626
      %3628 = vmatprep.subr.mxu0 0.0
      %3629 = vmatpush1.msra.mxu0 0.0
      %3630 = vmatprep.subr.mxu0 0.0
      %3631 = vmatpush1.msra.mxu0 0.0
      %3632 = vmatprep.subr.mxu0 0.0
      %3633 = vmatpush1.msra.mxu0 0.0
      %3634 = vmatprep.subr.mxu0 0.0
      %3635 = vmatpush1.msra.mxu0 0.0
      %3636 = vmatprep.subr.mxu0 0.0
      %3637 = vmatpush1.msra.mxu0 0.0
      %3638 = vmatprep.subr.mxu0 0.0
      %3639 = vmatpush1.msra.mxu0 0.0
      %3640 = vmatprep.subr.mxu0 0.0
      %3641 = vmatpush1.msra.mxu0 0.0
      %3642 = vmatprep.subr.mxu0 0.0
      %3643 = vmatpush1.msra.mxu0 0.0
      %3644 = vmatprep.subr.mxu0 0.0
      %3645 = vmatpush1.msra.mxu0 0.0
      %3646 = vmatprep.subr.mxu0 0.0
      %3647 = vmatpush1.msra.mxu0 0.0
      %3648 = vmatprep.subr.mxu0 0.0
      %3649 = vmatpush1.msra.mxu0 0.0
      %3650 = vmatprep.subr.mxu0 0.0
      %3651 = vmatpush1.msra.mxu0 0.0
      %3652 = vmatprep.subr.mxu0 0.0
      %3653 = vmatpush1.msra.mxu0 0.0
      %3654 = vmatprep.subr.mxu0 0.0
      %3655 = vmatpush1.msra.mxu0 0.0
      %3656 = vmatprep.subr.mxu0 0.0
      %3657 = vmatpush1.msra.mxu0 0.0
      %3658 = vmatprep.subr.mxu0 0.0
      %3659 = vmatpush1.msra.mxu0 0.0
      %3660 = vmatprep.mubr.f32.mxu0 0.0
      %v3661 = vand.u32 %v3061, 4294901760
      %v3662 = vsub.f32 %v3061, %v3661
      %v3663 = vand.u32 %v3662, 4294901760
      %3664 = vmatmul.mubr.f32.gmra.mrb[0].mxu0 %v3663
      %v3665 = vpop.f32.mrb[0].mxu0
      %v3666 = vadd.f32 %v3535, %v3665
      %v3667 = vpop.f32.mrb[0].mxu0
      %3668 = vmatprep.mubr.f32.mxu0 0.0
      %v3669 = vand.u32 %v3063, 4294901760
      %v3670 = vsub.f32 %v3063, %v3669
      %v3671 = vand.u32 %v3670, 4294901760
      %3672 = vmatmul.mubr.f32.gmra.mrb[0].mxu0 %v3671
      %v3673 = vpop.f32.mrb[0].mxu0
      %v3674 = vadd.f32 %v3542, %v3673
      %v3675 = vpop.f32.mrb[0].mxu0
      %3676 = vmatprep.mubr.f32.mxu0 0.0
      %v3677 = vand.u32 %v3065, 4294901760
      %v3678 = vsub.f32 %v3065, %v3677
      %v3679 = vand.u32 %v3678, 4294901760
      %3680 = vmatmul.mubr.f32.gmra.mrb[0].mxu0 %v3679
      %v3681 = vpop.f32.mrb[0].mxu0
      %v3682 = vadd.f32 %v3549, %v3681
      %v3683 = vpop.f32.mrb[0].mxu0
      %3684 = vmatprep.mubr.f32.mxu0 0.0
      %v3685 = vand.u32 %v3067, 4294901760
      %v3686 = vsub.f32 %v3067, %v3685
      %v3687 = vand.u32 %v3686, 4294901760
      %3688 = vmatmul.mubr.f32.gmra.mrb[0].mxu0 %v3687
      %v3689 = vpop.f32.mrb[0].mxu0
      %v3690 = vadd.f32 %v3556, %v3689
      %v3691 = vpop.f32.mrb[0].mxu0
      %3692 = vmatprep.mubr.f32.mxu0 0.0
      %v3693 = vand.u32 %v3069, 4294901760
      %v3694 = vsub.f32 %v3069, %v3693
      %v3695 = vand.u32 %v3694, 4294901760
      %3696 = vmatmul.mubr.f32.gmra.mrb[0].mxu0 %v3695
      %v3697 = vpop.f32.mrb[0].mxu0
      %v3698 = vadd.f32 %v3563, %v3697
      %v3699 = vpop.f32.mrb[0].mxu0
      %3700 = vmatprep.mubr.f32.mxu0 0.0
      %v3701 = vand.u32 %v3071, 4294901760
      %v3702 = vsub.f32 %v3071, %v3701
      %v3703 = vand.u32 %v3702, 4294901760
      %3704 = vmatmul.mubr.f32.gmra.mrb[0].mxu0 %v3703
      %v3705 = vpop.f32.mrb[0].mxu0
      %v3706 = vadd.f32 %v3570, %v3705
      %v3707 = vpop.f32.mrb[0].mxu0
      %3708 = vmatprep.mubr.f32.mxu0 0.0
      %v3709 = vand.u32 %v3073, 4294901760
      %v3710 = vsub.f32 %v3073, %v3709
      %v3711 = vand.u32 %v3710, 4294901760
      %3712 = vmatmul.mubr.f32.gmra.mrb[0].mxu0 %v3711
      %v3713 = vpop.f32.mrb[0].mxu0
      %v3714 = vadd.f32 %v3577, %v3713
      %v3715 = vpop.f32.mrb[0].mxu0
      %3716 = vdwg.mxu0
      %3717 = vmatprep.subr.mxu0 0.0
      %v3718 = vand.u32 %v3074, 4294901760
      %v3719 = vsub.f32 %v3074, %v3718
      %v3720 = vand.u32 %v3719, 4294901760
      %3721 = vmatpush1.msra.mxu0 %v3720
      %3722 = vmatprep.subr.mxu0 0.0
      %v3723 = vand.u32 %v3075, 4294901760
      %v3724 = vsub.f32 %v3075, %v3723
      %v3725 = vand.u32 %v3724, 4294901760
      %3726 = vmatpush1.msra.mxu0 %v3725
      %3727 = vmatprep.subr.mxu0 0.0
      %v3728 = vand.u32 %v3076, 4294901760
      %v3729 = vsub.f32 %v3076, %v3728
      %v3730 = vand.u32 %v3729, 4294901760
      %3731 = vmatpush1.msra.mxu0 %v3730
      %3732 = vmatprep.subr.mxu0 0.0
      %v3733 = vand.u32 %v3077, 4294901760
      %v3734 = vsub.f32 %v3077, %v3733
      %v3735 = vand.u32 %v3734, 4294901760
      %3736 = vmatpush1.msra.mxu0 %v3735
      %3737 = vmatprep.subr.mxu0 0.0
      %v3738 = vand.u32 %v3078, 4294901760
      %v3739 = vsub.f32 %v3078, %v3738
      %v3740 = vand.u32 %v3739, 4294901760
      %3741 = vmatpush1.msra.mxu0 %v3740
      %3742 = vmatprep.subr.mxu0 0.0
      %v3743 = vand.u32 %v3079, 4294901760
      %v3744 = vsub.f32 %v3079, %v3743
      %v3745 = vand.u32 %v3744, 4294901760
      %3746 = vmatpush1.msra.mxu0 %v3745
      %3747 = vmatprep.subr.mxu0 0.0
      %v3748 = vand.u32 %v3080, 4294901760
      %v3749 = vsub.f32 %v3080, %v3748
      %v3750 = vand.u32 %v3749, 4294901760
      %3751 = vmatpush1.msra.mxu0 %v3750
      %3752 = vmatprep.subr.mxu0 0.0
      %v3753 = vand.u32 %v3081, 4294901760
      %v3754 = vsub.f32 %v3081, %v3753
      %v3755 = vand.u32 %v3754, 4294901760
      %3756 = vmatpush1.msra.mxu0 %v3755
      %3757 = vmatprep.subr.mxu0 0.0
      %v3758 = vand.u32 %v3082, 4294901760
      %v3759 = vsub.f32 %v3082, %v3758
      %v3760 = vand.u32 %v3759, 4294901760
      %3761 = vmatpush1.msra.mxu0 %v3760
      %3762 = vmatprep.subr.mxu0 0.0
      %v3763 = vand.u32 %v3083, 4294901760
      %v3764 = vsub.f32 %v3083, %v3763
      %v3765 = vand.u32 %v3764, 4294901760
      %3766 = vmatpush1.msra.mxu0 %v3765
      %3767 = vmatprep.subr.mxu0 0.0
      %v3768 = vand.u32 %v3084, 4294901760
      %v3769 = vsub.f32 %v3084, %v3768
      %v3770 = vand.u32 %v3769, 4294901760
      %3771 = vmatpush1.msra.mxu0 %v3770
      %3772 = vmatprep.subr.mxu0 0.0
      %v3773 = vand.u32 %v3085, 4294901760
      %v3774 = vsub.f32 %v3085, %v3773
      %v3775 = vand.u32 %v3774, 4294901760
      %3776 = vmatpush1.msra.mxu0 %v3775
      %3777 = vmatprep.subr.mxu0 0.0
      %v3778 = vand.u32 %v3086, 4294901760
      %v3779 = vsub.f32 %v3086, %v3778
      %v3780 = vand.u32 %v3779, 4294901760
      %3781 = vmatpush1.msra.mxu0 %v3780
      %3782 = vmatprep.subr.mxu0 0.0
      %v3783 = vand.u32 %v3087, 4294901760
      %v3784 = vsub.f32 %v3087, %v3783
      %v3785 = vand.u32 %v3784, 4294901760
      %3786 = vmatpush1.msra.mxu0 %v3785
      %3787 = vmatprep.subr.mxu0 0.0
      %v3788 = vand.u32 %v3088, 4294901760
      %v3789 = vsub.f32 %v3088, %v3788
      %v3790 = vand.u32 %v3789, 4294901760
      %3791 = vmatpush1.msra.mxu0 %v3790
      %3792 = vmatprep.subr.mxu0 0.0
      %v3793 = vand.u32 %v3089, 4294901760
      %v3794 = vsub.f32 %v3089, %v3793
      %v3795 = vand.u32 %v3794, 4294901760
      %3796 = vmatpush1.msra.mxu0 %v3795
      %3797 = vmatprep.subr.mxu0 0.0
      %3798 = vmatpush1.msra.mxu0 0.0
      %3799 = vmatprep.subr.mxu0 0.0
      %3800 = vmatpush1.msra.mxu0 0.0
      %3801 = vmatprep.subr.mxu0 0.0
      %3802 = vmatpush1.msra.mxu0 0.0
      %3803 = vmatprep.subr.mxu0 0.0
      %3804 = vmatpush1.msra.mxu0 0.0
      %3805 = vmatprep.subr.mxu0 0.0
      %3806 = vmatpush1.msra.mxu0 0.0
      %3807 = vmatprep.subr.mxu0 0.0
      %3808 = vmatpush1.msra.mxu0 0.0
      %3809 = vmatprep.subr.mxu0 0.0
      %3810 = vmatpush1.msra.mxu0 0.0
      %3811 = vmatprep.subr.mxu0 0.0
      %3812 = vmatpush1.msra.mxu0 0.0
      %3813 = vmatprep.subr.mxu0 0.0
      %3814 = vmatpush1.msra.mxu0 0.0
      %3815 = vmatprep.subr.mxu0 0.0
      %3816 = vmatpush1.msra.mxu0 0.0
      %3817 = vmatprep.subr.mxu0 0.0
      %3818 = vmatpush1.msra.mxu0 0.0
      %3819 = vmatprep.subr.mxu0 0.0
      %3820 = vmatpush1.msra.mxu0 0.0
      %3821 = vmatprep.subr.mxu0 0.0
      %3822 = vmatpush1.msra.mxu0 0.0
      %3823 = vmatprep.subr.mxu0 0.0
      %3824 = vmatpush1.msra.mxu0 0.0
      %3825 = vmatprep.subr.mxu0 0.0
      %3826 = vmatpush1.msra.mxu0 0.0
      %3827 = vmatprep.subr.mxu0 0.0
      %3828 = vmatpush1.msra.mxu0 0.0
      %3829 = vmatprep.mubr.f32.mxu0 0.0
      %v3830 = vand.u32 %v3061, 4294901760
      %3831 = vmatmul.mubr.f32.gmra.mrb[0].mxu0 %v3830
      %v3832 = vpop.f32.mrb[0].mxu0
      %v3833 = vadd.f32 %v3666, %v3832
      %v3834 = vpop.f32.mrb[0].mxu0
      %3835 = vmatprep.mubr.f32.mxu0 0.0
      %v3836 = vand.u32 %v3063, 4294901760
      %3837 = vmatmul.mubr.f32.gmra.mrb[0].mxu0 %v3836
      %v3838 = vpop.f32.mrb[0].mxu0
      %v3839 = vadd.f32 %v3674, %v3838
      %v3840 = vpop.f32.mrb[0].mxu0
      %3841 = vmatprep.mubr.f32.mxu0 0.0
      %v3842 = vand.u32 %v3065, 4294901760
      %3843 = vmatmul.mubr.f32.gmra.mrb[0].mxu0 %v3842
      %v3844 = vpop.f32.mrb[0].mxu0
      %v3845 = vadd.f32 %v3682, %v3844
      %v3846 = vpop.f32.mrb[0].mxu0
      %3847 = vmatprep.mubr.f32.mxu0 0.0
      %v3848 = vand.u32 %v3067, 4294901760
      %3849 = vmatmul.mubr.f32.gmra.mrb[0].mxu0 %v3848
      %v3850 = vpop.f32.mrb[0].mxu0
      %v3851 = vadd.f32 %v3690, %v3850
      %v3852 = vpop.f32.mrb[0].mxu0
      %3853 = vmatprep.mubr.f32.mxu0 0.0
      %v3854 = vand.u32 %v3069, 4294901760
      %3855 = vmatmul.mubr.f32.gmra.mrb[0].mxu0 %v3854
      %v3856 = vpop.f32.mrb[0].mxu0
      %v3857 = vadd.f32 %v3698, %v3856
      %v3858 = vpop.f32.mrb[0].mxu0
      %3859 = vmatprep.mubr.f32.mxu0 0.0
      %v3860 = vand.u32 %v3071, 4294901760
      %3861 = vmatmul.mubr.f32.gmra.mrb[0].mxu0 %v3860
      %v3862 = vpop.f32.mrb[0].mxu0
      %v3863 = vadd.f32 %v3706, %v3862
      %v3864 = vpop.f32.mrb[0].mxu0
      %3865 = vmatprep.mubr.f32.mxu0 0.0
      %v3866 = vand.u32 %v3073, 4294901760
      %3867 = vmatmul.mubr.f32.gmra.mrb[0].mxu0 %v3866
      %v3868 = vpop.f32.mrb[0].mxu0
      %v3869 = vadd.f32 %v3714, %v3868
      %v3870 = vpop.f32.mrb[0].mxu0
      %3871 = vdwg.mxu0
      %3872 = vmatprep.subr.mxu0 0.0
      %v3873 = vand.u32 %v3074, 4294901760
      %3874 = vmatpush1.msra.mxu0 %v3873
      %3875 = vmatprep.subr.mxu0 0.0
      %v3876 = vand.u32 %v3075, 4294901760
      %3877 = vmatpush1.msra.mxu0 %v3876
      %3878 = vmatprep.subr.mxu0 0.0
      %v3879 = vand.u32 %v3076, 4294901760
      %3880 = vmatpush1.msra.mxu0 %v3879
      %3881 = vmatprep.subr.mxu0 0.0
      %v3882 = vand.u32 %v3077, 4294901760
      %3883 = vmatpush1.msra.mxu0 %v3882
      %3884 = vmatprep.subr.mxu0 0.0
      %v3885 = vand.u32 %v3078, 4294901760
      %3886 = vmatpush1.msra.mxu0 %v3885
      %3887 = vmatprep.subr.mxu0 0.0
      %v3888 = vand.u32 %v3079, 4294901760
      %3889 = vmatpush1.msra.mxu0 %v3888
      %3890 = vmatprep.subr.mxu0 0.0
      %v3891 = vand.u32 %v3080, 4294901760
      %3892 = vmatpush1.msra.mxu0 %v3891
      %3893 = vmatprep.subr.mxu0 0.0
      %v3894 = vand.u32 %v3081, 4294901760
      %3895 = vmatpush1.msra.mxu0 %v3894
      %3896 = vmatprep.subr.mxu0 0.0
      %v3897 = vand.u32 %v3082, 4294901760
      %3898 = vmatpush1.msra.mxu0 %v3897
      %3899 = vmatprep.subr.mxu0 0.0
      %v3900 = vand.u32 %v3083, 4294901760
      %3901 = vmatpush1.msra.mxu0 %v3900
      %3902 = vmatprep.subr.mxu0 0.0
      %v3903 = vand.u32 %v3084, 4294901760
      %3904 = vmatpush1.msra.mxu0 %v3903
      %3905 = vmatprep.subr.mxu0 0.0
      %v3906 = vand.u32 %v3085, 4294901760
      %3907 = vmatpush1.msra.mxu0 %v3906
      %3908 = vmatprep.subr.mxu0 0.0
      %v3909 = vand.u32 %v3086, 4294901760
      %3910 = vmatpush1.msra.mxu0 %v3909
      %3911 = vmatprep.subr.mxu0 0.0
      %v3912 = vand.u32 %v3087, 4294901760
      %3913 = vmatpush1.msra.mxu0 %v3912
      %3914 = vmatprep.subr.mxu0 0.0
      %v3915 = vand.u32 %v3088, 4294901760
      %3916 = vmatpush1.msra.mxu0 %v3915
      %3917 = vmatprep.subr.mxu0 0.0
      %v3918 = vand.u32 %v3089, 4294901760
      %3919 = vmatpush1.msra.mxu0 %v3918
      %3920 = vmatprep.subr.mxu0 0.0
      %3921 = vmatpush1.msra.mxu0 0.0
      %3922 = vmatprep.subr.mxu0 0.0
      %3923 = vmatpush1.msra.mxu0 0.0
      %3924 = vmatprep.subr.mxu0 0.0
      %3925 = vmatpush1.msra.mxu0 0.0
      %3926 = vmatprep.subr.mxu0 0.0
      %3927 = vmatpush1.msra.mxu0 0.0
      %3928 = vmatprep.subr.mxu0 0.0
      %3929 = vmatpush1.msra.mxu0 0.0
      %3930 = vmatprep.subr.mxu0 0.0
      %3931 = vmatpush1.msra.mxu0 0.0
      %3932 = vmatprep.subr.mxu0 0.0
      %3933 = vmatpush1.msra.mxu0 0.0
      %3934 = vmatprep.subr.mxu0 0.0
      %3935 = vmatpush1.msra.mxu0 0.0
      %3936 = vmatprep.subr.mxu0 0.0
      %3937 = vmatpush1.msra.mxu0 0.0
      %3938 = vmatprep.subr.mxu0 0.0
      %3939 = vmatpush1.msra.mxu0 0.0
      %3940 = vmatprep.subr.mxu0 0.0
      %3941 = vmatpush1.msra.mxu0 0.0
      %3942 = vmatprep.subr.mxu0 0.0
      %3943 = vmatpush1.msra.mxu0 0.0
      %3944 = vmatprep.subr.mxu0 0.0
      %3945 = vmatpush1.msra.mxu0 0.0
      %3946 = vmatprep.subr.mxu0 0.0
      %3947 = vmatpush1.msra.mxu0 0.0
      %3948 = vmatprep.subr.mxu0 0.0
      %3949 = vmatpush1.msra.mxu0 0.0
      %3950 = vmatprep.subr.mxu0 0.0
      %3951 = vmatpush1.msra.mxu0 0.0
      %3952 = vmatprep.mubr.f32.mxu0 0.0
      %v3953 = vand.u32 %v3061, 4294901760
      %3954 = vmatmul.mubr.f32.gmra.mrb[0].mxu0 %v3953
      %v3955 = vpop.f32.mrb[0].mxu0
      %v3956 = vadd.f32 %v3833, %v3955
      %v3957 = vpop.f32.mrb[0].mxu0
      %3958 = vmatprep.mubr.f32.mxu0 0.0
      %v3959 = vand.u32 %v3063, 4294901760
      %3960 = vmatmul.mubr.f32.gmra.mrb[0].mxu0 %v3959
      %v3961 = vpop.f32.mrb[0].mxu0
      %v3962 = vadd.f32 %v3839, %v3961
      %v3963 = vpop.f32.mrb[0].mxu0
      %3964 = vmatprep.mubr.f32.mxu0 0.0
      %v3965 = vand.u32 %v3065, 4294901760
      %3966 = vmatmul.mubr.f32.gmra.mrb[0].mxu0 %v3965
      %v3967 = vpop.f32.mrb[0].mxu0
      %v3968 = vadd.f32 %v3845, %v3967
      %v3969 = vpop.f32.mrb[0].mxu0
      %3970 = vmatprep.mubr.f32.mxu0 0.0
      %v3971 = vand.u32 %v3067, 4294901760
      %3972 = vmatmul.mubr.f32.gmra.mrb[0].mxu0 %v3971
      %v3973 = vpop.f32.mrb[0].mxu0
      %v3974 = vadd.f32 %v3851, %v3973
      %v3975 = vpop.f32.mrb[0].mxu0
      %3976 = vmatprep.mubr.f32.mxu0 0.0
      %v3977 = vand.u32 %v3069, 4294901760
      %3978 = vmatmul.mubr.f32.gmra.mrb[0].mxu0 %v3977
      %v3979 = vpop.f32.mrb[0].mxu0
      %v3980 = vadd.f32 %v3857, %v3979
      %v3981 = vpop.f32.mrb[0].mxu0
      %3982 = vmatprep.mubr.f32.mxu0 0.0
      %v3983 = vand.u32 %v3071, 4294901760
      %3984 = vmatmul.mubr.f32.gmra.mrb[0].mxu0 %v3983
      %v3985 = vpop.f32.mrb[0].mxu0
      %v3986 = vadd.f32 %v3863, %v3985
      %v3987 = vpop.f32.mrb[0].mxu0
      %3988 = vmatprep.mubr.f32.mxu0 0.0
      %v3989 = vand.u32 %v3073, 4294901760
      %3990 = vmatmul.mubr.f32.gmra.mrb[0].mxu0 %v3989
      %v3991 = vpop.f32.mrb[0].mxu0
      %v3992 = vadd.f32 %v3869, %v3991
      %v3993 = vpop.f32.mrb[0].mxu0
      %3994 = vdwg.mxu0
      %v3995 = vmul.f32 %v3956, %v3956
      %v3996 = vmul.f32 %v3962, %v3962
      %v3997 = vmul.f32 %v3968, %v3968
      %v3998 = vmul.f32 %v3974, %v3974
      %v3999 = vmul.f32 %v3980, %v3980
      %v4000 = vmul.f32 %v3986, %v3986
      %v4001 = vmul.f32 %v3992, %v3992
      %v4002 = vlaneseq
      %v4003 = vshrl.u32 %v4002, 7
      %v4004 = vsub.s32 0, %v4003
      %v4005 = vrot.slane %v3091, %v4004
      %v4006 = vmul.f32 %v3995, %v4005
      %v4007 = vmul.f32 %v3996, %v4005
      %v4008 = vmul.f32 %v3997, %v4005
      %v4009 = vmul.f32 %v3998, %v4005
      %v4010 = vmul.f32 %v3999, %v4005
      %v4011 = vmul.f32 %v4000, %v4005
      %v4012 = vmul.f32 %v4001, %v4005
      %v4013 = vmul.f32 %v4006, 1.442695
      %v4014 = vpow.pop %v4013
      %v4015 = vmul.f32 %v4007, 1.442695
      %v4016 = vpow.pop %v4015
      %v4017 = vmul.f32 %v4008, 1.442695
      %v4018 = vpow.pop %v4017
      %v4019 = vmul.f32 %v4009, 1.442695
      %v4020 = vpow.pop %v4019
      %v4021 = vmul.f32 %v4010, 1.442695
      %v4022 = vpow.pop %v4021
      %v4023 = vmul.f32 %v4011, 1.442695
      %v4024 = vpow.pop %v4023
      %v4025 = vmul.f32 %v4012, 1.442695
      %v4026 = vpow.pop %v4025
      %v4027 = vld [vmem:[%s6] sm:$0xff]
      %v4028 = vld [vmem:[%s6 + $0x8] sm:$0xff]
      %v4029 = vld [vmem:[%s6 + $0x10] sm:$0xff]
      %v4030 = vld [vmem:[%s6 + $0x18] sm:$0xff]
      %v4031 = vld [vmem:[%s6 + $0x20] sm:$0xff]
      %v4032 = vld [vmem:[%s6 + $0x28] sm:$0xff]
      %v4033 = vld [vmem:[%s6 + $0x30] sm:$0xff]
      %v4034 = vld [vmem:[%s6 + $0x38] sm:$0xff]
      %v4035 = vld [vmem:[%s6 + $0x40] sm:$0xff]
      %v4036 = vld [vmem:[%s6 + $0x48] sm:$0xff]
      %v4037 = vld [vmem:[%s6 + $0x50] sm:$0xff]
      %v4038 = vld [vmem:[%s6 + $0x58] sm:$0xff]
      %v4039 = vld [vmem:[%s6 + $0x60] sm:$0xff]
      %v4040 = vld [vmem:[%s6 + $0x68] sm:$0xff]
      %v4041 = vld [vmem:[%s6 + $0x70] sm:$0xff]
      %v4042 = vld [vmem:[%s6 + $0x78] sm:$0xff]
      %v4043 = vld [vmem:[%s7 + $0x8] sm:$0x1]
      %s4045 = vtos %v4043
      %v4046 = vstv %s4045
      %4048 = vmatprep.subr.mxu0 0.0
      %v4049 = vand.u32 %v4027, 4294901760
      %4050 = vmatpush1.msra.mxu0 %v4049
      %4051 = vmatprep.subr.mxu0 0.0
      %v4052 = vand.u32 %v4028, 4294901760
      %4053 = vmatpush1.msra.mxu0 %v4052
      %4054 = vmatprep.subr.mxu0 0.0
      %v4055 = vand.u32 %v4029, 4294901760
      %4056 = vmatpush1.msra.mxu0 %v4055
      %4057 = vmatprep.subr.mxu0 0.0
      %v4058 = vand.u32 %v4030, 4294901760
      %4059 = vmatpush1.msra.mxu0 %v4058
      %4060 = vmatprep.subr.mxu0 0.0
      %v4061 = vand.u32 %v4031, 4294901760
      %4062 = vmatpush1.msra.mxu0 %v4061
      %4063 = vmatprep.subr.mxu0 0.0
      %v4064 = vand.u32 %v4032, 4294901760
      %4065 = vmatpush1.msra.mxu0 %v4064
      %4066 = vmatprep.subr.mxu0 0.0
      %v4067 = vand.u32 %v4033, 4294901760
      %4068 = vmatpush1.msra.mxu0 %v4067
      %4069 = vmatprep.subr.mxu0 0.0
      %v4070 = vand.u32 %v4034, 4294901760
      %4071 = vmatpush1.msra.mxu0 %v4070
      %4072 = vmatprep.subr.mxu0 0.0
      %v4073 = vand.u32 %v4035, 4294901760
      %4074 = vmatpush1.msra.mxu0 %v4073
      %4075 = vmatprep.subr.mxu0 0.0
      %v4076 = vand.u32 %v4036, 4294901760
      %4077 = vmatpush1.msra.mxu0 %v4076
      %4078 = vmatprep.subr.mxu0 0.0
      %v4079 = vand.u32 %v4037, 4294901760
      %4080 = vmatpush1.msra.mxu0 %v4079
      %4081 = vmatprep.subr.mxu0 0.0
      %v4082 = vand.u32 %v4038, 4294901760
      %4083 = vmatpush1.msra.mxu0 %v4082
      %4084 = vmatprep.subr.mxu0 0.0
      %v4085 = vand.u32 %v4039, 4294901760
      %4086 = vmatpush1.msra.mxu0 %v4085
      %4087 = vmatprep.subr.mxu0 0.0
      %v4088 = vand.u32 %v4040, 4294901760
      %4089 = vmatpush1.msra.mxu0 %v4088
      %4090 = vmatprep.subr.mxu0 0.0
      %v4091 = vand.u32 %v4041, 4294901760
      %4092 = vmatpush1.msra.mxu0 %v4091
      %4093 = vmatprep.subr.mxu0 0.0
      %v4094 = vand.u32 %v4042, 4294901760
      %4095 = vmatpush1.msra.mxu0 %v4094
      %4096 = vmatprep.subr.mxu0 0.0
      %4097 = vmatpush1.msra.mxu0 0.0
      %4098 = vmatprep.subr.mxu0 0.0
      %4099 = vmatpush1.msra.mxu0 0.0
      %4100 = vmatprep.subr.mxu0 0.0
      %4101 = vmatpush1.msra.mxu0 0.0
      %4102 = vmatprep.subr.mxu0 0.0
      %4103 = vmatpush1.msra.mxu0 0.0
      %4104 = vmatprep.subr.mxu0 0.0
      %4105 = vmatpush1.msra.mxu0 0.0
      %4106 = vmatprep.subr.mxu0 0.0
      %4107 = vmatpush1.msra.mxu0 0.0
      %4108 = vmatprep.subr.mxu0 0.0
      %4109 = vmatpush1.msra.mxu0 0.0
      %4110 = vmatprep.subr.mxu0 0.0
      %4111 = vmatpush1.msra.mxu0 0.0
      %4112 = vmatprep.subr.mxu0 0.0
      %4113 = vmatpush1.msra.mxu0 0.0
      %4114 = vmatprep.subr.mxu0 0.0
      %4115 = vmatpush1.msra.mxu0 0.0
      %4116 = vmatprep.subr.mxu0 0.0
      %4117 = vmatpush1.msra.mxu0 0.0
      %4118 = vmatprep.subr.mxu0 0.0
      %4119 = vmatpush1.msra.mxu0 0.0
      %4120 = vmatprep.subr.mxu0 0.0
      %4121 = vmatpush1.msra.mxu0 0.0
      %4122 = vmatprep.subr.mxu0 0.0
      %4123 = vmatpush1.msra.mxu0 0.0
      %4124 = vmatprep.subr.mxu0 0.0
      %4125 = vmatpush1.msra.mxu0 0.0
      %4126 = vmatprep.subr.mxu0 0.0
      %4127 = vmatpush1.msra.mxu0 0.0
      %4128 = vmatprep.mubr.f32.mxu0 0.0
      %v4129 = vand.u32 %v4014, 4294901760
      %v4130 = vsub.f32 %v4014, %v4129
      %v4131 = vand.u32 %v4130, 4294901760
      %v4132 = vsub.f32 %v4130, %v4131
      %v4133 = vand.u32 %v4132, 4294901760
      %4134 = vmatmul.mubr.f32.gmra.mrb[0].mxu0 %v4133
      %v4135 = vpop.f32.mrb[0].mxu0
      %v4136 = vadd.f32 %v4046, %v4135
      %v4137 = vpop.f32.mrb[0].mxu0
      %4138 = vmatprep.mubr.f32.mxu0 0.0
      %v4139 = vand.u32 %v4016, 4294901760
      %v4140 = vsub.f32 %v4016, %v4139
      %v4141 = vand.u32 %v4140, 4294901760
      %v4142 = vsub.f32 %v4140, %v4141
      %v4143 = vand.u32 %v4142, 4294901760
      %4144 = vmatmul.mubr.f32.gmra.mrb[0].mxu0 %v4143
      %v4145 = vpop.f32.mrb[0].mxu0
      %v4146 = vadd.f32 %v4046, %v4145
      %v4147 = vpop.f32.mrb[0].mxu0
      %4148 = vmatprep.mubr.f32.mxu0 0.0
      %v4149 = vand.u32 %v4018, 4294901760
      %v4150 = vsub.f32 %v4018, %v4149
      %v4151 = vand.u32 %v4150, 4294901760
      %v4152 = vsub.f32 %v4150, %v4151
      %v4153 = vand.u32 %v4152, 4294901760
      %4154 = vmatmul.mubr.f32.gmra.mrb[0].mxu0 %v4153
      %v4155 = vpop.f32.mrb[0].mxu0
      %v4156 = vadd.f32 %v4046, %v4155
      %v4157 = vpop.f32.mrb[0].mxu0
      %4158 = vmatprep.mubr.f32.mxu0 0.0
      %v4159 = vand.u32 %v4020, 4294901760
      %v4160 = vsub.f32 %v4020, %v4159
      %v4161 = vand.u32 %v4160, 4294901760
      %v4162 = vsub.f32 %v4160, %v4161
      %v4163 = vand.u32 %v4162, 4294901760
      %4164 = vmatmul.mubr.f32.gmra.mrb[0].mxu0 %v4163
      %v4165 = vpop.f32.mrb[0].mxu0
      %v4166 = vadd.f32 %v4046, %v4165
      %v4167 = vpop.f32.mrb[0].mxu0
      %4168 = vmatprep.mubr.f32.mxu0 0.0
      %v4169 = vand.u32 %v4022, 4294901760
      %v4170 = vsub.f32 %v4022, %v4169
      %v4171 = vand.u32 %v4170, 4294901760
      %v4172 = vsub.f32 %v4170, %v4171
      %v4173 = vand.u32 %v4172, 4294901760
      %4174 = vmatmul.mubr.f32.gmra.mrb[0].mxu0 %v4173
      %v4175 = vpop.f32.mrb[0].mxu0
      %v4176 = vadd.f32 %v4046, %v4175
      %v4177 = vpop.f32.mrb[0].mxu0
      %4178 = vmatprep.mubr.f32.mxu0 0.0
      %v4179 = vand.u32 %v4024, 4294901760
      %v4180 = vsub.f32 %v4024, %v4179
      %v4181 = vand.u32 %v4180, 4294901760
      %v4182 = vsub.f32 %v4180, %v4181
      %v4183 = vand.u32 %v4182, 4294901760
      %4184 = vmatmul.mubr.f32.gmra.mrb[0].mxu0 %v4183
      %v4185 = vpop.f32.mrb[0].mxu0
      %v4186 = vadd.f32 %v4046, %v4185
      %v4187 = vpop.f32.mrb[0].mxu0
      %4188 = vmatprep.mubr.f32.mxu0 0.0
      %v4189 = vand.u32 %v4026, 4294901760
      %v4190 = vsub.f32 %v4026, %v4189
      %v4191 = vand.u32 %v4190, 4294901760
      %v4192 = vsub.f32 %v4190, %v4191
      %v4193 = vand.u32 %v4192, 4294901760
      %4194 = vmatmul.mubr.f32.gmra.mrb[0].mxu0 %v4193
      %v4195 = vpop.f32.mrb[0].mxu0
      %v4196 = vadd.f32 %v4046, %v4195
      %v4197 = vpop.f32.mrb[0].mxu0
      %4198 = vdwg.mxu0
      %4199 = vmatprep.subr.mxu0 0.0
      %v4200 = vand.u32 %v4027, 4294901760
      %v4201 = vsub.f32 %v4027, %v4200
      %v4202 = vand.u32 %v4201, 4294901760
      %v4203 = vsub.f32 %v4201, %v4202
      %v4204 = vand.u32 %v4203, 4294901760
      %4205 = vmatpush1.msra.mxu0 %v4204
      %4206 = vmatprep.subr.mxu0 0.0
      %v4207 = vand.u32 %v4028, 4294901760
      %v4208 = vsub.f32 %v4028, %v4207
      %v4209 = vand.u32 %v4208, 4294901760
      %v4210 = vsub.f32 %v4208, %v4209
      %v4211 = vand.u32 %v4210, 4294901760
      %4212 = vmatpush1.msra.mxu0 %v4211
      %4213 = vmatprep.subr.mxu0 0.0
      %v4214 = vand.u32 %v4029, 4294901760
      %v4215 = vsub.f32 %v4029, %v4214
      %v4216 = vand.u32 %v4215, 4294901760
      %v4217 = vsub.f32 %v4215, %v4216
      %v4218 = vand.u32 %v4217, 4294901760
      %4219 = vmatpush1.msra.mxu0 %v4218
      %4220 = vmatprep.subr.mxu0 0.0
      %v4221 = vand.u32 %v4030, 4294901760
      %v4222 = vsub.f32 %v4030, %v4221
      %v4223 = vand.u32 %v4222, 4294901760
      %v4224 = vsub.f32 %v4222, %v4223
      %v4225 = vand.u32 %v4224, 4294901760
      %4226 = vmatpush1.msra.mxu0 %v4225
      %4227 = vmatprep.subr.mxu0 0.0
      %v4228 = vand.u32 %v4031, 4294901760
      %v4229 = vsub.f32 %v4031, %v4228
      %v4230 = vand.u32 %v4229, 4294901760
      %v4231 = vsub.f32 %v4229, %v4230
      %v4232 = vand.u32 %v4231, 4294901760
      %4233 = vmatpush1.msra.mxu0 %v4232
      %4234 = vmatprep.subr.mxu0 0.0
      %v4235 = vand.u32 %v4032, 4294901760
      %v4236 = vsub.f32 %v4032, %v4235
      %v4237 = vand.u32 %v4236, 4294901760
      %v4238 = vsub.f32 %v4236, %v4237
      %v4239 = vand.u32 %v4238, 4294901760
      %4240 = vmatpush1.msra.mxu0 %v4239
      %4241 = vmatprep.subr.mxu0 0.0
      %v4242 = vand.u32 %v4033, 4294901760
      %v4243 = vsub.f32 %v4033, %v4242
      %v4244 = vand.u32 %v4243, 4294901760
      %v4245 = vsub.f32 %v4243, %v4244
      %v4246 = vand.u32 %v4245, 4294901760
      %4247 = vmatpush1.msra.mxu0 %v4246
      %4248 = vmatprep.subr.mxu0 0.0
      %v4249 = vand.u32 %v4034, 4294901760
      %v4250 = vsub.f32 %v4034, %v4249
      %v4251 = vand.u32 %v4250, 4294901760
      %v4252 = vsub.f32 %v4250, %v4251
      %v4253 = vand.u32 %v4252, 4294901760
      %4254 = vmatpush1.msra.mxu0 %v4253
      %4255 = vmatprep.subr.mxu0 0.0
      %v4256 = vand.u32 %v4035, 4294901760
      %v4257 = vsub.f32 %v4035, %v4256
      %v4258 = vand.u32 %v4257, 4294901760
      %v4259 = vsub.f32 %v4257, %v4258
      %v4260 = vand.u32 %v4259, 4294901760
      %4261 = vmatpush1.msra.mxu0 %v4260
      %4262 = vmatprep.subr.mxu0 0.0
      %v4263 = vand.u32 %v4036, 4294901760
      %v4264 = vsub.f32 %v4036, %v4263
      %v4265 = vand.u32 %v4264, 4294901760
      %v4266 = vsub.f32 %v4264, %v4265
      %v4267 = vand.u32 %v4266, 4294901760
      %4268 = vmatpush1.msra.mxu0 %v4267
      %4269 = vmatprep.subr.mxu0 0.0
      %v4270 = vand.u32 %v4037, 4294901760
      %v4271 = vsub.f32 %v4037, %v4270
      %v4272 = vand.u32 %v4271, 4294901760
      %v4273 = vsub.f32 %v4271, %v4272
      %v4274 = vand.u32 %v4273, 4294901760
      %4275 = vmatpush1.msra.mxu0 %v4274
      %4276 = vmatprep.subr.mxu0 0.0
      %v4277 = vand.u32 %v4038, 4294901760
      %v4278 = vsub.f32 %v4038, %v4277
      %v4279 = vand.u32 %v4278, 4294901760
      %v4280 = vsub.f32 %v4278, %v4279
      %v4281 = vand.u32 %v4280, 4294901760
      %4282 = vmatpush1.msra.mxu0 %v4281
      %4283 = vmatprep.subr.mxu0 0.0
      %v4284 = vand.u32 %v4039, 4294901760
      %v4285 = vsub.f32 %v4039, %v4284
      %v4286 = vand.u32 %v4285, 4294901760
      %v4287 = vsub.f32 %v4285, %v4286
      %v4288 = vand.u32 %v4287, 4294901760
      %4289 = vmatpush1.msra.mxu0 %v4288
      %4290 = vmatprep.subr.mxu0 0.0
      %v4291 = vand.u32 %v4040, 4294901760
      %v4292 = vsub.f32 %v4040, %v4291
      %v4293 = vand.u32 %v4292, 4294901760
      %v4294 = vsub.f32 %v4292, %v4293
      %v4295 = vand.u32 %v4294, 4294901760
      %4296 = vmatpush1.msra.mxu0 %v4295
      %4297 = vmatprep.subr.mxu0 0.0
      %v4298 = vand.u32 %v4041, 4294901760
      %v4299 = vsub.f32 %v4041, %v4298
      %v4300 = vand.u32 %v4299, 4294901760
      %v4301 = vsub.f32 %v4299, %v4300
      %v4302 = vand.u32 %v4301, 4294901760
      %4303 = vmatpush1.msra.mxu0 %v4302
      %4304 = vmatprep.subr.mxu0 0.0
      %v4305 = vand.u32 %v4042, 4294901760
      %v4306 = vsub.f32 %v4042, %v4305
      %v4307 = vand.u32 %v4306, 4294901760
      %v4308 = vsub.f32 %v4306, %v4307
      %v4309 = vand.u32 %v4308, 4294901760
      %4310 = vmatpush1.msra.mxu0 %v4309
      %4311 = vmatprep.subr.mxu0 0.0
      %4312 = vmatpush1.msra.mxu0 0.0
      %4313 = vmatprep.subr.mxu0 0.0
      %4314 = vmatpush1.msra.mxu0 0.0
      %4315 = vmatprep.subr.mxu0 0.0
      %4316 = vmatpush1.msra.mxu0 0.0
      %4317 = vmatprep.subr.mxu0 0.0
      %4318 = vmatpush1.msra.mxu0 0.0
      %4319 = vmatprep.subr.mxu0 0.0
      %4320 = vmatpush1.msra.mxu0 0.0
      %4321 = vmatprep.subr.mxu0 0.0
      %4322 = vmatpush1.msra.mxu0 0.0
      %4323 = vmatprep.subr.mxu0 0.0
      %4324 = vmatpush1.msra.mxu0 0.0
      %4325 = vmatprep.subr.mxu0 0.0
      %4326 = vmatpush1.msra.mxu0 0.0
      %4327 = vmatprep.subr.mxu0 0.0
      %4328 = vmatpush1.msra.mxu0 0.0
      %4329 = vmatprep.subr.mxu0 0.0
      %4330 = vmatpush1.msra.mxu0 0.0
      %4331 = vmatprep.subr.mxu0 0.0
      %4332 = vmatpush1.msra.mxu0 0.0
      %4333 = vmatprep.subr.mxu0 0.0
      %4334 = vmatpush1.msra.mxu0 0.0
      %4335 = vmatprep.subr.mxu0 0.0
      %4336 = vmatpush1.msra.mxu0 0.0
      %4337 = vmatprep.subr.mxu0 0.0
      %4338 = vmatpush1.msra.mxu0 0.0
      %4339 = vmatprep.subr.mxu0 0.0
      %4340 = vmatpush1.msra.mxu0 0.0
      %4341 = vmatprep.subr.mxu0 0.0
      %4342 = vmatpush1.msra.mxu0 0.0
      %4343 = vmatprep.mubr.f32.mxu0 0.0
      %v4344 = vand.u32 %v4014, 4294901760
      %4345 = vmatmul.mubr.f32.gmra.mrb[0].mxu0 %v4344
      %v4346 = vpop.f32.mrb[0].mxu0
      %v4347 = vadd.f32 %v4136, %v4346
      %v4348 = vpop.f32.mrb[0].mxu0
      %4349 = vmatprep.mubr.f32.mxu0 0.0
      %v4350 = vand.u32 %v4016, 4294901760
      %4351 = vmatmul.mubr.f32.gmra.mrb[0].mxu0 %v4350
      %v4352 = vpop.f32.mrb[0].mxu0
      %v4353 = vadd.f32 %v4146, %v4352
      %v4354 = vpop.f32.mrb[0].mxu0
      %4355 = vmatprep.mubr.f32.mxu0 0.0
      %v4356 = vand.u32 %v4018, 4294901760
      %4357 = vmatmul.mubr.f32.gmra.mrb[0].mxu0 %v4356
      %v4358 = vpop.f32.mrb[0].mxu0
      %v4359 = vadd.f32 %v4156, %v4358
      %v4360 = vpop.f32.mrb[0].mxu0
      %4361 = vmatprep.mubr.f32.mxu0 0.0
      %v4362 = vand.u32 %v4020, 4294901760
      %4363 = vmatmul.mubr.f32.gmra.mrb[0].mxu0 %v4362
      %v4364 = vpop.f32.mrb[0].mxu0
      %v4365 = vadd.f32 %v4166, %v4364
      %v4366 = vpop.f32.mrb[0].mxu0
      %4367 = vmatprep.mubr.f32.mxu0 0.0
      %v4368 = vand.u32 %v4022, 4294901760
      %4369 = vmatmul.mubr.f32.gmra.mrb[0].mxu0 %v4368
      %v4370 = vpop.f32.mrb[0].mxu0
      %v4371 = vadd.f32 %v4176, %v4370
      %v4372 = vpop.f32.mrb[0].mxu0
      %4373 = vmatprep.mubr.f32.mxu0 0.0
      %v4374 = vand.u32 %v4024, 4294901760
      %4375 = vmatmul.mubr.f32.gmra.mrb[0].mxu0 %v4374
      %v4376 = vpop.f32.mrb[0].mxu0
      %v4377 = vadd.f32 %v4186, %v4376
      %v4378 = vpop.f32.mrb[0].mxu0
      %4379 = vmatprep.mubr.f32.mxu0 0.0
      %v4380 = vand.u32 %v4026, 4294901760
      %4381 = vmatmul.mubr.f32.gmra.mrb[0].mxu0 %v4380
      %v4382 = vpop.f32.mrb[0].mxu0
      %v4383 = vadd.f32 %v4196, %v4382
      %v4384 = vpop.f32.mrb[0].mxu0
      %4385 = vdwg.mxu0
      %4386 = vmatprep.subr.mxu0 0.0
      %v4387 = vand.u32 %v4027, 4294901760
      %v4388 = vsub.f32 %v4027, %v4387
      %4389 = vmatpush1.msra.mxu0 %v4388
      %4390 = vmatprep.subr.mxu0 0.0
      %v4391 = vand.u32 %v4028, 4294901760
      %v4392 = vsub.f32 %v4028, %v4391
      %4393 = vmatpush1.msra.mxu0 %v4392
      %4394 = vmatprep.subr.mxu0 0.0
      %v4395 = vand.u32 %v4029, 4294901760
      %v4396 = vsub.f32 %v4029, %v4395
      %4397 = vmatpush1.msra.mxu0 %v4396
      %4398 = vmatprep.subr.mxu0 0.0
      %v4399 = vand.u32 %v4030, 4294901760
      %v4400 = vsub.f32 %v4030, %v4399
      %4401 = vmatpush1.msra.mxu0 %v4400
      %4402 = vmatprep.subr.mxu0 0.0
      %v4403 = vand.u32 %v4031, 4294901760
      %v4404 = vsub.f32 %v4031, %v4403
      %4405 = vmatpush1.msra.mxu0 %v4404
      %4406 = vmatprep.subr.mxu0 0.0
      %v4407 = vand.u32 %v4032, 4294901760
      %v4408 = vsub.f32 %v4032, %v4407
      %4409 = vmatpush1.msra.mxu0 %v4408
      %4410 = vmatprep.subr.mxu0 0.0
      %v4411 = vand.u32 %v4033, 4294901760
      %v4412 = vsub.f32 %v4033, %v4411
      %4413 = vmatpush1.msra.mxu0 %v4412
      %4414 = vmatprep.subr.mxu0 0.0
      %v4415 = vand.u32 %v4034, 4294901760
      %v4416 = vsub.f32 %v4034, %v4415
      %4417 = vmatpush1.msra.mxu0 %v4416
      %4418 = vmatprep.subr.mxu0 0.0
      %v4419 = vand.u32 %v4035, 4294901760
      %v4420 = vsub.f32 %v4035, %v4419
      %4421 = vmatpush1.msra.mxu0 %v4420
      %4422 = vmatprep.subr.mxu0 0.0
      %v4423 = vand.u32 %v4036, 4294901760
      %v4424 = vsub.f32 %v4036, %v4423
      %4425 = vmatpush1.msra.mxu0 %v4424
      %4426 = vmatprep.subr.mxu0 0.0
      %v4427 = vand.u32 %v4037, 4294901760
      %v4428 = vsub.f32 %v4037, %v4427
      %4429 = vmatpush1.msra.mxu0 %v4428
      %4430 = vmatprep.subr.mxu0 0.0
      %v4431 = vand.u32 %v4038, 4294901760
      %v4432 = vsub.f32 %v4038, %v4431
      %4433 = vmatpush1.msra.mxu0 %v4432
      %4434 = vmatprep.subr.mxu0 0.0
      %v4435 = vand.u32 %v4039, 4294901760
      %v4436 = vsub.f32 %v4039, %v4435
      %4437 = vmatpush1.msra.mxu0 %v4436
      %4438 = vmatprep.subr.mxu0 0.0
      %v4439 = vand.u32 %v4040, 4294901760
      %v4440 = vsub.f32 %v4040, %v4439
      %4441 = vmatpush1.msra.mxu0 %v4440
      %4442 = vmatprep.subr.mxu0 0.0
      %v4443 = vand.u32 %v4041, 4294901760
      %v4444 = vsub.f32 %v4041, %v4443
      %4445 = vmatpush1.msra.mxu0 %v4444
      %4446 = vmatprep.subr.mxu0 0.0
      %v4447 = vand.u32 %v4042, 4294901760
      %v4448 = vsub.f32 %v4042, %v4447
      %4449 = vmatpush1.msra.mxu0 %v4448
      %4450 = vmatprep.subr.mxu0 0.0
      %4451 = vmatpush1.msra.mxu0 0.0
      %4452 = vmatprep.subr.mxu0 0.0
      %4453 = vmatpush1.msra.mxu0 0.0
      %4454 = vmatprep.subr.mxu0 0.0
      %4455 = vmatpush1.msra.mxu0 0.0
      %4456 = vmatprep.subr.mxu0 0.0
      %4457 = vmatpush1.msra.mxu0 0.0
      %4458 = vmatprep.subr.mxu0 0.0
      %4459 = vmatpush1.msra.mxu0 0.0
      %4460 = vmatprep.subr.mxu0 0.0
      %4461 = vmatpush1.msra.mxu0 0.0
      %4462 = vmatprep.subr.mxu0 0.0
      %4463 = vmatpush1.msra.mxu0 0.0
      %4464 = vmatprep.subr.mxu0 0.0
      %4465 = vmatpush1.msra.mxu0 0.0
      %4466 = vmatprep.subr.mxu0 0.0
      %4467 = vmatpush1.msra.mxu0 0.0
      %4468 = vmatprep.subr.mxu0 0.0
      %4469 = vmatpush1.msra.mxu0 0.0
      %4470 = vmatprep.subr.mxu0 0.0
      %4471 = vmatpush1.msra.mxu0 0.0
      %4472 = vmatprep.subr.mxu0 0.0
      %4473 = vmatpush1.msra.mxu0 0.0
      %4474 = vmatprep.subr.mxu0 0.0
      %4475 = vmatpush1.msra.mxu0 0.0
      %4476 = vmatprep.subr.mxu0 0.0
      %4477 = vmatpush1.msra.mxu0 0.0
      %4478 = vmatprep.subr.mxu0 0.0
      %4479 = vmatpush1.msra.mxu0 0.0
      %4480 = vmatprep.subr.mxu0 0.0
      %4481 = vmatpush1.msra.mxu0 0.0
      %4482 = vmatprep.mubr.f32.mxu0 0.0
      %v4483 = vand.u32 %v4014, 4294901760
      %v4484 = vsub.f32 %v4014, %v4483
      %4485 = vmatmul.mubr.f32.gmra.mrb[0].mxu0 %v4484
      %v4486 = vpop.f32.mrb[0].mxu0
      %v4487 = vadd.f32 %v4347, %v4486
      %v4488 = vpop.f32.mrb[0].mxu0
      %4489 = vmatprep.mubr.f32.mxu0 0.0
      %v4490 = vand.u32 %v4016, 4294901760
      %v4491 = vsub.f32 %v4016, %v4490
      %4492 = vmatmul.mubr.f32.gmra.mrb[0].mxu0 %v4491
      %v4493 = vpop.f32.mrb[0].mxu0
      %v4494 = vadd.f32 %v4353, %v4493
      %v4495 = vpop.f32.mrb[0].mxu0
      %4496 = vmatprep.mubr.f32.mxu0 0.0
      %v4497 = vand.u32 %v4018, 4294901760
      %v4498 = vsub.f32 %v4018, %v4497
      %4499 = vmatmul.mubr.f32.gmra.mrb[0].mxu0 %v4498
      %v4500 = vpop.f32.mrb[0].mxu0
      %v4501 = vadd.f32 %v4359, %v4500
      %v4502 = vpop.f32.mrb[0].mxu0
      %4503 = vmatprep.mubr.f32.mxu0 0.0
      %v4504 = vand.u32 %v4020, 4294901760
      %v4505 = vsub.f32 %v4020, %v4504
      %4506 = vmatmul.mubr.f32.gmra.mrb[0].mxu0 %v4505
      %v4507 = vpop.f32.mrb[0].mxu0
      %v4508 = vadd.f32 %v4365, %v4507
      %v4509 = vpop.f32.mrb[0].mxu0
      %4510 = vmatprep.mubr.f32.mxu0 0.0
      %v4511 = vand.u32 %v4022, 4294901760
      %v4512 = vsub.f32 %v4022, %v4511
      %4513 = vmatmul.mubr.f32.gmra.mrb[0].mxu0 %v4512
      %v4514 = vpop.f32.mrb[0].mxu0
      %v4515 = vadd.f32 %v4371, %v4514
      %v4516 = vpop.f32.mrb[0].mxu0
      %4517 = vmatprep.mubr.f32.mxu0 0.0
      %v4518 = vand.u32 %v4024, 4294901760
      %v4519 = vsub.f32 %v4024, %v4518
      %4520 = vmatmul.mubr.f32.gmra.mrb[0].mxu0 %v4519
      %v4521 = vpop.f32.mrb[0].mxu0
      %v4522 = vadd.f32 %v4377, %v4521
      %v4523 = vpop.f32.mrb[0].mxu0
      %4524 = vmatprep.mubr.f32.mxu0 0.0
      %v4525 = vand.u32 %v4026, 4294901760
      %v4526 = vsub.f32 %v4026, %v4525
      %4527 = vmatmul.mubr.f32.gmra.mrb[0].mxu0 %v4526
      %v4528 = vpop.f32.mrb[0].mxu0
      %v4529 = vadd.f32 %v4383, %v4528
      %v4530 = vpop.f32.mrb[0].mxu0
      %4531 = vdwg.mxu0
      %4532 = vmatprep.subr.mxu0 0.0
      %v4533 = vand.u32 %v4027, 4294901760
      %4534 = vmatpush1.msra.mxu0 %v4533
      %4535 = vmatprep.subr.mxu0 0.0
      %v4536 = vand.u32 %v4028, 4294901760
      %4537 = vmatpush1.msra.mxu0 %v4536
      %4538 = vmatprep.subr.mxu0 0.0
      %v4539 = vand.u32 %v4029, 4294901760
      %4540 = vmatpush1.msra.mxu0 %v4539
      %4541 = vmatprep.subr.mxu0 0.0
      %v4542 = vand.u32 %v4030, 4294901760
      %4543 = vmatpush1.msra.mxu0 %v4542
      %4544 = vmatprep.subr.mxu0 0.0
      %v4545 = vand.u32 %v4031, 4294901760
      %4546 = vmatpush1.msra.mxu0 %v4545
      %4547 = vmatprep.subr.mxu0 0.0
      %v4548 = vand.u32 %v4032, 4294901760
      %4549 = vmatpush1.msra.mxu0 %v4548
      %4550 = vmatprep.subr.mxu0 0.0
      %v4551 = vand.u32 %v4033, 4294901760
      %4552 = vmatpush1.msra.mxu0 %v4551
      %4553 = vmatprep.subr.mxu0 0.0
      %v4554 = vand.u32 %v4034, 4294901760
      %4555 = vmatpush1.msra.mxu0 %v4554
      %4556 = vmatprep.subr.mxu0 0.0
      %v4557 = vand.u32 %v4035, 4294901760
      %4558 = vmatpush1.msra.mxu0 %v4557
      %4559 = vmatprep.subr.mxu0 0.0
      %v4560 = vand.u32 %v4036, 4294901760
      %4561 = vmatpush1.msra.mxu0 %v4560
      %4562 = vmatprep.subr.mxu0 0.0
      %v4563 = vand.u32 %v4037, 4294901760
      %4564 = vmatpush1.msra.mxu0 %v4563
      %4565 = vmatprep.subr.mxu0 0.0
      %v4566 = vand.u32 %v4038, 4294901760
      %4567 = vmatpush1.msra.mxu0 %v4566
      %4568 = vmatprep.subr.mxu0 0.0
      %v4569 = vand.u32 %v4039, 4294901760
      %4570 = vmatpush1.msra.mxu0 %v4569
      %4571 = vmatprep.subr.mxu0 0.0
      %v4572 = vand.u32 %v4040, 4294901760
      %4573 = vmatpush1.msra.mxu0 %v4572
      %4574 = vmatprep.subr.mxu0 0.0
      %v4575 = vand.u32 %v4041, 4294901760
      %4576 = vmatpush1.msra.mxu0 %v4575
      %4577 = vmatprep.subr.mxu0 0.0
      %v4578 = vand.u32 %v4042, 4294901760
      %4579 = vmatpush1.msra.mxu0 %v4578
      %4580 = vmatprep.subr.mxu0 0.0
      %4581 = vmatpush1.msra.mxu0 0.0
      %4582 = vmatprep.subr.mxu0 0.0
      %4583 = vmatpush1.msra.mxu0 0.0
      %4584 = vmatprep.subr.mxu0 0.0
      %4585 = vmatpush1.msra.mxu0 0.0
      %4586 = vmatprep.subr.mxu0 0.0
      %4587 = vmatpush1.msra.mxu0 0.0
      %4588 = vmatprep.subr.mxu0 0.0
      %4589 = vmatpush1.msra.mxu0 0.0
      %4590 = vmatprep.subr.mxu0 0.0
      %4591 = vmatpush1.msra.mxu0 0.0
      %4592 = vmatprep.subr.mxu0 0.0
      %4593 = vmatpush1.msra.mxu0 0.0
      %4594 = vmatprep.subr.mxu0 0.0
      %4595 = vmatpush1.msra.mxu0 0.0
      %4596 = vmatprep.subr.mxu0 0.0
      %4597 = vmatpush1.msra.mxu0 0.0
      %4598 = vmatprep.subr.mxu0 0.0
      %4599 = vmatpush1.msra.mxu0 0.0
      %4600 = vmatprep.subr.mxu0 0.0
      %4601 = vmatpush1.msra.mxu0 0.0
      %4602 = vmatprep.subr.mxu0 0.0
      %4603 = vmatpush1.msra.mxu0 0.0
      %4604 = vmatprep.subr.mxu0 0.0
      %4605 = vmatpush1.msra.mxu0 0.0
      %4606 = vmatprep.subr.mxu0 0.0
      %4607 = vmatpush1.msra.mxu0 0.0
      %4608 = vmatprep.subr.mxu0 0.0
      %4609 = vmatpush1.msra.mxu0 0.0
      %4610 = vmatprep.subr.mxu0 0.0
      %4611 = vmatpush1.msra.mxu0 0.0
      %4612 = vmatprep.mubr.f32.mxu0 0.0
      %v4613 = vand.u32 %v4014, 4294901760
      %v4614 = vsub.f32 %v4014, %v4613
      %v4615 = vand.u32 %v4614, 4294901760
      %4616 = vmatmul.mubr.f32.gmra.mrb[0].mxu0 %v4615
      %v4617 = vpop.f32.mrb[0].mxu0
      %v4618 = vadd.f32 %v4487, %v4617
      %v4619 = vpop.f32.mrb[0].mxu0
      %4620 = vmatprep.mubr.f32.mxu0 0.0
      %v4621 = vand.u32 %v4016, 4294901760
      %v4622 = vsub.f32 %v4016, %v4621
      %v4623 = vand.u32 %v4622, 4294901760
      %4624 = vmatmul.mubr.f32.gmra.mrb[0].mxu0 %v4623
      %v4625 = vpop.f32.mrb[0].mxu0
      %v4626 = vadd.f32 %v4494, %v4625
      %v4627 = vpop.f32.mrb[0].mxu0
      %4628 = vmatprep.mubr.f32.mxu0 0.0
      %v4629 = vand.u32 %v4018, 4294901760
      %v4630 = vsub.f32 %v4018, %v4629
      %v4631 = vand.u32 %v4630, 4294901760
      %4632 = vmatmul.mubr.f32.gmra.mrb[0].mxu0 %v4631
      %v4633 = vpop.f32.mrb[0].mxu0
      %v4634 = vadd.f32 %v4501, %v4633
      %v4635 = vpop.f32.mrb[0].mxu0
      %4636 = vmatprep.mubr.f32.mxu0 0.0
      %v4637 = vand.u32 %v4020, 4294901760
      %v4638 = vsub.f32 %v4020, %v4637
      %v4639 = vand.u32 %v4638, 4294901760
      %4640 = vmatmul.mubr.f32.gmra.mrb[0].mxu0 %v4639
      %v4641 = vpop.f32.mrb[0].mxu0
      %v4642 = vadd.f32 %v4508, %v4641
      %v4643 = vpop.f32.mrb[0].mxu0
      %4644 = vmatprep.mubr.f32.mxu0 0.0
      %v4645 = vand.u32 %v4022, 4294901760
      %v4646 = vsub.f32 %v4022, %v4645
      %v4647 = vand.u32 %v4646, 4294901760
      %4648 = vmatmul.mubr.f32.gmra.mrb[0].mxu0 %v4647
      %v4649 = vpop.f32.mrb[0].mxu0
      %v4650 = vadd.f32 %v4515, %v4649
      %v4651 = vpop.f32.mrb[0].mxu0
      %4652 = vmatprep.mubr.f32.mxu0 0.0
      %v4653 = vand.u32 %v4024, 4294901760
      %v4654 = vsub.f32 %v4024, %v4653
      %v4655 = vand.u32 %v4654, 4294901760
      %4656 = vmatmul.mubr.f32.gmra.mrb[0].mxu0 %v4655
      %v4657 = vpop.f32.mrb[0].mxu0
      %v4658 = vadd.f32 %v4522, %v4657
      %v4659 = vpop.f32.mrb[0].mxu0
      %4660 = vmatprep.mubr.f32.mxu0 0.0
      %v4661 = vand.u32 %v4026, 4294901760
      %v4662 = vsub.f32 %v4026, %v4661
      %v4663 = vand.u32 %v4662, 4294901760
      %4664 = vmatmul.mubr.f32.gmra.mrb[0].mxu0 %v4663
      %v4665 = vpop.f32.mrb[0].mxu0
      %v4666 = vadd.f32 %v4529, %v4665
      %v4667 = vpop.f32.mrb[0].mxu0
      %4668 = vdwg.mxu0
      %4669 = vmatprep.subr.mxu0 0.0
      %v4670 = vand.u32 %v4027, 4294901760
      %v4671 = vsub.f32 %v4027, %v4670
      %v4672 = vand.u32 %v4671, 4294901760
      %4673 = vmatpush1.msra.mxu0 %v4672
      %4674 = vmatprep.subr.mxu0 0.0
      %v4675 = vand.u32 %v4028, 4294901760
      %v4676 = vsub.f32 %v4028, %v4675
      %v4677 = vand.u32 %v4676, 4294901760
      %4678 = vmatpush1.msra.mxu0 %v4677
      %4679 = vmatprep.subr.mxu0 0.0
      %v4680 = vand.u32 %v4029, 4294901760
      %v4681 = vsub.f32 %v4029, %v4680
      %v4682 = vand.u32 %v4681, 4294901760
      %4683 = vmatpush1.msra.mxu0 %v4682
      %4684 = vmatprep.subr.mxu0 0.0
      %v4685 = vand.u32 %v4030, 4294901760
      %v4686 = vsub.f32 %v4030, %v4685
      %v4687 = vand.u32 %v4686, 4294901760
      %4688 = vmatpush1.msra.mxu0 %v4687
      %4689 = vmatprep.subr.mxu0 0.0
      %v4690 = vand.u32 %v4031, 4294901760
      %v4691 = vsub.f32 %v4031, %v4690
      %v4692 = vand.u32 %v4691, 4294901760
      %4693 = vmatpush1.msra.mxu0 %v4692
      %4694 = vmatprep.subr.mxu0 0.0
      %v4695 = vand.u32 %v4032, 4294901760
      %v4696 = vsub.f32 %v4032, %v4695
      %v4697 = vand.u32 %v4696, 4294901760
      %4698 = vmatpush1.msra.mxu0 %v4697
      %4699 = vmatprep.subr.mxu0 0.0
      %v4700 = vand.u32 %v4033, 4294901760
      %v4701 = vsub.f32 %v4033, %v4700
      %v4702 = vand.u32 %v4701, 4294901760
      %4703 = vmatpush1.msra.mxu0 %v4702
      %4704 = vmatprep.subr.mxu0 0.0
      %v4705 = vand.u32 %v4034, 4294901760
      %v4706 = vsub.f32 %v4034, %v4705
      %v4707 = vand.u32 %v4706, 4294901760
      %4708 = vmatpush1.msra.mxu0 %v4707
      %4709 = vmatprep.subr.mxu0 0.0
      %v4710 = vand.u32 %v4035, 4294901760
      %v4711 = vsub.f32 %v4035, %v4710
      %v4712 = vand.u32 %v4711, 4294901760
      %4713 = vmatpush1.msra.mxu0 %v4712
      %4714 = vmatprep.subr.mxu0 0.0
      %v4715 = vand.u32 %v4036, 4294901760
      %v4716 = vsub.f32 %v4036, %v4715
      %v4717 = vand.u32 %v4716, 4294901760
      %4718 = vmatpush1.msra.mxu0 %v4717
      %4719 = vmatprep.subr.mxu0 0.0
      %v4720 = vand.u32 %v4037, 4294901760
      %v4721 = vsub.f32 %v4037, %v4720
      %v4722 = vand.u32 %v4721, 4294901760
      %4723 = vmatpush1.msra.mxu0 %v4722
      %4724 = vmatprep.subr.mxu0 0.0
      %v4725 = vand.u32 %v4038, 4294901760
      %v4726 = vsub.f32 %v4038, %v4725
      %v4727 = vand.u32 %v4726, 4294901760
      %4728 = vmatpush1.msra.mxu0 %v4727
      %4729 = vmatprep.subr.mxu0 0.0
      %v4730 = vand.u32 %v4039, 4294901760
      %v4731 = vsub.f32 %v4039, %v4730
      %v4732 = vand.u32 %v4731, 4294901760
      %4733 = vmatpush1.msra.mxu0 %v4732
      %4734 = vmatprep.subr.mxu0 0.0
      %v4735 = vand.u32 %v4040, 4294901760
      %v4736 = vsub.f32 %v4040, %v4735
      %v4737 = vand.u32 %v4736, 4294901760
      %4738 = vmatpush1.msra.mxu0 %v4737
      %4739 = vmatprep.subr.mxu0 0.0
      %v4740 = vand.u32 %v4041, 4294901760
      %v4741 = vsub.f32 %v4041, %v4740
      %v4742 = vand.u32 %v4741, 4294901760
      %4743 = vmatpush1.msra.mxu0 %v4742
      %4744 = vmatprep.subr.mxu0 0.0
      %v4745 = vand.u32 %v4042, 4294901760
      %v4746 = vsub.f32 %v4042, %v4745
      %v4747 = vand.u32 %v4746, 4294901760
      %4748 = vmatpush1.msra.mxu0 %v4747
      %4749 = vmatprep.subr.mxu0 0.0
      %4750 = vmatpush1.msra.mxu0 0.0
      %4751 = vmatprep.subr.mxu0 0.0
      %4752 = vmatpush1.msra.mxu0 0.0
      %4753 = vmatprep.subr.mxu0 0.0
      %4754 = vmatpush1.msra.mxu0 0.0
      %4755 = vmatprep.subr.mxu0 0.0
      %4756 = vmatpush1.msra.mxu0 0.0
      %4757 = vmatprep.subr.mxu0 0.0
      %4758 = vmatpush1.msra.mxu0 0.0
      %4759 = vmatprep.subr.mxu0 0.0
      %4760 = vmatpush1.msra.mxu0 0.0
      %4761 = vmatprep.subr.mxu0 0.0
      %4762 = vmatpush1.msra.mxu0 0.0
      %4763 = vmatprep.subr.mxu0 0.0
      %4764 = vmatpush1.msra.mxu0 0.0
      %4765 = vmatprep.subr.mxu0 0.0
      %4766 = vmatpush1.msra.mxu0 0.0
      %4767 = vmatprep.subr.mxu0 0.0
      %4768 = vmatpush1.msra.mxu0 0.0
      %4769 = vmatprep.subr.mxu0 0.0
      %4770 = vmatpush1.msra.mxu0 0.0
      %4771 = vmatprep.subr.mxu0 0.0
      %4772 = vmatpush1.msra.mxu0 0.0
      %4773 = vmatprep.subr.mxu0 0.0
      %4774 = vmatpush1.msra.mxu0 0.0
      %4775 = vmatprep.subr.mxu0 0.0
      %4776 = vmatpush1.msra.mxu0 0.0
      %4777 = vmatprep.subr.mxu0 0.0
      %4778 = vmatpush1.msra.mxu0 0.0
      %4779 = vmatprep.subr.mxu0 0.0
      %4780 = vmatpush1.msra.mxu0 0.0
      %4781 = vmatprep.mubr.f32.mxu0 0.0
      %v4782 = vand.u32 %v4014, 4294901760
      %4783 = vmatmul.mubr.f32.gmra.mrb[0].mxu0 %v4782
      %v4784 = vpop.f32.mrb[0].mxu0
      %v4785 = vadd.f32 %v4618, %v4784
      %v4786 = vpop.f32.mrb[0].mxu0
      %4787 = vmatprep.mubr.f32.mxu0 0.0
      %v4788 = vand.u32 %v4016, 4294901760
      %4789 = vmatmul.mubr.f32.gmra.mrb[0].mxu0 %v4788
      %v4790 = vpop.f32.mrb[0].mxu0
      %v4791 = vadd.f32 %v4626, %v4790
      %v4792 = vpop.f32.mrb[0].mxu0
      %4793 = vmatprep.mubr.f32.mxu0 0.0
      %v4794 = vand.u32 %v4018, 4294901760
      %4795 = vmatmul.mubr.f32.gmra.mrb[0].mxu0 %v4794
      %v4796 = vpop.f32.mrb[0].mxu0
      %v4797 = vadd.f32 %v4634, %v4796
      %v4798 = vpop.f32.mrb[0].mxu0
      %4799 = vmatprep.mubr.f32.mxu0 0.0
      %v4800 = vand.u32 %v4020, 4294901760
      %4801 = vmatmul.mubr.f32.gmra.mrb[0].mxu0 %v4800
      %v4802 = vpop.f32.mrb[0].mxu0
      %v4803 = vadd.f32 %v4642, %v4802
      %v4804 = vpop.f32.mrb[0].mxu0
      %4805 = vmatprep.mubr.f32.mxu0 0.0
      %v4806 = vand.u32 %v4022, 4294901760
      %4807 = vmatmul.mubr.f32.gmra.mrb[0].mxu0 %v4806
      %v4808 = vpop.f32.mrb[0].mxu0
      %v4809 = vadd.f32 %v4650, %v4808
      %v4810 = vpop.f32.mrb[0].mxu0
      %4811 = vmatprep.mubr.f32.mxu0 0.0
      %v4812 = vand.u32 %v4024, 4294901760
      %4813 = vmatmul.mubr.f32.gmra.mrb[0].mxu0 %v4812
      %v4814 = vpop.f32.mrb[0].mxu0
      %v4815 = vadd.f32 %v4658, %v4814
      %v4816 = vpop.f32.mrb[0].mxu0
      %4817 = vmatprep.mubr.f32.mxu0 0.0
      %v4818 = vand.u32 %v4026, 4294901760
      %4819 = vmatmul.mubr.f32.gmra.mrb[0].mxu0 %v4818
      %v4820 = vpop.f32.mrb[0].mxu0
      %v4821 = vadd.f32 %v4666, %v4820
      %v4822 = vpop.f32.mrb[0].mxu0
      %4823 = vdwg.mxu0
      %4824 = vmatprep.subr.mxu0 0.0
      %v4825 = vand.u32 %v4027, 4294901760
      %4826 = vmatpush1.msra.mxu0 %v4825
      %4827 = vmatprep.subr.mxu0 0.0
      %v4828 = vand.u32 %v4028, 4294901760
      %4829 = vmatpush1.msra.mxu0 %v4828
      %4830 = vmatprep.subr.mxu0 0.0
      %v4831 = vand.u32 %v4029, 4294901760
      %4832 = vmatpush1.msra.mxu0 %v4831
      %4833 = vmatprep.subr.mxu0 0.0
      %v4834 = vand.u32 %v4030, 4294901760
      %4835 = vmatpush1.msra.mxu0 %v4834
      %4836 = vmatprep.subr.mxu0 0.0
      %v4837 = vand.u32 %v4031, 4294901760
      %4838 = vmatpush1.msra.mxu0 %v4837
      %4839 = vmatprep.subr.mxu0 0.0
      %v4840 = vand.u32 %v4032, 4294901760
      %4841 = vmatpush1.msra.mxu0 %v4840
      %4842 = vmatprep.subr.mxu0 0.0
      %v4843 = vand.u32 %v4033, 4294901760
      %4844 = vmatpush1.msra.mxu0 %v4843
      %4845 = vmatprep.subr.mxu0 0.0
      %v4846 = vand.u32 %v4034, 4294901760
      %4847 = vmatpush1.msra.mxu0 %v4846
      %4848 = vmatprep.subr.mxu0 0.0
      %v4849 = vand.u32 %v4035, 4294901760
      %4850 = vmatpush1.msra.mxu0 %v4849
      %4851 = vmatprep.subr.mxu0 0.0
      %v4852 = vand.u32 %v4036, 4294901760
      %4853 = vmatpush1.msra.mxu0 %v4852
      %4854 = vmatprep.subr.mxu0 0.0
      %v4855 = vand.u32 %v4037, 4294901760
      %4856 = vmatpush1.msra.mxu0 %v4855
      %4857 = vmatprep.subr.mxu0 0.0
      %v4858 = vand.u32 %v4038, 4294901760
      %4859 = vmatpush1.msra.mxu0 %v4858
      %4860 = vmatprep.subr.mxu0 0.0
      %v4861 = vand.u32 %v4039, 4294901760
      %4862 = vmatpush1.msra.mxu0 %v4861
      %4863 = vmatprep.subr.mxu0 0.0
      %v4864 = vand.u32 %v4040, 4294901760
      %4865 = vmatpush1.msra.mxu0 %v4864
      %4866 = vmatprep.subr.mxu0 0.0
      %v4867 = vand.u32 %v4041, 4294901760
      %4868 = vmatpush1.msra.mxu0 %v4867
      %4869 = vmatprep.subr.mxu0 0.0
      %v4870 = vand.u32 %v4042, 4294901760
      %4871 = vmatpush1.msra.mxu0 %v4870
      %4872 = vmatprep.subr.mxu0 0.0
      %4873 = vmatpush1.msra.mxu0 0.0
      %4874 = vmatprep.subr.mxu0 0.0
      %4875 = vmatpush1.msra.mxu0 0.0
      %4876 = vmatprep.subr.mxu0 0.0
      %4877 = vmatpush1.msra.mxu0 0.0
      %4878 = vmatprep.subr.mxu0 0.0
      %4879 = vmatpush1.msra.mxu0 0.0
      %4880 = vmatprep.subr.mxu0 0.0
      %4881 = vmatpush1.msra.mxu0 0.0
      %4882 = vmatprep.subr.mxu0 0.0
      %4883 = vmatpush1.msra.mxu0 0.0
      %4884 = vmatprep.subr.mxu0 0.0
      %4885 = vmatpush1.msra.mxu0 0.0
      %4886 = vmatprep.subr.mxu0 0.0
      %4887 = vmatpush1.msra.mxu0 0.0
      %4888 = vmatprep.subr.mxu0 0.0
      %4889 = vmatpush1.msra.mxu0 0.0
      %4890 = vmatprep.subr.mxu0 0.0
      %4891 = vmatpush1.msra.mxu0 0.0
      %4892 = vmatprep.subr.mxu0 0.0
      %4893 = vmatpush1.msra.mxu0 0.0
      %4894 = vmatprep.subr.mxu0 0.0
      %4895 = vmatpush1.msra.mxu0 0.0
      %4896 = vmatprep.subr.mxu0 0.0
      %4897 = vmatpush1.msra.mxu0 0.0
      %4898 = vmatprep.subr.mxu0 0.0
      %4899 = vmatpush1.msra.mxu0 0.0
      %4900 = vmatprep.subr.mxu0 0.0
      %4901 = vmatpush1.msra.mxu0 0.0
      %4902 = vmatprep.subr.mxu0 0.0
      %4903 = vmatpush1.msra.mxu0 0.0
      %4904 = vmatprep.mubr.f32.mxu0 0.0
      %v4905 = vand.u32 %v4014, 4294901760
      %4906 = vmatmul.mubr.f32.gmra.mrb[0].mxu0 %v4905
      %v4907 = vpop.f32.mrb[0].mxu0
      %v4908 = vadd.f32 %v4785, %v4907
      %v4909 = vpop.f32.mrb[0].mxu0
      %4910 = vmatprep.mubr.f32.mxu0 0.0
      %v4911 = vand.u32 %v4016, 4294901760
      %4912 = vmatmul.mubr.f32.gmra.mrb[0].mxu0 %v4911
      %v4913 = vpop.f32.mrb[0].mxu0
      %v4914 = vadd.f32 %v4791, %v4913
      %v4915 = vpop.f32.mrb[0].mxu0
      %4916 = vmatprep.mubr.f32.mxu0 0.0
      %v4917 = vand.u32 %v4018, 4294901760
      %4918 = vmatmul.mubr.f32.gmra.mrb[0].mxu0 %v4917
      %v4919 = vpop.f32.mrb[0].mxu0
      %v4920 = vadd.f32 %v4797, %v4919
      %v4921 = vpop.f32.mrb[0].mxu0
      %4922 = vmatprep.mubr.f32.mxu0 0.0
      %v4923 = vand.u32 %v4020, 4294901760
      %4924 = vmatmul.mubr.f32.gmra.mrb[0].mxu0 %v4923
      %v4925 = vpop.f32.mrb[0].mxu0
      %v4926 = vadd.f32 %v4803, %v4925
      %v4927 = vpop.f32.mrb[0].mxu0
      %4928 = vmatprep.mubr.f32.mxu0 0.0
      %v4929 = vand.u32 %v4022, 4294901760
      %4930 = vmatmul.mubr.f32.gmra.mrb[0].mxu0 %v4929
      %v4931 = vpop.f32.mrb[0].mxu0
      %v4932 = vadd.f32 %v4809, %v4931
      %v4933 = vpop.f32.mrb[0].mxu0
      %4934 = vmatprep.mubr.f32.mxu0 0.0
      %v4935 = vand.u32 %v4024, 4294901760
      %4936 = vmatmul.mubr.f32.gmra.mrb[0].mxu0 %v4935
      %v4937 = vpop.f32.mrb[0].mxu0
      %v4938 = vadd.f32 %v4815, %v4937
      %v4939 = vpop.f32.mrb[0].mxu0
      %4940 = vmatprep.mubr.f32.mxu0 0.0
      %v4941 = vand.u32 %v4026, 4294901760
      %4942 = vmatmul.mubr.f32.gmra.mrb[0].mxu0 %v4941
      %v4943 = vpop.f32.mrb[0].mxu0
      %v4944 = vadd.f32 %v4821, %v4943
      %v4945 = vpop.f32.mrb[0].mxu0
      %4946 = vdwg.mxu0
      %vm4947 = vcmask 15360
      %4948 = vst.msk [vmem:[%s307] sm:$0xff] %vm4947, %v4908
      %4949 = vst.msk [vmem:[%s307 + $0x8] sm:$0xff] %vm4947, %v4914
      %4950 = vst.msk [vmem:[%s307 + $0x10] sm:$0xff] %vm4947, %v4920
      %4951 = vst.msk [vmem:[%s307 + $0x18] sm:$0xff] %vm4947, %v4926
      %4952 = vst.msk [vmem:[%s307 + $0x20] sm:$0xff] %vm4947, %v4932
      %4953 = vst.msk [vmem:[%s307 + $0x28] sm:$0xff] %vm4947, %v4938
      %4954 = vst.msk [vmem:[%s307 + $0x30] sm:$0xff] %vm4947, %v4944
      %s4955 = smul.u32 7, %s19
      %p4956 = scmp.lt.s32.totalorder %s4955, 13
      %s4957 = scalar_select %p4956, %s4955, 13
      %s4958 = smul.addr %s4957, 8
      %s4959 = scalar_lea.vmem %s8, %s4958
      // Predicated region
      $region53: #{rbfs2_forward.1} parent=51 // pred_check
        %p4960 = pneg %p210
      $region54: #{rbfs2_forward.1} parent=51 // pred_check_branch
        %4962 = sbr.rel (%p4960) target = $region56
      $region55: #{rbfs2_forward.1} parent=51 // pred_region
        %s4963 = smul.u32 7, %s19
      $region56: #{rbfs2_forward.1} parent=51 // pred_fallthru
        _
    $region52: #{rbfs2_forward.1} parent=5 // pred_fallthru
      _
    %p4964 = scmp.le.s32.totalorder 2, %s14
    // Predicated region
    $region57: #{rbfs2_forward.1} parent=5 // pred_check
      %p4965 = pneg %p4964
    $region58: #{rbfs2_forward.1} parent=5 // pred_check_branch
      %4967 = sbr.rel (%p4965) target = $region60
    $region59: #{rbfs2_forward.1} parent=5 // pred_region
      %s4968 = ssub.s32 %s14, 2
      // Predicated region
      $region61: #{rbfs2_forward.1} parent=59 // pred_check
        %p4969 = pneg %p216
      $region62: #{rbfs2_forward.1} parent=59 // pred_check_branch
        %4971 = sbr.rel (%p4969) target = $region64
      $region63: #{rbfs2_forward.1} parent=59 // pred_region
        %s4972 = smul.u32 7, %s20
        %p4973 = scmp.lt.s32.totalorder %s4972, 13
        %s4974 = scalar_select %p4973, %s4972, 13
        %s4975 = smul.addr %s4974, 8
        %s4976 = scalar_lea.vmem %s8, %s4975
      $region64: #{rbfs2_forward.1} parent=59 // pred_fallthru
        _
    $region60: #{rbfs2_forward.1} parent=5 // pred_fallthru
      _
  $region6: #{rbfs2_forward.1} parent=0 // loop_footer
    %s18 = sadd.s32 1, %s14
  $region7: #{rbfs2_forward.1} parent=0 // loop_footer_branch
    %13 = sbr.rel target = $region3
  $region8: #{rbfs2_forward.1} parent=0 // loop_exit
    _

</llo_original>
